<compile_context>
chip_gen: v6e
topology: v6e:2x2x1
jax: 0.10.0
libtpu: 0.0.40
codegen_flags: <defaults>
</compile_context>

<pallas_src>
import functools

import jax
import jax.numpy as jnp
from jax.experimental import pallas as pl
from jax.experimental.pallas import tpu as pltpu


def _round_up(x, m):
    return (x + m - 1) // m * m


# ----------------------------------------------------------------------------
# Fused Pallas kernel: encoder LSTM -> latent head -> decoder LSTM ->
#                      vocab projection + segmented log_softmax
# ----------------------------------------------------------------------------
def lstm_vae_fused_kernel(
        # inputs
        x_ref, mask_ref, wih_ref, bih_ref, enc_whh_ref, dec_whh_ref,
        h0_ref, c0_ref, noise_ref, wm_ref, bm_ref, wv_ref, bv_ref,
        wd_ref, bd_ref, wout_ref, bout_ref,
        # outputs
        out_ref, mean_ref, logvar_ref, z_ref, hn_ref, cn_ref,
        # scratch
        gx_sc, dec_sc,
        *, T, Bp, H, V_act, V_res):
    """Whole LSTM_VAE forward for one (padded) batch, entirely in VMEM.

    x_ref:    (T*Bp, I) bf16  time-major flattened embedded inputs (row t*Bp+b)
    mask_ref: (T*Bp, 1) f32   1.0 where t < length[b]
    wih_ref:  (I, 8H) bf16    [enc | dec] input weights, gate order [i,f,o,g]
    bih_ref:  (1, 8H) f32     [enc | dec] combined biases (b_ih + b_hh)
    *_whh:    (H, 4H) f32     recurrent weights, gate order [i,f,o,g]
    wout_ref: (H, Vpad) bf16  [act | res | 0-pad] output projection
    out_ref:  (T*Bp, Vpad) f32 segmented log-probs, time-major flat
    """
    # ---- fused encoder+decoder input projection (one MXU pass over x) ----
    x = x_ref[...]                                        # (T*Bp, I) bf16
    gx_sc[...] = (jnp.dot(x, wih_ref[...],
                          preferred_element_type=jnp.float32)
                  + bih_ref[...])                         # (T*Bp, 8H) f32

    # Validity mask: one compare, then static per-step slices.
    mask_all = mask_ref[...] != 0.0                       # (T*Bp, 1) bool

    def run_recurrence(whh_ref, col0, h, c, capture_out):
        """LSTM recurrence with vreg-resident h/c over precomputed gates."""
        whh = whh_ref[...]                                # hoisted once
        # T is small & static -> fully unrolled, all slices static.
        # TODO(synk): for large T switch to lax.fori_loop(..., unroll=k) to
        # bound live ranges / vreg pressure.
        for t in range(T):
            rows = slice(t * Bp, (t + 1) * Bp)
            gx = gx_sc[rows, col0:col0 + 4 * H]           # (Bp, 4H)
            gates = gx + jnp.dot(h, whh,
                                 preferred_element_type=jnp.float32)
            # Gate order [i, f, o, g]: sigmoid only the first 3H lanes.
            sg = jax.nn.sigmoid(gates[:, :3 * H])
            i_g = sg[:, 0 * H:1 * H]
            f_g = sg[:, 1 * H:2 * H]
            o_g = sg[:, 2 * H:3 * H]
            g_g = jnp.tanh(gates[:, 3 * H:4 * H])
            c_new = f_g * c + i_g * g_g
            h_new = o_g * jnp.tanh(c_new)
            m = mask_all[rows, :]                         # (Bp, 1) bool
            h = jnp.where(m, h_new, h)
            c = jnp.where(m, c_new, c)
            if capture_out:
                # zeros at padded positions == pad_packed_sequence semantics
                dec_sc[rows, :] = jnp.where(m, h_new, 0.0)
        return h, c

    # ---------------- Encoder LSTM ----------------
    h_n, c_n = run_recurrence(enc_whh_ref, 0, h0_ref[...], c0_ref[...], False)
    hn_ref[...] = h_n                                     # written once
    cn_ref[...] = c_n

    # ---------------- VAE latent head ----------------
    mean = jnp.dot(h_n, wm_ref[...],
                   preferred_element_type=jnp.float32) + bm_ref[...]
    logvar = jnp.dot(h_n, wv_ref[...],
                     preferred_element_type=jnp.float32) + bv_ref[...]
    std = jnp.exp(0.5 * logvar)
    z = noise_ref[...] * std + mean
    h_dec = jnp.dot(z, wd_ref[...],
                    preferred_element_type=jnp.float32) + bd_ref[...]
    mean_ref[...] = mean
    logvar_ref[...] = logvar
    z_ref[...] = z

    # ---------------- Decoder LSTM ----------------
    # (h_dec, h_dec) initial state, matching the PyTorch module.
    run_recurrence(dec_whh_ref, 4 * H, h_dec, h_dec, True)

    # -------- Vocab projection + segmented log_softmax (lane-dense) --------
    # One lane-dense matmul against the zero-padded (H, Vpad) weight, then a
    # per-head (segmented) log-softmax so the single output store is a full
    # unmasked 128-lane vst.  Padded columns produce finite garbage that is
    # trimmed in glue.
    logits = (jnp.dot(dec_sc[...].astype(jnp.bfloat16), wout_ref[...],
                      preferred_element_type=jnp.float32)
              + bout_ref[...])                            # (T*Bp, Vpad)
    col = jax.lax.broadcasted_iota(jnp.int32, logits.shape, 1)
    is_act = col < V_act
    is_res = jnp.logical_and(col >= V_act, col < V_act + V_res)
    neg = jnp.float32(-1e30)
    m_act = jnp.max(jnp.where(is_act, logits, neg), axis=-1, keepdims=True)
    m_res = jnp.max(jnp.where(is_res, logits, neg), axis=-1, keepdims=True)
    shifted = logits - jnp.where(is_act, m_act, m_res)
    e = jnp.exp(shifted)
    lse_act = jnp.log(jnp.sum(jnp.where(is_act, e, 0.0), axis=-1,
                              keepdims=True))
    lse_res = jnp.log(jnp.sum(jnp.where(is_res, e, 0.0), axis=-1,
                              keepdims=True))
    out_ref[...] = shifted - jnp.where(is_act, lse_act, lse_res)


# ----------------------------------------------------------------------------
# Wrapper around the single fused pallas_call
# ----------------------------------------------------------------------------
_VMEM = pl.BlockSpec(memory_space=pltpu.MemorySpace.VMEM)


def run_fused_vae(x_flat, mask, wih_cat, b_cat, enc_whh, dec_whh, h0, c0,
                  noise, w_mean, b_mean, w_logvar, b_logvar, w_init_dec,
                  b_init_dec, w_out_pad, b_out_pad, *, T, Bp, V_act, V_res):
    H = h0.shape[-1]
    L = w_mean.shape[-1]
    V_pad = w_out_pad.shape[-1]
    kernel = functools.partial(lstm_vae_fused_kernel,
                               T=T, Bp=Bp, H=H, V_act=V_act, V_res=V_res)
    out_shapes = (
        jax.ShapeDtypeStruct((T * Bp, V_pad), jnp.float32),  # log-probs (flat)
        jax.ShapeDtypeStruct((Bp, L), jnp.float32),           # mean
        jax.ShapeDtypeStruct((Bp, L), jnp.float32),           # log_var
        jax.ShapeDtypeStruct((Bp, L), jnp.float32),           # z
        jax.ShapeDtypeStruct((Bp, H), jnp.float32),           # h_n (encoder)
        jax.ShapeDtypeStruct((Bp, H), jnp.float32),           # c_n (encoder)
    )
    # Gridless: the whole problem fits VMEM.  On v7x, add a batch grid axis
    # with dimension_semantics=("parallel",) to use the second TensorCore at
    # realistic batch sizes; at B=4 it only adds per-step grid overhead.
    return pl.pallas_call(
        kernel,
        out_shape=out_shapes,
        in_specs=[_VMEM] * 17,
        out_specs=(_VMEM,) * 6,
        scratch_shapes=[
            pltpu.VMEM((T * Bp, 8 * H), jnp.float32),   # fused input gates
            pltpu.VMEM((T * Bp, H), jnp.float32),       # decoder output seq
        ],
    )(x_flat, mask, wih_cat, b_cat, enc_whh, dec_whh, h0, c0, noise,
      w_mean, b_mean, w_logvar, b_logvar, w_init_dec, b_init_dec,
      w_out_pad, b_out_pad)


# ----------------------------------------------------------------------------
# Full LSTM_VAE forward (embedding gather + layout/padding glue in plain JAX,
# everything else in the fused Pallas kernel)
# ----------------------------------------------------------------------------
def _permute_gates_ifgo_to_ifog(w):
    """Permute 4H gate columns from PyTorch [i,f,g,o] to kernel [i,f,o,g]."""
    i, f, g, o = jnp.split(w, 4, axis=-1)
    return jnp.concatenate([i, f, o, g], axis=-1)


def lstm_vae_forward(params, x_act, x_res, sentences_length, hidden_encoder,
                     noise):
    """Mirrors LSTM_VAE.forward (num_layers == 1)."""
    B, T = x_act.shape
    H = params["w_mean"].shape[0]
    V_act = params["w_out_act"].shape[-1]
    V_res = params["w_out_res"].shape[-1]
    Vtot = V_act + V_res
    V_pad = _round_up(Vtot, 128)
    Bp = _round_up(B, 8)                       # sublane-pad the batch

    # Embedding lookups + concat (gather stays in XLA; no tiled hot path).
    emb_act = jnp.take(params["embed_act"], x_act, axis=0)    # (B, T, E)
    emb_res = jnp.take(params["embed_res"], x_res, axis=0)    # (B, T, E)
    x_embed = jnp.concatenate([emb_act, emb_res], axis=2)     # (B, T, I)
    x_embed = jnp.pad(x_embed, ((0, Bp - B), (0, 0), (0, 0)))
    # Time-major flat layout (row = t*Bp + b); bf16 operand for the MXU.
    x_flat = jnp.transpose(x_embed, (1, 0, 2)).reshape(T * Bp, -1)
    x_flat = x_flat.astype(jnp.bfloat16)

    lengths = jnp.pad(sentences_length.astype(jnp.int32), (0, Bp - B))
    # Precomputed validity mask, row order t*Bp + b.
    mask = (jnp.arange(T, dtype=jnp.int32)[:, None] < lengths[None, :])
    mask = mask.astype(jnp.float32).reshape(T * Bp, 1)

    h0_enc = jnp.pad(hidden_encoder[0][0], ((0, Bp - B), (0, 0)))  # (Bp, H)
    c0_enc = jnp.pad(hidden_encoder[1][0], ((0, Bp - B), (0, 0)))
    noise_p = jnp.pad(noise, ((0, Bp - B), (0, 0)))

    # Gate-permute ([i,f,g,o] -> [i,f,o,g]) and fuse enc+dec input weights.
    enc_wih = _permute_gates_ifgo_to_ifog(params["enc_w_ih"])
    dec_wih = _permute_gates_ifgo_to_ifog(params["dec_w_ih"])
    enc_whh = _permute_gates_ifgo_to_ifog(params["enc_w_hh"])
    dec_whh = _permute_gates_ifgo_to_ifog(params["dec_w_hh"])
    enc_b = _permute_gates_ifgo_to_ifog(params["enc_b"])
    dec_b = _permute_gates_ifgo_to_ifog(params["dec_b"])
    wih_cat = jnp.concatenate([enc_wih, dec_wih], axis=1).astype(jnp.bfloat16)
    b_cat = jnp.concatenate([enc_b, dec_b], axis=1)

    # Concatenated, lane-padded output projection -> one dense matmul + store.
    w_out = jnp.concatenate([params["w_out_act"], params["w_out_res"]], axis=1)
    b_out = jnp.concatenate([params["b_out_act"], params["b_out_res"]], axis=1)
    w_out_pad = jnp.pad(w_out, ((0, 0), (0, V_pad - Vtot))).astype(jnp.bfloat16)
    b_out_pad = jnp.pad(b_out, ((0, 0), (0, V_pad - Vtot)))

    (lp_flat, mean, log_var, z, h_n, c_n) = run_fused_vae(
        x_flat, mask, wih_cat, b_cat, enc_whh, dec_whh, h0_enc, c0_enc,
        noise_p,
        params["w_mean"], params["b_mean"],
        params["w_logvar"], params["b_logvar"],
        params["w_init_dec"], params["b_init_dec"],
        w_out_pad, b_out_pad,
        T=T, Bp=Bp, V_act=V_act, V_res=V_res)

    # Trim batch/lane padding and restore (B, T, V) layout in glue.
    lp = jnp.transpose(lp_flat.reshape(T, Bp, V_pad)[:, :B, :], (1, 0, 2))
    x_hat_act = lp[:, :, :V_act]
    x_hat_res = lp[:, :, V_act:Vtot]

    # Match PyTorch shapes: (num_layers, B, ...) leading dim for state tensors.
    mean = mean[:B][None]
    log_var = log_var[:B][None]
    z = z[:B][None]
    hidden_encoder_out = (h_n[:B][None], c_n[:B][None])
    return x_hat_act, x_hat_res, mean, log_var, z, hidden_encoder_out


# ----------------------------------------------------------------------------
# Deterministic parameter construction (PyTorch layout: gate order [i,f,g,o],
# combined bias b_ih + b_hh, Linear weights stored as (in, out))
# ----------------------------------------------------------------------------
def make_params(key, vocab_size, embed_size, hidden_size, latent_size):
    V_act, V_res = vocab_size
    E, H, L = embed_size, hidden_size, latent_size
    ks = jax.random.split(key, 16)

    def init(k, shape, scale=0.1):
        return (scale * jax.random.normal(k, shape)).astype(jnp.float32)

    return {
        "embed_act": init(ks[0], (V_act, E)),
        "embed_res": init(ks[1], (V_res, E)),
        "enc_w_ih": init(ks[2], (2 * E, 4 * H)),
        "enc_w_hh": init(ks[3], (H, 4 * H)),
        "enc_b": init(ks[4], (1, 4 * H)),
        "w_mean": init(ks[5], (H, L)),
        "b_mean": init(ks[6], (1, L)),
        "w_logvar": init(ks[7], (H, L)),
        "b_logvar": init(ks[8], (1, L)),
        "w_init_dec": init(ks[9], (L, H)),
        "b_init_dec": init(ks[10], (1, H)),
        "dec_w_ih": init(ks[11], (2 * E, 4 * H)),
        "dec_w_hh": init(ks[12], (H, 4 * H)),
        "dec_b": init(ks[13], (1, 4 * H)),
        "w_out_act": init(ks[14], (H, V_act)),
        "b_out_act": jnp.zeros((1, V_act), jnp.float32),
        "w_out_res": init(ks[15], (H, V_res)),
        "b_out_res": jnp.zeros((1, V_res), jnp.float32),
    }


# ----------------------------------------------------------------------------
if __name__ == "__main__":
    vocab_size = (16, 12)     # (vocab_act, vocab_res)
    embed_size = 8
    hidden_size = 32
    latent_size = 16
    num_layers = 1
    B, T = 4, 8

    key = jax.random.PRNGKey(0)
    k_param, k_act, k_res, k_noise = jax.random.split(key, 4)

    params = make_params(k_param, vocab_size, embed_size, hidden_size,
                         latent_size)

    x_act = jax.random.randint(k_act, (B, T), 0, vocab_size[0], dtype=jnp.int32)
    x_res = jax.random.randint(k_res, (B, T), 0, vocab_size[1], dtype=jnp.int32)
    sentences_length = jnp.array([8, 6, 5, 3], dtype=jnp.int32)

    # init_hidden(batch_size): zeros (num_layers, B, H) for both h and c.
    hidden_encoder = (jnp.zeros((num_layers, B, hidden_size), jnp.float32),
                      jnp.zeros((num_layers, B, hidden_size), jnp.float32))

    # torch.randn(batch_size, latent_size) equivalent (deterministic here).
    noise = jax.random.normal(k_noise, (B, latent_size), dtype=jnp.float32)

    fwd = jax.jit(functools.partial(lstm_vae_forward, params))
    x_hat_act, x_hat_res, mean, log_var, z, hidden_enc_out = fwd(
        x_act, x_res, sentences_length, hidden_encoder, noise)

    jax.block_until_ready((x_hat_act, x_hat_res, mean, log_var, z,
                           hidden_enc_out))

    assert x_hat_act.shape == (B, T, vocab_size[0])
    assert x_hat_res.shape == (B, T, vocab_size[1])
    assert mean.shape == (num_layers, B, latent_size)
    assert log_var.shape == (num_layers, B, latent_size)
    assert z.shape == (num_layers, B, latent_size)
    assert hidden_enc_out[0].shape == (num_layers, B, hidden_size)
    assert hidden_enc_out[1].shape == (num_layers, B, hidden_size)
    # log_softmax rows must sum to 1 in prob space.
    assert jnp.allclose(jnp.exp(x_hat_act).sum(-1), 1.0, atol=1e-4)
    assert jnp.allclose(jnp.exp(x_hat_res).sum(-1), 1.0, atol=1e-4)
    assert bool(jnp.all(jnp.isfinite(x_hat_act)))
    assert bool(jnp.all(jnp.isfinite(x_hat_res)))

    print("KERNEL_OK")
</pallas_src>

<mosaic_0001>
module attributes {stable_mosaic.version = 11 : i64} {
  func.func @lstm_vae_fused_kernel(%arg0: memref<64x16xbf16, #tpu.memory_space<vmem>>, %arg1: memref<64x1xf32, #tpu.memory_space<vmem>>, %arg2: memref<16x256xbf16, #tpu.memory_space<vmem>>, %arg3: memref<1x256xf32, #tpu.memory_space<vmem>>, %arg4: memref<32x128xf32, #tpu.memory_space<vmem>>, %arg5: memref<32x128xf32, #tpu.memory_space<vmem>>, %arg6: memref<8x32xf32, #tpu.memory_space<vmem>>, %arg7: memref<8x32xf32, #tpu.memory_space<vmem>>, %arg8: memref<8x16xf32, #tpu.memory_space<vmem>>, %arg9: memref<32x16xf32, #tpu.memory_space<vmem>>, %arg10: memref<1x16xf32, #tpu.memory_space<vmem>>, %arg11: memref<32x16xf32, #tpu.memory_space<vmem>>, %arg12: memref<1x16xf32, #tpu.memory_space<vmem>>, %arg13: memref<16x32xf32, #tpu.memory_space<vmem>>, %arg14: memref<1x32xf32, #tpu.memory_space<vmem>>, %arg15: memref<32x128xbf16, #tpu.memory_space<vmem>>, %arg16: memref<1x128xf32, #tpu.memory_space<vmem>>, %arg17: memref<64x128xf32, #tpu.memory_space<vmem>>, %arg18: memref<8x16xf32, #tpu.memory_space<vmem>>, %arg19: memref<8x16xf32, #tpu.memory_space<vmem>>, %arg20: memref<8x16xf32, #tpu.memory_space<vmem>>, %arg21: memref<8x32xf32, #tpu.memory_space<vmem>>, %arg22: memref<8x32xf32, #tpu.memory_space<vmem>>, %arg23: memref<64x256xf32, #tpu.memory_space<vmem>>, %arg24: memref<64x32xf32, #tpu.memory_space<vmem>>) attributes {dimension_semantics = [], scalar_prefetch = 0 : i64, scratch_operands = 2 : i64, tpu.core_type = #tpu.core_type<tc>} {
    %c0 = arith.constant 0 : index
    %c0_0 = arith.constant 0 : index
    %0 = vector.load %arg0[%c0, %c0_0] : memref<64x16xbf16, #tpu.memory_space<vmem>>, vector<64x16xbf16>
    %c0_1 = arith.constant 0 : index
    %c0_2 = arith.constant 0 : index
    %1 = vector.load %arg2[%c0_1, %c0_2] : memref<16x256xbf16, #tpu.memory_space<vmem>>, vector<16x256xbf16>
    %cst = arith.constant dense<0.000000e+00> : vector<64x256xf32>
    %2 = tpu.matmul %0, %1, %cst {dimension_numbers = #tpu.dot_dimension_numbers<[1], [0], [0], [1], [0, 0, 1, 1], [], []>} : vector<64x16xbf16>, vector<16x256xbf16>, vector<64x256xf32> -> vector<64x256xf32>
    %c0_3 = arith.constant 0 : index
    %c0_4 = arith.constant 0 : index
    %3 = vector.load %arg3[%c0_3, %c0_4] : memref<1x256xf32, #tpu.memory_space<vmem>>, vector<1x256xf32>
    %4 = vector.broadcast %3 : vector<1x256xf32> to vector<64x256xf32>
    %5 = arith.addf %2, %4 : vector<64x256xf32>
    %c0_5 = arith.constant 0 : index
    %c0_6 = arith.constant 0 : index
    %6 = vector.load %arg23[%c0_5, %c0_6] : memref<64x256xf32, #tpu.memory_space<vmem>>, vector<64x256xf32>
    tpu.vector_store %arg23[%c0_5, %c0_6], %5 {strides = array<i32>} : memref<64x256xf32, #tpu.memory_space<vmem>>, vector<64x256xf32>,
    %c0_7 = arith.constant 0 : index
    %c0_8 = arith.constant 0 : index
    %7 = vector.load %arg1[%c0_7, %c0_8] : memref<64x1xf32, #tpu.memory_space<vmem>>, vector<64x1xf32>
    %cst_9 = arith.constant 0.000000e+00 : f32
    %8 = vector.broadcast %cst_9 : f32 to vector<64x1xf32>
    %9 = arith.cmpf one, %7, %8 : vector<64x1xf32>
    %c0_10 = arith.constant 0 : index
    %c0_11 = arith.constant 0 : index
    %10 = vector.load %arg6[%c0_10, %c0_11] : memref<8x32xf32, #tpu.memory_space<vmem>>, vector<8x32xf32>
    %c0_12 = arith.constant 0 : index
    %c0_13 = arith.constant 0 : index
    %11 = vector.load %arg7[%c0_12, %c0_13] : memref<8x32xf32, #tpu.memory_space<vmem>>, vector<8x32xf32>
    %c0_14 = arith.constant 0 : index
    %c0_15 = arith.constant 0 : index
    %12 = vector.load %arg4[%c0_14, %c0_15] : memref<32x128xf32, #tpu.memory_space<vmem>>, vector<32x128xf32>
    %c0_16 = arith.constant 0 : index
    %c0_17 = arith.constant 0 : index
    %13 = vector.load %arg23[%c0_16, %c0_17] : memref<64x256xf32, #tpu.memory_space<vmem>>, vector<8x128xf32>
    %cst_18 = arith.constant dense<0.000000e+00> : vector<8x128xf32>
    %14 = tpu.matmul %10, %12, %cst_18 {dimension_numbers = #tpu.dot_dimension_numbers<[1], [0], [0], [1], [0, 0, 1, 1], [], []>} : vector<8x32xf32>, vector<32x128xf32>, vector<8x128xf32> -> vector<8x128xf32>
    %15 = arith.addf %13, %14 : vector<8x128xf32>
    %16 = vector.extract_strided_slice %15 {offsets = [0, 0], sizes = [8, 96], strides = [1, 1]} : vector<8x128xf32> to vector<8x96xf32>
    %17 = arith.negf %16 : vector<8x96xf32>
    %18 = math.exp %17 : vector<8x96xf32>
    %cst_19 = arith.constant 1.000000e+00 : f32
    %19 = vector.broadcast %cst_19 : f32 to vector<8x96xf32>
    %20 = arith.addf %19, %18 : vector<8x96xf32>
    %21 = arith.divf %19, %20 : vector<8x96xf32>
    %22 = vector.extract_strided_slice %21 {offsets = [0, 0], sizes = [8, 32], strides = [1, 1]} : vector<8x96xf32> to vector<8x32xf32>
    %23 = vector.extract_strided_slice %21 {offsets = [0, 32], sizes = [8, 32], strides = [1, 1]} : vector<8x96xf32> to vector<8x32xf32>
    %24 = vector.extract_strided_slice %21 {offsets = [0, 64], sizes = [8, 32], strides = [1, 1]} : vector<8x96xf32> to vector<8x32xf32>
    %25 = vector.extract_strided_slice %15 {offsets = [0, 96], sizes = [8, 32], strides = [1, 1]} : vector<8x128xf32> to vector<8x32xf32>
    %26 = math.tanh %25 : vector<8x32xf32>
    %27 = arith.mulf %23, %11 : vector<8x32xf32>
    %28 = arith.mulf %22, %26 : vector<8x32xf32>
    %29 = arith.addf %27, %28 : vector<8x32xf32>
    %30 = math.tanh %29 : vector<8x32xf32>
    %31 = arith.mulf %24, %30 : vector<8x32xf32>
    %32 = vector.extract_strided_slice %9 {offsets = [0, 0], sizes = [8, 1], strides = [1, 1]} : vector<64x1xi1> to vector<8x1xi1>
    %33 = vector.shape_cast %32 : vector<8x1xi1> to vector<8x1xi1>
    %34 = vector.broadcast %33 : vector<8x1xi1> to vector<8x32xi1>
    %35 = arith.select %34, %31, %10 : vector<8x32xi1>, vector<8x32xf32>
    %36 = vector.shape_cast %32 : vector<8x1xi1> to vector<8x1xi1>
    %37 = vector.broadcast %36 : vector<8x1xi1> to vector<8x32xi1>
    %38 = arith.select %37, %29, %11 : vector<8x32xi1>, vector<8x32xf32>
    %c8 = arith.constant 8 : index
    %c0_20 = arith.constant 0 : index
    %39 = vector.load %arg23[%c8, %c0_20] : memref<64x256xf32, #tpu.memory_space<vmem>>, vector<8x128xf32>
    %cst_21 = arith.constant dense<0.000000e+00> : vector<8x128xf32>
    %40 = tpu.matmul %35, %12, %cst_21 {dimension_numbers = #tpu.dot_dimension_numbers<[1], [0], [0], [1], [0, 0, 1, 1], [], []>} : vector<8x32xf32>, vector<32x128xf32>, vector<8x128xf32> -> vector<8x128xf32>
    %41 = arith.addf %39, %40 : vector<8x128xf32>
    %42 = vector.extract_strided_slice %41 {offsets = [0, 0], sizes = [8, 96], strides = [1, 1]} : vector<8x128xf32> to vector<8x96xf32>
    %43 = arith.negf %42 : vector<8x96xf32>
    %44 = math.exp %43 : vector<8x96xf32>
    %cst_22 = arith.constant 1.000000e+00 : f32
    %45 = vector.broadcast %cst_22 : f32 to vector<8x96xf32>
    %46 = arith.addf %45, %44 : vector<8x96xf32>
    %47 = arith.divf %45, %46 : vector<8x96xf32>
    %48 = vector.extract_strided_slice %47 {offsets = [0, 0], sizes = [8, 32], strides = [1, 1]} : vector<8x96xf32> to vector<8x32xf32>
    %49 = vector.extract_strided_slice %47 {offsets = [0, 32], sizes = [8, 32], strides = [1, 1]} : vector<8x96xf32> to vector<8x32xf32>
    %50 = vector.extract_strided_slice %47 {offsets = [0, 64], sizes = [8, 32], strides = [1, 1]} : vector<8x96xf32> to vector<8x32xf32>
    %51 = vector.extract_strided_slice %41 {offsets = [0, 96], sizes = [8, 32], strides = [1, 1]} : vector<8x128xf32> to vector<8x32xf32>
    %52 = math.tanh %51 : vector<8x32xf32>
    %53 = arith.mulf %49, %38 : vector<8x32xf32>
    %54 = arith.mulf %48, %52 : vector<8x32xf32>
    %55 = arith.addf %53, %54 : vector<8x32xf32>
    %56 = math.tanh %55 : vector<8x32xf32>
    %57 = arith.mulf %50, %56 : vector<8x32xf32>
    %58 = vector.extract_strided_slice %9 {offsets = [8, 0], sizes = [8, 1], strides = [1, 1]} : vector<64x1xi1> to vector<8x1xi1>
    %59 = vector.shape_cast %58 : vector<8x1xi1> to vector<8x1xi1>
    %60 = vector.broadcast %59 : vector<8x1xi1> to vector<8x32xi1>
    %61 = arith.select %60, %57, %35 : vector<8x32xi1>, vector<8x32xf32>
    %62 = vector.shape_cast %58 : vector<8x1xi1> to vector<8x1xi1>
    %63 = vector.broadcast %62 : vector<8x1xi1> to vector<8x32xi1>
    %64 = arith.select %63, %55, %38 : vector<8x32xi1>, vector<8x32xf32>
    %c16 = arith.constant 16 : index
    %c0_23 = arith.constant 0 : index
    %65 = vector.load %arg23[%c16, %c0_23] : memref<64x256xf32, #tpu.memory_space<vmem>>, vector<8x128xf32>
    %cst_24 = arith.constant dense<0.000000e+00> : vector<8x128xf32>
    %66 = tpu.matmul %61, %12, %cst_24 {dimension_numbers = #tpu.dot_dimension_numbers<[1], [0], [0], [1], [0, 0, 1, 1], [], []>} : vector<8x32xf32>, vector<32x128xf32>, vector<8x128xf32> -> vector<8x128xf32>
    %67 = arith.addf %65, %66 : vector<8x128xf32>
    %68 = vector.extract_strided_slice %67 {offsets = [0, 0], sizes = [8, 96], strides = [1, 1]} : vector<8x128xf32> to vector<8x96xf32>
    %69 = arith.negf %68 : vector<8x96xf32>
    %70 = math.exp %69 : vector<8x96xf32>
    %cst_25 = arith.constant 1.000000e+00 : f32
    %71 = vector.broadcast %cst_25 : f32 to vector<8x96xf32>
    %72 = arith.addf %71, %70 : vector<8x96xf32>
    %73 = arith.divf %71, %72 : vector<8x96xf32>
    %74 = vector.extract_strided_slice %73 {offsets = [0, 0], sizes = [8, 32], strides = [1, 1]} : vector<8x96xf32> to vector<8x32xf32>
    %75 = vector.extract_strided_slice %73 {offsets = [0, 32], sizes = [8, 32], strides = [1, 1]} : vector<8x96xf32> to vector<8x32xf32>
    %76 = vector.extract_strided_slice %73 {offsets = [0, 64], sizes = [8, 32], strides = [1, 1]} : vector<8x96xf32> to vector<8x32xf32>
    %77 = vector.extract_strided_slice %67 {offsets = [0, 96], sizes = [8, 32], strides = [1, 1]} : vector<8x128xf32> to vector<8x32xf32>
    %78 = math.tanh %77 : vector<8x32xf32>
    %79 = arith.mulf %75, %64 : vector<8x32xf32>
    %80 = arith.mulf %74, %78 : vector<8x32xf32>
    %81 = arith.addf %79, %80 : vector<8x32xf32>
    %82 = math.tanh %81 : vector<8x32xf32>
    %83 = arith.mulf %76, %82 : vector<8x32xf32>
    %84 = vector.extract_strided_slice %9 {offsets = [16, 0], sizes = [8, 1], strides = [1, 1]} : vector<64x1xi1> to vector<8x1xi1>
    %85 = vector.shape_cast %84 : vector<8x1xi1> to vector<8x1xi1>
    %86 = vector.broadcast %85 : vector<8x1xi1> to vector<8x32xi1>
    %87 = arith.select %86, %83, %61 : vector<8x32xi1>, vector<8x32xf32>
    %88 = vector.shape_cast %84 : vector<8x1xi1> to vector<8x1xi1>
    %89 = vector.broadcast %88 : vector<8x1xi1> to vector<8x32xi1>
    %90 = arith.select %89, %81, %64 : vector<8x32xi1>, vector<8x32xf32>
    %c24 = arith.constant 24 : index
    %c0_26 = arith.constant 0 : index
    %91 = vector.load %arg23[%c24, %c0_26] : memref<64x256xf32, #tpu.memory_space<vmem>>, vector<8x128xf32>
    %cst_27 = arith.constant dense<0.000000e+00> : vector<8x128xf32>
    %92 = tpu.matmul %87, %12, %cst_27 {dimension_numbers = #tpu.dot_dimension_numbers<[1], [0], [0], [1], [0, 0, 1, 1], [], []>} : vector<8x32xf32>, vector<32x128xf32>, vector<8x128xf32> -> vector<8x128xf32>
    %93 = arith.addf %91, %92 : vector<8x128xf32>
    %94 = vector.extract_strided_slice %93 {offsets = [0, 0], sizes = [8, 96], strides = [1, 1]} : vector<8x128xf32> to vector<8x96xf32>
    %95 = arith.negf %94 : vector<8x96xf32>
    %96 = math.exp %95 : vector<8x96xf32>
    %cst_28 = arith.constant 1.000000e+00 : f32
    %97 = vector.broadcast %cst_28 : f32 to vector<8x96xf32>
    %98 = arith.addf %97, %96 : vector<8x96xf32>
    %99 = arith.divf %97, %98 : vector<8x96xf32>
    %100 = vector.extract_strided_slice %99 {offsets = [0, 0], sizes = [8, 32], strides = [1, 1]} : vector<8x96xf32> to vector<8x32xf32>
    %101 = vector.extract_strided_slice %99 {offsets = [0, 32], sizes = [8, 32], strides = [1, 1]} : vector<8x96xf32> to vector<8x32xf32>
    %102 = vector.extract_strided_slice %99 {offsets = [0, 64], sizes = [8, 32], strides = [1, 1]} : vector<8x96xf32> to vector<8x32xf32>
    %103 = vector.extract_strided_slice %93 {offsets = [0, 96], sizes = [8, 32], strides = [1, 1]} : vector<8x128xf32> to vector<8x32xf32>
    %104 = math.tanh %103 : vector<8x32xf32>
    %105 = arith.mulf %101, %90 : vector<8x32xf32>
    %106 = arith.mulf %100, %104 : vector<8x32xf32>
    %107 = arith.addf %105, %106 : vector<8x32xf32>
    %108 = math.tanh %107 : vector<8x32xf32>
    %109 = arith.mulf %102, %108 : vector<8x32xf32>
    %110 = vector.extract_strided_slice %9 {offsets = [24, 0], sizes = [8, 1], strides = [1, 1]} : vector<64x1xi1> to vector<8x1xi1>
    %111 = vector.shape_cast %110 : vector<8x1xi1> to vector<8x1xi1>
    %112 = vector.broadcast %111 : vector<8x1xi1> to vector<8x32xi1>
    %113 = arith.select %112, %109, %87 : vector<8x32xi1>, vector<8x32xf32>
    %114 = vector.shape_cast %110 : vector<8x1xi1> to vector<8x1xi1>
    %115 = vector.broadcast %114 : vector<8x1xi1> to vector<8x32xi1>
    %116 = arith.select %115, %107, %90 : vector<8x32xi1>, vector<8x32xf32>
    %c32 = arith.constant 32 : index
    %c0_29 = arith.constant 0 : index
    %117 = vector.load %arg23[%c32, %c0_29] : memref<64x256xf32, #tpu.memory_space<vmem>>, vector<8x128xf32>
    %cst_30 = arith.constant dense<0.000000e+00> : vector<8x128xf32>
    %118 = tpu.matmul %113, %12, %cst_30 {dimension_numbers = #tpu.dot_dimension_numbers<[1], [0], [0], [1], [0, 0, 1, 1], [], []>} : vector<8x32xf32>, vector<32x128xf32>, vector<8x128xf32> -> vector<8x128xf32>
    %119 = arith.addf %117, %118 : vector<8x128xf32>
    %120 = vector.extract_strided_slice %119 {offsets = [0, 0], sizes = [8, 96], strides = [1, 1]} : vector<8x128xf32> to vector<8x96xf32>
    %121 = arith.negf %120 : vector<8x96xf32>
    %122 = math.exp %121 : vector<8x96xf32>
    %cst_31 = arith.constant 1.000000e+00 : f32
    %123 = vector.broadcast %cst_31 : f32 to vector<8x96xf32>
    %124 = arith.addf %123, %122 : vector<8x96xf32>
    %125 = arith.divf %123, %124 : vector<8x96xf32>
    %126 = vector.extract_strided_slice %125 {offsets = [0, 0], sizes = [8, 32], strides = [1, 1]} : vector<8x96xf32> to vector<8x32xf32>
    %127 = vector.extract_strided_slice %125 {offsets = [0, 32], sizes = [8, 32], strides = [1, 1]} : vector<8x96xf32> to vector<8x32xf32>
    %128 = vector.extract_strided_slice %125 {offsets = [0, 64], sizes = [8, 32], strides = [1, 1]} : vector<8x96xf32> to vector<8x32xf32>
    %129 = vector.extract_strided_slice %119 {offsets = [0, 96], sizes = [8, 32], strides = [1, 1]} : vector<8x128xf32> to vector<8x32xf32>
    %130 = math.tanh %129 : vector<8x32xf32>
    %131 = arith.mulf %127, %116 : vector<8x32xf32>
    %132 = arith.mulf %126, %130 : vector<8x32xf32>
    %133 = arith.addf %131, %132 : vector<8x32xf32>
    %134 = math.tanh %133 : vector<8x32xf32>
    %135 = arith.mulf %128, %134 : vector<8x32xf32>
    %136 = vector.extract_strided_slice %9 {offsets = [32, 0], sizes = [8, 1], strides = [1, 1]} : vector<64x1xi1> to vector<8x1xi1>
    %137 = vector.shape_cast %136 : vector<8x1xi1> to vector<8x1xi1>
    %138 = vector.broadcast %137 : vector<8x1xi1> to vector<8x32xi1>
    %139 = arith.select %138, %135, %113 : vector<8x32xi1>, vector<8x32xf32>
    %140 = vector.shape_cast %136 : vector<8x1xi1> to vector<8x1xi1>
    %141 = vector.broadcast %140 : vector<8x1xi1> to vector<8x32xi1>
    %142 = arith.select %141, %133, %116 : vector<8x32xi1>, vector<8x32xf32>
    %c40 = arith.constant 40 : index
    %c0_32 = arith.constant 0 : index
    %143 = vector.load %arg23[%c40, %c0_32] : memref<64x256xf32, #tpu.memory_space<vmem>>, vector<8x128xf32>
    %cst_33 = arith.constant dense<0.000000e+00> : vector<8x128xf32>
    %144 = tpu.matmul %139, %12, %cst_33 {dimension_numbers = #tpu.dot_dimension_numbers<[1], [0], [0], [1], [0, 0, 1, 1], [], []>} : vector<8x32xf32>, vector<32x128xf32>, vector<8x128xf32> -> vector<8x128xf32>
    %145 = arith.addf %143, %144 : vector<8x128xf32>
    %146 = vector.extract_strided_slice %145 {offsets = [0, 0], sizes = [8, 96], strides = [1, 1]} : vector<8x128xf32> to vector<8x96xf32>
    %147 = arith.negf %146 : vector<8x96xf32>
    %148 = math.exp %147 : vector<8x96xf32>
    %cst_34 = arith.constant 1.000000e+00 : f32
    %149 = vector.broadcast %cst_34 : f32 to vector<8x96xf32>
    %150 = arith.addf %149, %148 : vector<8x96xf32>
    %151 = arith.divf %149, %150 : vector<8x96xf32>
    %152 = vector.extract_strided_slice %151 {offsets = [0, 0], sizes = [8, 32], strides = [1, 1]} : vector<8x96xf32> to vector<8x32xf32>
    %153 = vector.extract_strided_slice %151 {offsets = [0, 32], sizes = [8, 32], strides = [1, 1]} : vector<8x96xf32> to vector<8x32xf32>
    %154 = vector.extract_strided_slice %151 {offsets = [0, 64], sizes = [8, 32], strides = [1, 1]} : vector<8x96xf32> to vector<8x32xf32>
    %155 = vector.extract_strided_slice %145 {offsets = [0, 96], sizes = [8, 32], strides = [1, 1]} : vector<8x128xf32> to vector<8x32xf32>
    %156 = math.tanh %155 : vector<8x32xf32>
    %157 = arith.mulf %153, %142 : vector<8x32xf32>
    %158 = arith.mulf %152, %156 : vector<8x32xf32>
    %159 = arith.addf %157, %158 : vector<8x32xf32>
    %160 = math.tanh %159 : vector<8x32xf32>
    %161 = arith.mulf %154, %160 : vector<8x32xf32>
    %162 = vector.extract_strided_slice %9 {offsets = [40, 0], sizes = [8, 1], strides = [1, 1]} : vector<64x1xi1> to vector<8x1xi1>
    %163 = vector.shape_cast %162 : vector<8x1xi1> to vector<8x1xi1>
    %164 = vector.broadcast %163 : vector<8x1xi1> to vector<8x32xi1>
    %165 = arith.select %164, %161, %139 : vector<8x32xi1>, vector<8x32xf32>
    %166 = vector.shape_cast %162 : vector<8x1xi1> to vector<8x1xi1>
    %167 = vector.broadcast %166 : vector<8x1xi1> to vector<8x32xi1>
    %168 = arith.select %167, %159, %142 : vector<8x32xi1>, vector<8x32xf32>
    %c48 = arith.constant 48 : index
    %c0_35 = arith.constant 0 : index
    %169 = vector.load %arg23[%c48, %c0_35] : memref<64x256xf32, #tpu.memory_space<vmem>>, vector<8x128xf32>
    %cst_36 = arith.constant dense<0.000000e+00> : vector<8x128xf32>
    %170 = tpu.matmul %165, %12, %cst_36 {dimension_numbers = #tpu.dot_dimension_numbers<[1], [0], [0], [1], [0, 0, 1, 1], [], []>} : vector<8x32xf32>, vector<32x128xf32>, vector<8x128xf32> -> vector<8x128xf32>
    %171 = arith.addf %169, %170 : vector<8x128xf32>
    %172 = vector.extract_strided_slice %171 {offsets = [0, 0], sizes = [8, 96], strides = [1, 1]} : vector<8x128xf32> to vector<8x96xf32>
    %173 = arith.negf %172 : vector<8x96xf32>
    %174 = math.exp %173 : vector<8x96xf32>
    %cst_37 = arith.constant 1.000000e+00 : f32
    %175 = vector.broadcast %cst_37 : f32 to vector<8x96xf32>
    %176 = arith.addf %175, %174 : vector<8x96xf32>
    %177 = arith.divf %175, %176 : vector<8x96xf32>
    %178 = vector.extract_strided_slice %177 {offsets = [0, 0], sizes = [8, 32], strides = [1, 1]} : vector<8x96xf32> to vector<8x32xf32>
    %179 = vector.extract_strided_slice %177 {offsets = [0, 32], sizes = [8, 32], strides = [1, 1]} : vector<8x96xf32> to vector<8x32xf32>
    %180 = vector.extract_strided_slice %177 {offsets = [0, 64], sizes = [8, 32], strides = [1, 1]} : vector<8x96xf32> to vector<8x32xf32>
    %181 = vector.extract_strided_slice %171 {offsets = [0, 96], sizes = [8, 32], strides = [1, 1]} : vector<8x128xf32> to vector<8x32xf32>
    %182 = math.tanh %181 : vector<8x32xf32>
    %183 = arith.mulf %179, %168 : vector<8x32xf32>
    %184 = arith.mulf %178, %182 : vector<8x32xf32>
    %185 = arith.addf %183, %184 : vector<8x32xf32>
    %186 = math.tanh %185 : vector<8x32xf32>
    %187 = arith.mulf %180, %186 : vector<8x32xf32>
    %188 = vector.extract_strided_slice %9 {offsets = [48, 0], sizes = [8, 1], strides = [1, 1]} : vector<64x1xi1> to vector<8x1xi1>
    %189 = vector.shape_cast %188 : vector<8x1xi1> to vector<8x1xi1>
    %190 = vector.broadcast %189 : vector<8x1xi1> to vector<8x32xi1>
    %191 = arith.select %190, %187, %165 : vector<8x32xi1>, vector<8x32xf32>
    %192 = vector.shape_cast %188 : vector<8x1xi1> to vector<8x1xi1>
    %193 = vector.broadcast %192 : vector<8x1xi1> to vector<8x32xi1>
    %194 = arith.select %193, %185, %168 : vector<8x32xi1>, vector<8x32xf32>
    %c56 = arith.constant 56 : index
    %c0_38 = arith.constant 0 : index
    %195 = vector.load %arg23[%c56, %c0_38] : memref<64x256xf32, #tpu.memory_space<vmem>>, vector<8x128xf32>
    %cst_39 = arith.constant dense<0.000000e+00> : vector<8x128xf32>
    %196 = tpu.matmul %191, %12, %cst_39 {dimension_numbers = #tpu.dot_dimension_numbers<[1], [0], [0], [1], [0, 0, 1, 1], [], []>} : vector<8x32xf32>, vector<32x128xf32>, vector<8x128xf32> -> vector<8x128xf32>
    %197 = arith.addf %195, %196 : vector<8x128xf32>
    %198 = vector.extract_strided_slice %197 {offsets = [0, 0], sizes = [8, 96], strides = [1, 1]} : vector<8x128xf32> to vector<8x96xf32>
    %199 = arith.negf %198 : vector<8x96xf32>
    %200 = math.exp %199 : vector<8x96xf32>
    %cst_40 = arith.constant 1.000000e+00 : f32
    %201 = vector.broadcast %cst_40 : f32 to vector<8x96xf32>
    %202 = arith.addf %201, %200 : vector<8x96xf32>
    %203 = arith.divf %201, %202 : vector<8x96xf32>
    %204 = vector.extract_strided_slice %203 {offsets = [0, 0], sizes = [8, 32], strides = [1, 1]} : vector<8x96xf32> to vector<8x32xf32>
    %205 = vector.extract_strided_slice %203 {offsets = [0, 32], sizes = [8, 32], strides = [1, 1]} : vector<8x96xf32> to vector<8x32xf32>
    %206 = vector.extract_strided_slice %203 {offsets = [0, 64], sizes = [8, 32], strides = [1, 1]} : vector<8x96xf32> to vector<8x32xf32>
    %207 = vector.extract_strided_slice %197 {offsets = [0, 96], sizes = [8, 32], strides = [1, 1]} : vector<8x128xf32> to vector<8x32xf32>
    %208 = math.tanh %207 : vector<8x32xf32>
    %209 = arith.mulf %205, %194 : vector<8x32xf32>
    %210 = arith.mulf %204, %208 : vector<8x32xf32>
    %211 = arith.addf %209, %210 : vector<8x32xf32>
    %212 = math.tanh %211 : vector<8x32xf32>
    %213 = arith.mulf %206, %212 : vector<8x32xf32>
    %214 = vector.extract_strided_slice %9 {offsets = [56, 0], sizes = [8, 1], strides = [1, 1]} : vector<64x1xi1> to vector<8x1xi1>
    %215 = vector.shape_cast %214 : vector<8x1xi1> to vector<8x1xi1>
    %216 = vector.broadcast %215 : vector<8x1xi1> to vector<8x32xi1>
    %217 = arith.select %216, %213, %191 : vector<8x32xi1>, vector<8x32xf32>
    %218 = vector.shape_cast %214 : vector<8x1xi1> to vector<8x1xi1>
    %219 = vector.broadcast %218 : vector<8x1xi1> to vector<8x32xi1>
    %220 = arith.select %219, %211, %194 : vector<8x32xi1>, vector<8x32xf32>
    %c0_41 = arith.constant 0 : index
    %c0_42 = arith.constant 0 : index
    %221 = vector.load %arg21[%c0_41, %c0_42] : memref<8x32xf32, #tpu.memory_space<vmem>>, vector<8x32xf32>
    tpu.vector_store %arg21[%c0_41, %c0_42], %217 {strides = array<i32>} : memref<8x32xf32, #tpu.memory_space<vmem>>, vector<8x32xf32>,
    %c0_43 = arith.constant 0 : index
    %c0_44 = arith.constant 0 : index
    %222 = vector.load %arg22[%c0_43, %c0_44] : memref<8x32xf32, #tpu.memory_space<vmem>>, vector<8x32xf32>
    tpu.vector_store %arg22[%c0_43, %c0_44], %220 {strides = array<i32>} : memref<8x32xf32, #tpu.memory_space<vmem>>, vector<8x32xf32>,
    %c0_45 = arith.constant 0 : index
    %c0_46 = arith.constant 0 : index
    %223 = vector.load %arg9[%c0_45, %c0_46] : memref<32x16xf32, #tpu.memory_space<vmem>>, vector<32x16xf32>
    %cst_47 = arith.constant dense<0.000000e+00> : vector<8x16xf32>
    %224 = tpu.matmul %217, %223, %cst_47 {dimension_numbers = #tpu.dot_dimension_numbers<[1], [0], [0], [1], [0, 0, 1, 1], [], []>} : vector<8x32xf32>, vector<32x16xf32>, vector<8x16xf32> -> vector<8x16xf32>
    %c0_48 = arith.constant 0 : index
    %c0_49 = arith.constant 0 : index
    %225 = vector.load %arg10[%c0_48, %c0_49] : memref<1x16xf32, #tpu.memory_space<vmem>>, vector<1x16xf32>
    %226 = vector.broadcast %225 : vector<1x16xf32> to vector<8x16xf32>
    %227 = arith.addf %224, %226 : vector<8x16xf32>
    %c0_50 = arith.constant 0 : index
    %c0_51 = arith.constant 0 : index
    %228 = vector.load %arg11[%c0_50, %c0_51] : memref<32x16xf32, #tpu.memory_space<vmem>>, vector<32x16xf32>
    %cst_52 = arith.constant dense<0.000000e+00> : vector<8x16xf32>
    %229 = tpu.matmul %217, %228, %cst_52 {dimension_numbers = #tpu.dot_dimension_numbers<[1], [0], [0], [1], [0, 0, 1, 1], [], []>} : vector<8x32xf32>, vector<32x16xf32>, vector<8x16xf32> -> vector<8x16xf32>
    %c0_53 = arith.constant 0 : index
    %c0_54 = arith.constant 0 : index
    %230 = vector.load %arg12[%c0_53, %c0_54] : memref<1x16xf32, #tpu.memory_space<vmem>>, vector<1x16xf32>
    %231 = vector.broadcast %230 : vector<1x16xf32> to vector<8x16xf32>
    %232 = arith.addf %229, %231 : vector<8x16xf32>
    %cst_55 = arith.constant 5.000000e-01 : f32
    %233 = vector.broadcast %cst_55 : f32 to vector<8x16xf32>
    %234 = arith.mulf %233, %232 : vector<8x16xf32>
    %235 = math.exp %234 : vector<8x16xf32>
    %c0_56 = arith.constant 0 : index
    %c0_57 = arith.constant 0 : index
    %236 = vector.load %arg8[%c0_56, %c0_57] : memref<8x16xf32, #tpu.memory_space<vmem>>, vector<8x16xf32>
    %237 = arith.mulf %236, %235 : vector<8x16xf32>
    %238 = arith.addf %237, %227 : vector<8x16xf32>
    %c0_58 = arith.constant 0 : index
    %c0_59 = arith.constant 0 : index
    %239 = vector.load %arg13[%c0_58, %c0_59] : memref<16x32xf32, #tpu.memory_space<vmem>>, vector<16x32xf32>
    %cst_60 = arith.constant dense<0.000000e+00> : vector<8x32xf32>
    %240 = tpu.matmul %238, %239, %cst_60 {dimension_numbers = #tpu.dot_dimension_numbers<[1], [0], [0], [1], [0, 0, 1, 1], [], []>} : vector<8x16xf32>, vector<16x32xf32>, vector<8x32xf32> -> vector<8x32xf32>
    %c0_61 = arith.constant 0 : index
    %c0_62 = arith.constant 0 : index
    %241 = vector.load %arg14[%c0_61, %c0_62] : memref<1x32xf32, #tpu.memory_space<vmem>>, vector<1x32xf32>
    %242 = vector.broadcast %241 : vector<1x32xf32> to vector<8x32xf32>
    %243 = arith.addf %240, %242 : vector<8x32xf32>
    %c0_63 = arith.constant 0 : index
    %c0_64 = arith.constant 0 : index
    %244 = vector.load %arg18[%c0_63, %c0_64] : memref<8x16xf32, #tpu.memory_space<vmem>>, vector<8x16xf32>
    tpu.vector_store %arg18[%c0_63, %c0_64], %227 {strides = array<i32>} : memref<8x16xf32, #tpu.memory_space<vmem>>, vector<8x16xf32>,
    %c0_65 = arith.constant 0 : index
    %c0_66 = arith.constant 0 : index
    %245 = vector.load %arg19[%c0_65, %c0_66] : memref<8x16xf32, #tpu.memory_space<vmem>>, vector<8x16xf32>
    tpu.vector_store %arg19[%c0_65, %c0_66], %232 {strides = array<i32>} : memref<8x16xf32, #tpu.memory_space<vmem>>, vector<8x16xf32>,
    %c0_67 = arith.constant 0 : index
    %c0_68 = arith.constant 0 : index
    %246 = vector.load %arg20[%c0_67, %c0_68] : memref<8x16xf32, #tpu.memory_space<vmem>>, vector<8x16xf32>
    tpu.vector_store %arg20[%c0_67, %c0_68], %238 {strides = array<i32>} : memref<8x16xf32, #tpu.memory_space<vmem>>, vector<8x16xf32>,
    %c0_69 = arith.constant 0 : index
    %c0_70 = arith.constant 0 : index
    %247 = vector.load %arg5[%c0_69, %c0_70] : memref<32x128xf32, #tpu.memory_space<vmem>>, vector<32x128xf32>
    %c0_71 = arith.constant 0 : index
    %c128 = arith.constant 128 : index
    %248 = vector.load %arg23[%c0_71, %c128] : memref<64x256xf32, #tpu.memory_space<vmem>>, vector<8x128xf32>
    %cst_72 = arith.constant dense<0.000000e+00> : vector<8x128xf32>
    %249 = tpu.matmul %243, %247, %cst_72 {dimension_numbers = #tpu.dot_dimension_numbers<[1], [0], [0], [1], [0, 0, 1, 1], [], []>} : vector<8x32xf32>, vector<32x128xf32>, vector<8x128xf32> -> vector<8x128xf32>
    %250 = arith.addf %248, %249 : vector<8x128xf32>
    %251 = vector.extract_strided_slice %250 {offsets = [0, 0], sizes = [8, 96], strides = [1, 1]} : vector<8x128xf32> to vector<8x96xf32>
    %252 = arith.negf %251 : vector<8x96xf32>
    %253 = math.exp %252 : vector<8x96xf32>
    %cst_73 = arith.constant 1.000000e+00 : f32
    %254 = vector.broadcast %cst_73 : f32 to vector<8x96xf32>
    %255 = arith.addf %254, %253 : vector<8x96xf32>
    %256 = arith.divf %254, %255 : vector<8x96xf32>
    %257 = vector.extract_strided_slice %256 {offsets = [0, 0], sizes = [8, 32], strides = [1, 1]} : vector<8x96xf32> to vector<8x32xf32>
    %258 = vector.extract_strided_slice %256 {offsets = [0, 32], sizes = [8, 32], strides = [1, 1]} : vector<8x96xf32> to vector<8x32xf32>
    %259 = vector.extract_strided_slice %256 {offsets = [0, 64], sizes = [8, 32], strides = [1, 1]} : vector<8x96xf32> to vector<8x32xf32>
    %260 = vector.extract_strided_slice %250 {offsets = [0, 96], sizes = [8, 32], strides = [1, 1]} : vector<8x128xf32> to vector<8x32xf32>
    %261 = math.tanh %260 : vector<8x32xf32>
    %262 = arith.mulf %258, %243 : vector<8x32xf32>
    %263 = arith.mulf %257, %261 : vector<8x32xf32>
    %264 = arith.addf %262, %263 : vector<8x32xf32>
    %265 = math.tanh %264 : vector<8x32xf32>
    %266 = arith.mulf %259, %265 : vector<8x32xf32>
    %267 = vector.extract_strided_slice %9 {offsets = [0, 0], sizes = [8, 1], strides = [1, 1]} : vector<64x1xi1> to vector<8x1xi1>
    %268 = vector.shape_cast %267 : vector<8x1xi1> to vector<8x1xi1>
    %269 = vector.broadcast %268 : vector<8x1xi1> to vector<8x32xi1>
    %270 = arith.select %269, %266, %243 : vector<8x32xi1>, vector<8x32xf32>
    %271 = vector.shape_cast %267 : vector<8x1xi1> to vector<8x1xi1>
    %272 = vector.broadcast %271 : vector<8x1xi1> to vector<8x32xi1>
    %273 = arith.select %272, %264, %243 : vector<8x32xi1>, vector<8x32xf32>
    %cst_74 = arith.constant 0.000000e+00 : f32
    %274 = vector.shape_cast %267 : vector<8x1xi1> to vector<8x1xi1>
    %275 = vector.broadcast %274 : vector<8x1xi1> to vector<8x32xi1>
    %276 = vector.broadcast %cst_74 : f32 to vector<8x32xf32>
    %277 = arith.select %275, %266, %276 : vector<8x32xi1>, vector<8x32xf32>
    %c0_75 = arith.constant 0 : index
    %c0_76 = arith.constant 0 : index
    %278 = vector.load %arg24[%c0_75, %c0_76] : memref<64x32xf32, #tpu.memory_space<vmem>>, vector<8x32xf32>
    tpu.vector_store %arg24[%c0_75, %c0_76], %277 {strides = array<i32>} : memref<64x32xf32, #tpu.memory_space<vmem>>, vector<8x32xf32>,
    %c8_77 = arith.constant 8 : index
    %c128_78 = arith.constant 128 : index
    %279 = vector.load %arg23[%c8_77, %c128_78] : memref<64x256xf32, #tpu.memory_space<vmem>>, vector<8x128xf32>
    %cst_79 = arith.constant dense<0.000000e+00> : vector<8x128xf32>
    %280 = tpu.matmul %270, %247, %cst_79 {dimension_numbers = #tpu.dot_dimension_numbers<[1], [0], [0], [1], [0, 0, 1, 1], [], []>} : vector<8x32xf32>, vector<32x128xf32>, vector<8x128xf32> -> vector<8x128xf32>
    %281 = arith.addf %279, %280 : vector<8x128xf32>
    %282 = vector.extract_strided_slice %281 {offsets = [0, 0], sizes = [8, 96], strides = [1, 1]} : vector<8x128xf32> to vector<8x96xf32>
    %283 = arith.negf %282 : vector<8x96xf32>
    %284 = math.exp %283 : vector<8x96xf32>
    %cst_80 = arith.constant 1.000000e+00 : f32
    %285 = vector.broadcast %cst_80 : f32 to vector<8x96xf32>
    %286 = arith.addf %285, %284 : vector<8x96xf32>
    %287 = arith.divf %285, %286 : vector<8x96xf32>
    %288 = vector.extract_strided_slice %287 {offsets = [0, 0], sizes = [8, 32], strides = [1, 1]} : vector<8x96xf32> to vector<8x32xf32>
    %289 = vector.extract_strided_slice %287 {offsets = [0, 32], sizes = [8, 32], strides = [1, 1]} : vector<8x96xf32> to vector<8x32xf32>
    %290 = vector.extract_strided_slice %287 {offsets = [0, 64], sizes = [8, 32], strides = [1, 1]} : vector<8x96xf32> to vector<8x32xf32>
    %291 = vector.extract_strided_slice %281 {offsets = [0, 96], sizes = [8, 32], strides = [1, 1]} : vector<8x128xf32> to vector<8x32xf32>
    %292 = math.tanh %291 : vector<8x32xf32>
    %293 = arith.mulf %289, %273 : vector<8x32xf32>
    %294 = arith.mulf %288, %292 : vector<8x32xf32>
    %295 = arith.addf %293, %294 : vector<8x32xf32>
    %296 = math.tanh %295 : vector<8x32xf32>
    %297 = arith.mulf %290, %296 : vector<8x32xf32>
    %298 = vector.extract_strided_slice %9 {offsets = [8, 0], sizes = [8, 1], strides = [1, 1]} : vector<64x1xi1> to vector<8x1xi1>
    %299 = vector.shape_cast %298 : vector<8x1xi1> to vector<8x1xi1>
    %300 = vector.broadcast %299 : vector<8x1xi1> to vector<8x32xi1>
    %301 = arith.select %300, %297, %270 : vector<8x32xi1>, vector<8x32xf32>
    %302 = vector.shape_cast %298 : vector<8x1xi1> to vector<8x1xi1>
    %303 = vector.broadcast %302 : vector<8x1xi1> to vector<8x32xi1>
    %304 = arith.select %303, %295, %273 : vector<8x32xi1>, vector<8x32xf32>
    %cst_81 = arith.constant 0.000000e+00 : f32
    %305 = vector.shape_cast %298 : vector<8x1xi1> to vector<8x1xi1>
    %306 = vector.broadcast %305 : vector<8x1xi1> to vector<8x32xi1>
    %307 = vector.broadcast %cst_81 : f32 to vector<8x32xf32>
    %308 = arith.select %306, %297, %307 : vector<8x32xi1>, vector<8x32xf32>
    %c8_82 = arith.constant 8 : index
    %c0_83 = arith.constant 0 : index
    %309 = vector.load %arg24[%c8_82, %c0_83] : memref<64x32xf32, #tpu.memory_space<vmem>>, vector<8x32xf32>
    tpu.vector_store %arg24[%c8_82, %c0_83], %308 {strides = array<i32>} : memref<64x32xf32, #tpu.memory_space<vmem>>, vector<8x32xf32>,
    %c16_84 = arith.constant 16 : index
    %c128_85 = arith.constant 128 : index
    %310 = vector.load %arg23[%c16_84, %c128_85] : memref<64x256xf32, #tpu.memory_space<vmem>>, vector<8x128xf32>
    %cst_86 = arith.constant dense<0.000000e+00> : vector<8x128xf32>
    %311 = tpu.matmul %301, %247, %cst_86 {dimension_numbers = #tpu.dot_dimension_numbers<[1], [0], [0], [1], [0, 0, 1, 1], [], []>} : vector<8x32xf32>, vector<32x128xf32>, vector<8x128xf32> -> vector<8x128xf32>
    %312 = arith.addf %310, %311 : vector<8x128xf32>
    %313 = vector.extract_strided_slice %312 {offsets = [0, 0], sizes = [8, 96], strides = [1, 1]} : vector<8x128xf32> to vector<8x96xf32>
    %314 = arith.negf %313 : vector<8x96xf32>
    %315 = math.exp %314 : vector<8x96xf32>
    %cst_87 = arith.constant 1.000000e+00 : f32
    %316 = vector.broadcast %cst_87 : f32 to vector<8x96xf32>
    %317 = arith.addf %316, %315 : vector<8x96xf32>
    %318 = arith.divf %316, %317 : vector<8x96xf32>
    %319 = vector.extract_strided_slice %318 {offsets = [0, 0], sizes = [8, 32], strides = [1, 1]} : vector<8x96xf32> to vector<8x32xf32>
    %320 = vector.extract_strided_slice %318 {offsets = [0, 32], sizes = [8, 32], strides = [1, 1]} : vector<8x96xf32> to vector<8x32xf32>
    %321 = vector.extract_strided_slice %318 {offsets = [0, 64], sizes = [8, 32], strides = [1, 1]} : vector<8x96xf32> to vector<8x32xf32>
    %322 = vector.extract_strided_slice %312 {offsets = [0, 96], sizes = [8, 32], strides = [1, 1]} : vector<8x128xf32> to vector<8x32xf32>
    %323 = math.tanh %322 : vector<8x32xf32>
    %324 = arith.mulf %320, %304 : vector<8x32xf32>
    %325 = arith.mulf %319, %323 : vector<8x32xf32>
    %326 = arith.addf %324, %325 : vector<8x32xf32>
    %327 = math.tanh %326 : vector<8x32xf32>
    %328 = arith.mulf %321, %327 : vector<8x32xf32>
    %329 = vector.extract_strided_slice %9 {offsets = [16, 0], sizes = [8, 1], strides = [1, 1]} : vector<64x1xi1> to vector<8x1xi1>
    %330 = vector.shape_cast %329 : vector<8x1xi1> to vector<8x1xi1>
    %331 = vector.broadcast %330 : vector<8x1xi1> to vector<8x32xi1>
    %332 = arith.select %331, %328, %301 : vector<8x32xi1>, vector<8x32xf32>
    %333 = vector.shape_cast %329 : vector<8x1xi1> to vector<8x1xi1>
    %334 = vector.broadcast %333 : vector<8x1xi1> to vector<8x32xi1>
    %335 = arith.select %334, %326, %304 : vector<8x32xi1>, vector<8x32xf32>
    %cst_88 = arith.constant 0.000000e+00 : f32
    %336 = vector.shape_cast %329 : vector<8x1xi1> to vector<8x1xi1>
    %337 = vector.broadcast %336 : vector<8x1xi1> to vector<8x32xi1>
    %338 = vector.broadcast %cst_88 : f32 to vector<8x32xf32>
    %339 = arith.select %337, %328, %338 : vector<8x32xi1>, vector<8x32xf32>
    %c16_89 = arith.constant 16 : index
    %c0_90 = arith.constant 0 : index
    %340 = vector.load %arg24[%c16_89, %c0_90] : memref<64x32xf32, #tpu.memory_space<vmem>>, vector<8x32xf32>
    tpu.vector_store %arg24[%c16_89, %c0_90], %339 {strides = array<i32>} : memref<64x32xf32, #tpu.memory_space<vmem>>, vector<8x32xf32>,
    %c24_91 = arith.constant 24 : index
    %c128_92 = arith.constant 128 : index
    %341 = vector.load %arg23[%c24_91, %c128_92] : memref<64x256xf32, #tpu.memory_space<vmem>>, vector<8x128xf32>
    %cst_93 = arith.constant dense<0.000000e+00> : vector<8x128xf32>
    %342 = tpu.matmul %332, %247, %cst_93 {dimension_numbers = #tpu.dot_dimension_numbers<[1], [0], [0], [1], [0, 0, 1, 1], [], []>} : vector<8x32xf32>, vector<32x128xf32>, vector<8x128xf32> -> vector<8x128xf32>
    %343 = arith.addf %341, %342 : vector<8x128xf32>
    %344 = vector.extract_strided_slice %343 {offsets = [0, 0], sizes = [8, 96], strides = [1, 1]} : vector<8x128xf32> to vector<8x96xf32>
    %345 = arith.negf %344 : vector<8x96xf32>
    %346 = math.exp %345 : vector<8x96xf32>
    %cst_94 = arith.constant 1.000000e+00 : f32
    %347 = vector.broadcast %cst_94 : f32 to vector<8x96xf32>
    %348 = arith.addf %347, %346 : vector<8x96xf32>
    %349 = arith.divf %347, %348 : vector<8x96xf32>
    %350 = vector.extract_strided_slice %349 {offsets = [0, 0], sizes = [8, 32], strides = [1, 1]} : vector<8x96xf32> to vector<8x32xf32>
    %351 = vector.extract_strided_slice %349 {offsets = [0, 32], sizes = [8, 32], strides = [1, 1]} : vector<8x96xf32> to vector<8x32xf32>
    %352 = vector.extract_strided_slice %349 {offsets = [0, 64], sizes = [8, 32], strides = [1, 1]} : vector<8x96xf32> to vector<8x32xf32>
    %353 = vector.extract_strided_slice %343 {offsets = [0, 96], sizes = [8, 32], strides = [1, 1]} : vector<8x128xf32> to vector<8x32xf32>
    %354 = math.tanh %353 : vector<8x32xf32>
    %355 = arith.mulf %351, %335 : vector<8x32xf32>
    %356 = arith.mulf %350, %354 : vector<8x32xf32>
    %357 = arith.addf %355, %356 : vector<8x32xf32>
    %358 = math.tanh %357 : vector<8x32xf32>
    %359 = arith.mulf %352, %358 : vector<8x32xf32>
    %360 = vector.extract_strided_slice %9 {offsets = [24, 0], sizes = [8, 1], strides = [1, 1]} : vector<64x1xi1> to vector<8x1xi1>
    %361 = vector.shape_cast %360 : vector<8x1xi1> to vector<8x1xi1>
    %362 = vector.broadcast %361 : vector<8x1xi1> to vector<8x32xi1>
    %363 = arith.select %362, %359, %332 : vector<8x32xi1>, vector<8x32xf32>
    %364 = vector.shape_cast %360 : vector<8x1xi1> to vector<8x1xi1>
    %365 = vector.broadcast %364 : vector<8x1xi1> to vector<8x32xi1>
    %366 = arith.select %365, %357, %335 : vector<8x32xi1>, vector<8x32xf32>
    %cst_95 = arith.constant 0.000000e+00 : f32
    %367 = vector.shape_cast %360 : vector<8x1xi1> to vector<8x1xi1>
    %368 = vector.broadcast %367 : vector<8x1xi1> to vector<8x32xi1>
    %369 = vector.broadcast %cst_95 : f32 to vector<8x32xf32>
    %370 = arith.select %368, %359, %369 : vector<8x32xi1>, vector<8x32xf32>
    %c24_96 = arith.constant 24 : index
    %c0_97 = arith.constant 0 : index
    %371 = vector.load %arg24[%c24_96, %c0_97] : memref<64x32xf32, #tpu.memory_space<vmem>>, vector<8x32xf32>
    tpu.vector_store %arg24[%c24_96, %c0_97], %370 {strides = array<i32>} : memref<64x32xf32, #tpu.memory_space<vmem>>, vector<8x32xf32>,
    %c32_98 = arith.constant 32 : index
    %c128_99 = arith.constant 128 : index
    %372 = vector.load %arg23[%c32_98, %c128_99] : memref<64x256xf32, #tpu.memory_space<vmem>>, vector<8x128xf32>
    %cst_100 = arith.constant dense<0.000000e+00> : vector<8x128xf32>
    %373 = tpu.matmul %363, %247, %cst_100 {dimension_numbers = #tpu.dot_dimension_numbers<[1], [0], [0], [1], [0, 0, 1, 1], [], []>} : vector<8x32xf32>, vector<32x128xf32>, vector<8x128xf32> -> vector<8x128xf32>
    %374 = arith.addf %372, %373 : vector<8x128xf32>
    %375 = vector.extract_strided_slice %374 {offsets = [0, 0], sizes = [8, 96], strides = [1, 1]} : vector<8x128xf32> to vector<8x96xf32>
    %376 = arith.negf %375 : vector<8x96xf32>
    %377 = math.exp %376 : vector<8x96xf32>
    %cst_101 = arith.constant 1.000000e+00 : f32
    %378 = vector.broadcast %cst_101 : f32 to vector<8x96xf32>
    %379 = arith.addf %378, %377 : vector<8x96xf32>
    %380 = arith.divf %378, %379 : vector<8x96xf32>
    %381 = vector.extract_strided_slice %380 {offsets = [0, 0], sizes = [8, 32], strides = [1, 1]} : vector<8x96xf32> to vector<8x32xf32>
    %382 = vector.extract_strided_slice %380 {offsets = [0, 32], sizes = [8, 32], strides = [1, 1]} : vector<8x96xf32> to vector<8x32xf32>
    %383 = vector.extract_strided_slice %380 {offsets = [0, 64], sizes = [8, 32], strides = [1, 1]} : vector<8x96xf32> to vector<8x32xf32>
    %384 = vector.extract_strided_slice %374 {offsets = [0, 96], sizes = [8, 32], strides = [1, 1]} : vector<8x128xf32> to vector<8x32xf32>
    %385 = math.tanh %384 : vector<8x32xf32>
    %386 = arith.mulf %382, %366 : vector<8x32xf32>
    %387 = arith.mulf %381, %385 : vector<8x32xf32>
    %388 = arith.addf %386, %387 : vector<8x32xf32>
    %389 = math.tanh %388 : vector<8x32xf32>
    %390 = arith.mulf %383, %389 : vector<8x32xf32>
    %391 = vector.extract_strided_slice %9 {offsets = [32, 0], sizes = [8, 1], strides = [1, 1]} : vector<64x1xi1> to vector<8x1xi1>
    %392 = vector.shape_cast %391 : vector<8x1xi1> to vector<8x1xi1>
    %393 = vector.broadcast %392 : vector<8x1xi1> to vector<8x32xi1>
    %394 = arith.select %393, %390, %363 : vector<8x32xi1>, vector<8x32xf32>
    %395 = vector.shape_cast %391 : vector<8x1xi1> to vector<8x1xi1>
    %396 = vector.broadcast %395 : vector<8x1xi1> to vector<8x32xi1>
    %397 = arith.select %396, %388, %366 : vector<8x32xi1>, vector<8x32xf32>
    %cst_102 = arith.constant 0.000000e+00 : f32
    %398 = vector.shape_cast %391 : vector<8x1xi1> to vector<8x1xi1>
    %399 = vector.broadcast %398 : vector<8x1xi1> to vector<8x32xi1>
    %400 = vector.broadcast %cst_102 : f32 to vector<8x32xf32>
    %401 = arith.select %399, %390, %400 : vector<8x32xi1>, vector<8x32xf32>
    %c32_103 = arith.constant 32 : index
    %c0_104 = arith.constant 0 : index
    %402 = vector.load %arg24[%c32_103, %c0_104] : memref<64x32xf32, #tpu.memory_space<vmem>>, vector<8x32xf32>
    tpu.vector_store %arg24[%c32_103, %c0_104], %401 {strides = array<i32>} : memref<64x32xf32, #tpu.memory_space<vmem>>, vector<8x32xf32>,
    %c40_105 = arith.constant 40 : index
    %c128_106 = arith.constant 128 : index
    %403 = vector.load %arg23[%c40_105, %c128_106] : memref<64x256xf32, #tpu.memory_space<vmem>>, vector<8x128xf32>
    %cst_107 = arith.constant dense<0.000000e+00> : vector<8x128xf32>
    %404 = tpu.matmul %394, %247, %cst_107 {dimension_numbers = #tpu.dot_dimension_numbers<[1], [0], [0], [1], [0, 0, 1, 1], [], []>} : vector<8x32xf32>, vector<32x128xf32>, vector<8x128xf32> -> vector<8x128xf32>
    %405 = arith.addf %403, %404 : vector<8x128xf32>
    %406 = vector.extract_strided_slice %405 {offsets = [0, 0], sizes = [8, 96], strides = [1, 1]} : vector<8x128xf32> to vector<8x96xf32>
    %407 = arith.negf %406 : vector<8x96xf32>
    %408 = math.exp %407 : vector<8x96xf32>
    %cst_108 = arith.constant 1.000000e+00 : f32
    %409 = vector.broadcast %cst_108 : f32 to vector<8x96xf32>
    %410 = arith.addf %409, %408 : vector<8x96xf32>
    %411 = arith.divf %409, %410 : vector<8x96xf32>
    %412 = vector.extract_strided_slice %411 {offsets = [0, 0], sizes = [8, 32], strides = [1, 1]} : vector<8x96xf32> to vector<8x32xf32>
    %413 = vector.extract_strided_slice %411 {offsets = [0, 32], sizes = [8, 32], strides = [1, 1]} : vector<8x96xf32> to vector<8x32xf32>
    %414 = vector.extract_strided_slice %411 {offsets = [0, 64], sizes = [8, 32], strides = [1, 1]} : vector<8x96xf32> to vector<8x32xf32>
    %415 = vector.extract_strided_slice %405 {offsets = [0, 96], sizes = [8, 32], strides = [1, 1]} : vector<8x128xf32> to vector<8x32xf32>
    %416 = math.tanh %415 : vector<8x32xf32>
    %417 = arith.mulf %413, %397 : vector<8x32xf32>
    %418 = arith.mulf %412, %416 : vector<8x32xf32>
    %419 = arith.addf %417, %418 : vector<8x32xf32>
    %420 = math.tanh %419 : vector<8x32xf32>
    %421 = arith.mulf %414, %420 : vector<8x32xf32>
    %422 = vector.extract_strided_slice %9 {offsets = [40, 0], sizes = [8, 1], strides = [1, 1]} : vector<64x1xi1> to vector<8x1xi1>
    %423 = vector.shape_cast %422 : vector<8x1xi1> to vector<8x1xi1>
    %424 = vector.broadcast %423 : vector<8x1xi1> to vector<8x32xi1>
    %425 = arith.select %424, %421, %394 : vector<8x32xi1>, vector<8x32xf32>
    %426 = vector.shape_cast %422 : vector<8x1xi1> to vector<8x1xi1>
    %427 = vector.broadcast %426 : vector<8x1xi1> to vector<8x32xi1>
    %428 = arith.select %427, %419, %397 : vector<8x32xi1>, vector<8x32xf32>
    %cst_109 = arith.constant 0.000000e+00 : f32
    %429 = vector.shape_cast %422 : vector<8x1xi1> to vector<8x1xi1>
    %430 = vector.broadcast %429 : vector<8x1xi1> to vector<8x32xi1>
    %431 = vector.broadcast %cst_109 : f32 to vector<8x32xf32>
    %432 = arith.select %430, %421, %431 : vector<8x32xi1>, vector<8x32xf32>
    %c40_110 = arith.constant 40 : index
    %c0_111 = arith.constant 0 : index
    %433 = vector.load %arg24[%c40_110, %c0_111] : memref<64x32xf32, #tpu.memory_space<vmem>>, vector<8x32xf32>
    tpu.vector_store %arg24[%c40_110, %c0_111], %432 {strides = array<i32>} : memref<64x32xf32, #tpu.memory_space<vmem>>, vector<8x32xf32>,
    %c48_112 = arith.constant 48 : index
    %c128_113 = arith.constant 128 : index
    %434 = vector.load %arg23[%c48_112, %c128_113] : memref<64x256xf32, #tpu.memory_space<vmem>>, vector<8x128xf32>
    %cst_114 = arith.constant dense<0.000000e+00> : vector<8x128xf32>
    %435 = tpu.matmul %425, %247, %cst_114 {dimension_numbers = #tpu.dot_dimension_numbers<[1], [0], [0], [1], [0, 0, 1, 1], [], []>} : vector<8x32xf32>, vector<32x128xf32>, vector<8x128xf32> -> vector<8x128xf32>
    %436 = arith.addf %434, %435 : vector<8x128xf32>
    %437 = vector.extract_strided_slice %436 {offsets = [0, 0], sizes = [8, 96], strides = [1, 1]} : vector<8x128xf32> to vector<8x96xf32>
    %438 = arith.negf %437 : vector<8x96xf32>
    %439 = math.exp %438 : vector<8x96xf32>
    %cst_115 = arith.constant 1.000000e+00 : f32
    %440 = vector.broadcast %cst_115 : f32 to vector<8x96xf32>
    %441 = arith.addf %440, %439 : vector<8x96xf32>
    %442 = arith.divf %440, %441 : vector<8x96xf32>
    %443 = vector.extract_strided_slice %442 {offsets = [0, 0], sizes = [8, 32], strides = [1, 1]} : vector<8x96xf32> to vector<8x32xf32>
    %444 = vector.extract_strided_slice %442 {offsets = [0, 32], sizes = [8, 32], strides = [1, 1]} : vector<8x96xf32> to vector<8x32xf32>
    %445 = vector.extract_strided_slice %442 {offsets = [0, 64], sizes = [8, 32], strides = [1, 1]} : vector<8x96xf32> to vector<8x32xf32>
    %446 = vector.extract_strided_slice %436 {offsets = [0, 96], sizes = [8, 32], strides = [1, 1]} : vector<8x128xf32> to vector<8x32xf32>
    %447 = math.tanh %446 : vector<8x32xf32>
    %448 = arith.mulf %444, %428 : vector<8x32xf32>
    %449 = arith.mulf %443, %447 : vector<8x32xf32>
    %450 = arith.addf %448, %449 : vector<8x32xf32>
    %451 = math.tanh %450 : vector<8x32xf32>
    %452 = arith.mulf %445, %451 : vector<8x32xf32>
    %453 = vector.extract_strided_slice %9 {offsets = [48, 0], sizes = [8, 1], strides = [1, 1]} : vector<64x1xi1> to vector<8x1xi1>
    %454 = vector.shape_cast %453 : vector<8x1xi1> to vector<8x1xi1>
    %455 = vector.broadcast %454 : vector<8x1xi1> to vector<8x32xi1>
    %456 = arith.select %455, %452, %425 : vector<8x32xi1>, vector<8x32xf32>
    %457 = vector.shape_cast %453 : vector<8x1xi1> to vector<8x1xi1>
    %458 = vector.broadcast %457 : vector<8x1xi1> to vector<8x32xi1>
    %459 = arith.select %458, %450, %428 : vector<8x32xi1>, vector<8x32xf32>
    %cst_116 = arith.constant 0.000000e+00 : f32
    %460 = vector.shape_cast %453 : vector<8x1xi1> to vector<8x1xi1>
    %461 = vector.broadcast %460 : vector<8x1xi1> to vector<8x32xi1>
    %462 = vector.broadcast %cst_116 : f32 to vector<8x32xf32>
    %463 = arith.select %461, %452, %462 : vector<8x32xi1>, vector<8x32xf32>
    %c48_117 = arith.constant 48 : index
    %c0_118 = arith.constant 0 : index
    %464 = vector.load %arg24[%c48_117, %c0_118] : memref<64x32xf32, #tpu.memory_space<vmem>>, vector<8x32xf32>
    tpu.vector_store %arg24[%c48_117, %c0_118], %463 {strides = array<i32>} : memref<64x32xf32, #tpu.memory_space<vmem>>, vector<8x32xf32>,
    %c56_119 = arith.constant 56 : index
    %c128_120 = arith.constant 128 : index
    %465 = vector.load %arg23[%c56_119, %c128_120] : memref<64x256xf32, #tpu.memory_space<vmem>>, vector<8x128xf32>
    %cst_121 = arith.constant dense<0.000000e+00> : vector<8x128xf32>
    %466 = tpu.matmul %456, %247, %cst_121 {dimension_numbers = #tpu.dot_dimension_numbers<[1], [0], [0], [1], [0, 0, 1, 1], [], []>} : vector<8x32xf32>, vector<32x128xf32>, vector<8x128xf32> -> vector<8x128xf32>
    %467 = arith.addf %465, %466 : vector<8x128xf32>
    %468 = vector.extract_strided_slice %467 {offsets = [0, 0], sizes = [8, 96], strides = [1, 1]} : vector<8x128xf32> to vector<8x96xf32>
    %469 = arith.negf %468 : vector<8x96xf32>
    %470 = math.exp %469 : vector<8x96xf32>
    %cst_122 = arith.constant 1.000000e+00 : f32
    %471 = vector.broadcast %cst_122 : f32 to vector<8x96xf32>
    %472 = arith.addf %471, %470 : vector<8x96xf32>
    %473 = arith.divf %471, %472 : vector<8x96xf32>
    %474 = vector.extract_strided_slice %473 {offsets = [0, 0], sizes = [8, 32], strides = [1, 1]} : vector<8x96xf32> to vector<8x32xf32>
    %475 = vector.extract_strided_slice %473 {offsets = [0, 32], sizes = [8, 32], strides = [1, 1]} : vector<8x96xf32> to vector<8x32xf32>
    %476 = vector.extract_strided_slice %473 {offsets = [0, 64], sizes = [8, 32], strides = [1, 1]} : vector<8x96xf32> to vector<8x32xf32>
    %477 = vector.extract_strided_slice %467 {offsets = [0, 96], sizes = [8, 32], strides = [1, 1]} : vector<8x128xf32> to vector<8x32xf32>
    %478 = math.tanh %477 : vector<8x32xf32>
    %479 = arith.mulf %475, %459 : vector<8x32xf32>
    %480 = arith.mulf %474, %478 : vector<8x32xf32>
    %481 = arith.addf %479, %480 : vector<8x32xf32>
    %482 = math.tanh %481 : vector<8x32xf32>
    %483 = arith.mulf %476, %482 : vector<8x32xf32>
    %484 = vector.extract_strided_slice %9 {offsets = [56, 0], sizes = [8, 1], strides = [1, 1]} : vector<64x1xi1> to vector<8x1xi1>
    %cst_123 = arith.constant 0.000000e+00 : f32
    %485 = vector.shape_cast %484 : vector<8x1xi1> to vector<8x1xi1>
    %486 = vector.broadcast %485 : vector<8x1xi1> to vector<8x32xi1>
    %487 = vector.broadcast %cst_123 : f32 to vector<8x32xf32>
    %488 = arith.select %486, %483, %487 : vector<8x32xi1>, vector<8x32xf32>
    %c56_124 = arith.constant 56 : index
    %c0_125 = arith.constant 0 : index
    %489 = vector.load %arg24[%c56_124, %c0_125] : memref<64x32xf32, #tpu.memory_space<vmem>>, vector<8x32xf32>
    tpu.vector_store %arg24[%c56_124, %c0_125], %488 {strides = array<i32>} : memref<64x32xf32, #tpu.memory_space<vmem>>, vector<8x32xf32>,
    %c0_126 = arith.constant 0 : index
    %c0_127 = arith.constant 0 : index
    %490 = vector.load %arg24[%c0_126, %c0_127] : memref<64x32xf32, #tpu.memory_space<vmem>>, vector<64x32xf32>
    %491 = arith.truncf %490 : vector<64x32xf32> to vector<64x32xbf16>
    %c0_128 = arith.constant 0 : index
    %c0_129 = arith.constant 0 : index
    %492 = vector.load %arg15[%c0_128, %c0_129] : memref<32x128xbf16, #tpu.memory_space<vmem>>, vector<32x128xbf16>
    %cst_130 = arith.constant dense<0.000000e+00> : vector<64x128xf32>
    %493 = tpu.matmul %491, %492, %cst_130 {dimension_numbers = #tpu.dot_dimension_numbers<[1], [0], [0], [1], [0, 0, 1, 1], [], []>} : vector<64x32xbf16>, vector<32x128xbf16>, vector<64x128xf32> -> vector<64x128xf32>
    %c0_131 = arith.constant 0 : index
    %c0_132 = arith.constant 0 : index
    %494 = vector.load %arg16[%c0_131, %c0_132] : memref<1x128xf32, #tpu.memory_space<vmem>>, vector<1x128xf32>
    %495 = vector.broadcast %494 : vector<1x128xf32> to vector<64x128xf32>
    %496 = arith.addf %493, %495 : vector<64x128xf32>
    %497 = tpu.iota {dimensions = array<i32: 1>} : vector<64x128xi32>
    %c16_i32 = arith.constant 16 : i32
    %498 = vector.broadcast %c16_i32 : i32 to vector<64x128xi32>
    %499 = arith.cmpi slt, %497, %498 : vector<64x128xi32>
    %c16_i32_133 = arith.constant 16 : i32
    %500 = vector.broadcast %c16_i32_133 : i32 to vector<64x128xi32>
    %501 = arith.cmpi sge, %497, %500 : vector<64x128xi32>
    %c28_i32 = arith.constant 28 : i32
    %502 = vector.broadcast %c28_i32 : i32 to vector<64x128xi32>
    %503 = arith.cmpi slt, %497, %502 : vector<64x128xi32>
    %504 = arith.andi %501, %503 : vector<64x128xi1>
    %cst_134 = arith.constant -1.000000e+30 : f32
    %505 = vector.broadcast %cst_134 : f32 to vector<64x128xf32>
    %506 = arith.select %499, %496, %505 : vector<64x128xi1>, vector<64x128xf32>
    %cst_135 = arith.constant dense<0xFF800000> : vector<64xf32>
    %507 = vector.multi_reduction <maximumf>, %506, %cst_135 [1] : vector<64x128xf32> to vector<64xf32>
    %508 = vector.shape_cast %507 : vector<64xf32> to vector<64x1xf32>
    %cst_136 = arith.constant -1.000000e+30 : f32
    %509 = vector.broadcast %cst_136 : f32 to vector<64x128xf32>
    %510 = arith.select %504, %496, %509 : vector<64x128xi1>, vector<64x128xf32>
    %cst_137 = arith.constant dense<0xFF800000> : vector<64xf32>
    %511 = vector.multi_reduction <maximumf>, %510, %cst_137 [1] : vector<64x128xf32> to vector<64xf32>
    %512 = vector.shape_cast %511 : vector<64xf32> to vector<64x1xf32>
    %513 = vector.shape_cast %508 : vector<64x1xf32> to vector<64x1xf32>
    %514 = vector.broadcast %513 : vector<64x1xf32> to vector<64x128xf32>
    %515 = vector.shape_cast %512 : vector<64x1xf32> to vector<64x1xf32>
    %516 = vector.broadcast %515 : vector<64x1xf32> to vector<64x128xf32>
    %517 = arith.select %499, %514, %516 : vector<64x128xi1>, vector<64x128xf32>
    %518 = arith.subf %496, %517 : vector<64x128xf32>
    %519 = math.exp %518 : vector<64x128xf32>
    %cst_138 = arith.constant 0.000000e+00 : f32
    %520 = vector.broadcast %cst_138 : f32 to vector<64x128xf32>
    %521 = arith.select %499, %519, %520 : vector<64x128xi1>, vector<64x128xf32>
    %cst_139 = arith.constant dense<0.000000e+00> : vector<64xf32>
    %522 = vector.multi_reduction <add>, %521, %cst_139 [1] : vector<64x128xf32> to vector<64xf32>
    %523 = vector.shape_cast %522 : vector<64xf32> to vector<64x1xf32>
    %524 = math.log %523 : vector<64x1xf32>
    %cst_140 = arith.constant 0.000000e+00 : f32
    %525 = vector.broadcast %cst_140 : f32 to vector<64x128xf32>
    %526 = arith.select %504, %519, %525 : vector<64x128xi1>, vector<64x128xf32>
    %cst_141 = arith.constant dense<0.000000e+00> : vector<64xf32>
    %527 = vector.multi_reduction <add>, %526, %cst_141 [1] : vector<64x128xf32> to vector<64xf32>
    %528 = vector.shape_cast %527 : vector<64xf32> to vector<64x1xf32>
    %529 = math.log %528 : vector<64x1xf32>
    %530 = vector.shape_cast %524 : vector<64x1xf32> to vector<64x1xf32>
    %531 = vector.broadcast %530 : vector<64x1xf32> to vector<64x128xf32>
    %532 = vector.shape_cast %529 : vector<64x1xf32> to vector<64x1xf32>
    %533 = vector.broadcast %532 : vector<64x1xf32> to vector<64x128xf32>
    %534 = arith.select %499, %531, %533 : vector<64x128xi1>, vector<64x128xf32>
    %535 = arith.subf %518, %534 : vector<64x128xf32>
    %c0_142 = arith.constant 0 : index
    %c0_143 = arith.constant 0 : index
    %536 = vector.load %arg17[%c0_142, %c0_143] : memref<64x128xf32, #tpu.memory_space<vmem>>, vector<64x128xf32>
    tpu.vector_store %arg17[%c0_142, %c0_143], %535 {strides = array<i32>} : memref<64x128xf32, #tpu.memory_space<vmem>>, vector<64x128xf32>,
    return
  }
}

</mosaic_0001>

<llo_original>
// kernel: lstm_vae_forward.1
$region0: #{lstm_vae_forward.1}
  #allocation0 [shape = 'u32[]', space=smem, size = 0x4, offset = 0x4, fixed_abs, tag = 'smem constant byte address 0x4 - core index']
  #allocation1 [shape = 'u32[144,128]{1,0:T(1,128)}', space=vmem, size = 0x12000, scoped, tag = 'internal scratch']
  #allocation2 [shape = 'f32[64,256]{1,0:T(8,128)}', space=vmem, size = 0x10000, scoped, tag = 'scratch operand']
  #allocation3 [shape = 'f32[64,32]{1,0:T(8,128)}', space=vmem, size = 0x8000, scoped, tag = 'scratch operand']
  %s0 = inlined_call_operand.vmem [shape: bf16[64,16], index: 0, kind: input, shape index: {}]
  %s1 = inlined_call_operand.vmem [shape: f32[64,1], index: 1, kind: input, shape index: {}]
  %s2 = inlined_call_operand.vmem [shape: bf16[16,256], index: 2, kind: input, shape index: {}]
  %s3 = inlined_call_operand.vmem [shape: f32[1,256], index: 3, kind: input, shape index: {}]
  %s4 = inlined_call_operand.vmem [shape: f32[32,128], index: 4, kind: input, shape index: {}]
  %s5 = inlined_call_operand.vmem [shape: f32[32,128], index: 5, kind: input, shape index: {}]
  %s6 = inlined_call_operand.vmem [shape: f32[8,32], index: 6, kind: input, shape index: {}]
  %s7 = inlined_call_operand.vmem [shape: f32[8,32], index: 7, kind: input, shape index: {}]
  %s8 = inlined_call_operand.vmem [shape: f32[8,16], index: 8, kind: input, shape index: {}]
  %s9 = inlined_call_operand.vmem [shape: f32[32,16], index: 9, kind: input, shape index: {}]
  %s10 = inlined_call_operand.vmem [shape: f32[1,16], index: 10, kind: input, shape index: {}]
  %s11 = inlined_call_operand.vmem [shape: f32[32,16], index: 11, kind: input, shape index: {}]
  %s12 = inlined_call_operand.vmem [shape: f32[1,16], index: 12, kind: input, shape index: {}]
  %s13 = inlined_call_operand.vmem [shape: f32[16,32], index: 13, kind: input, shape index: {}]
  %s14 = inlined_call_operand.vmem [shape: f32[1,32], index: 14, kind: input, shape index: {}]
  %s15 = inlined_call_operand.vmem [shape: bf16[32,128], index: 15, kind: input, shape index: {}]
  %s16 = inlined_call_operand.vmem [shape: f32[1,128], index: 16, kind: input, shape index: {}]
  %s17 = inlined_call_operand.vmem [shape: f32[64,128], index: 17, kind: output, shape index: {0}]
  %s18 = inlined_call_operand.vmem [shape: f32[8,16], index: 18, kind: output, shape index: {1}]
  %s19 = inlined_call_operand.vmem [shape: f32[8,16], index: 19, kind: output, shape index: {2}]
  %s20 = inlined_call_operand.vmem [shape: f32[8,16], index: 20, kind: output, shape index: {3}]
  %s21 = inlined_call_operand.vmem [shape: f32[8,32], index: 21, kind: output, shape index: {4}]
  %s22 = inlined_call_operand.vmem [shape: f32[8,32], index: 22, kind: output, shape index: {5}]
  %23 = xla_tuple %s17, %s18, %s19, %s20, %s21, %s22
  %s24 = sld [smem:[#allocation0]]
  $region118: #{lstm_vae_forward.1} parent=0
    _
  %s26 = ssub.s32 1, %s24
  %s27 = scalar_select 0, %s26, %s24
  // Predicated region
  $region2: #{lstm_vae_forward.1} parent=0 // pred_check
    _
  $region3: #{lstm_vae_forward.1} parent=0 // pred_check_branch
    %29 = sbr.rel (0) target = $region5
  $region4: #{lstm_vae_forward.1} parent=0 // pred_region
    _
  $region5: #{lstm_vae_forward.1} parent=0 // pred_fallthru
    _
  // Predicated region
  $region6: #{lstm_vae_forward.1} parent=0 // pred_check
    _
  $region7: #{lstm_vae_forward.1} parent=0 // pred_check_branch
    %31 = sbr.rel (0) target = $region9
  $region8: #{lstm_vae_forward.1} parent=0 // pred_region
    _
  $region9: #{lstm_vae_forward.1} parent=0 // pred_fallthru
    _
  // Predicated region
  $region10: #{lstm_vae_forward.1} parent=0 // pred_check
    _
  $region11: #{lstm_vae_forward.1} parent=0 // pred_check_branch
    %33 = sbr.rel (0) target = $region13
  $region12: #{lstm_vae_forward.1} parent=0 // pred_region
    _
  $region13: #{lstm_vae_forward.1} parent=0 // pred_fallthru
    _
  // Predicated region
  $region14: #{lstm_vae_forward.1} parent=0 // pred_check
    _
  $region15: #{lstm_vae_forward.1} parent=0 // pred_check_branch
    %35 = sbr.rel (0) target = $region17
  $region16: #{lstm_vae_forward.1} parent=0 // pred_region
    _
  $region17: #{lstm_vae_forward.1} parent=0 // pred_fallthru
    _
  // Predicated region
  $region18: #{lstm_vae_forward.1} parent=0 // pred_check
    _
  $region19: #{lstm_vae_forward.1} parent=0 // pred_check_branch
    %37 = sbr.rel (0) target = $region21
  $region20: #{lstm_vae_forward.1} parent=0 // pred_region
    _
  $region21: #{lstm_vae_forward.1} parent=0 // pred_fallthru
    _
  // Predicated region
  $region22: #{lstm_vae_forward.1} parent=0 // pred_check
    _
  $region23: #{lstm_vae_forward.1} parent=0 // pred_check_branch
    %39 = sbr.rel (0) target = $region25
  $region24: #{lstm_vae_forward.1} parent=0 // pred_region
    _
  $region25: #{lstm_vae_forward.1} parent=0 // pred_fallthru
    _
  // Predicated region
  $region26: #{lstm_vae_forward.1} parent=0 // pred_check
    _
  $region27: #{lstm_vae_forward.1} parent=0 // pred_check_branch
    %41 = sbr.rel (0) target = $region29
  $region28: #{lstm_vae_forward.1} parent=0 // pred_region
    _
  $region29: #{lstm_vae_forward.1} parent=0 // pred_fallthru
    _
  // Predicated region
  $region30: #{lstm_vae_forward.1} parent=0 // pred_check
    _
  $region31: #{lstm_vae_forward.1} parent=0 // pred_check_branch
    %43 = sbr.rel (0) target = $region33
  $region32: #{lstm_vae_forward.1} parent=0 // pred_region
    _
  $region33: #{lstm_vae_forward.1} parent=0 // pred_fallthru
    _
  // Predicated region
  $region34: #{lstm_vae_forward.1} parent=0 // pred_check
    _
  $region35: #{lstm_vae_forward.1} parent=0 // pred_check_branch
    %45 = sbr.rel (0) target = $region37
  $region36: #{lstm_vae_forward.1} parent=0 // pred_region
    _
  $region37: #{lstm_vae_forward.1} parent=0 // pred_fallthru
    _
  // Predicated region
  $region38: #{lstm_vae_forward.1} parent=0 // pred_check
    _
  $region39: #{lstm_vae_forward.1} parent=0 // pred_check_branch
    %47 = sbr.rel (0) target = $region41
  $region40: #{lstm_vae_forward.1} parent=0 // pred_region
    _
  $region41: #{lstm_vae_forward.1} parent=0 // pred_fallthru
    _
  // Predicated region
  $region42: #{lstm_vae_forward.1} parent=0 // pred_check
    _
  $region43: #{lstm_vae_forward.1} parent=0 // pred_check_branch
    %49 = sbr.rel (0) target = $region45
  $region44: #{lstm_vae_forward.1} parent=0 // pred_region
    _
  $region45: #{lstm_vae_forward.1} parent=0 // pred_fallthru
    _
  // Predicated region
  $region46: #{lstm_vae_forward.1} parent=0 // pred_check
    _
  $region47: #{lstm_vae_forward.1} parent=0 // pred_check_branch
    %51 = sbr.rel (0) target = $region49
  $region48: #{lstm_vae_forward.1} parent=0 // pred_region
    _
  $region49: #{lstm_vae_forward.1} parent=0 // pred_fallthru
    _
  // Predicated region
  $region50: #{lstm_vae_forward.1} parent=0 // pred_check
    _
  $region51: #{lstm_vae_forward.1} parent=0 // pred_check_branch
    %53 = sbr.rel (0) target = $region53
  $region52: #{lstm_vae_forward.1} parent=0 // pred_region
    _
  $region53: #{lstm_vae_forward.1} parent=0 // pred_fallthru
    _
  // Predicated region
  $region54: #{lstm_vae_forward.1} parent=0 // pred_check
    _
  $region55: #{lstm_vae_forward.1} parent=0 // pred_check_branch
    %55 = sbr.rel (0) target = $region57
  $region56: #{lstm_vae_forward.1} parent=0 // pred_region
    _
  $region57: #{lstm_vae_forward.1} parent=0 // pred_fallthru
    _
  // Predicated region
  $region58: #{lstm_vae_forward.1} parent=0 // pred_check
    _
  $region59: #{lstm_vae_forward.1} parent=0 // pred_check_branch
    %57 = sbr.rel (0) target = $region61
  $region60: #{lstm_vae_forward.1} parent=0 // pred_region
    _
  $region61: #{lstm_vae_forward.1} parent=0 // pred_fallthru
    _
  // Predicated region
  $region62: #{lstm_vae_forward.1} parent=0 // pred_check
    _
  $region63: #{lstm_vae_forward.1} parent=0 // pred_check_branch
    %59 = sbr.rel (0) target = $region65
  $region64: #{lstm_vae_forward.1} parent=0 // pred_region
    _
  $region65: #{lstm_vae_forward.1} parent=0 // pred_fallthru
    _
  // Predicated region
  $region66: #{lstm_vae_forward.1} parent=0 // pred_check
    _
  $region67: #{lstm_vae_forward.1} parent=0 // pred_check_branch
    %61 = sbr.rel (0) target = $region69
  $region68: #{lstm_vae_forward.1} parent=0 // pred_region
    _
  $region69: #{lstm_vae_forward.1} parent=0 // pred_fallthru
    _
  %v63 = vld [vmem:[%s0] sm:$0xf]
  %v64 = vld [vmem:[%s0 + $0x4] sm:$0xf]
  %v65 = vld [vmem:[%s0 + $0x8] sm:$0xf]
  %v66 = vld [vmem:[%s0 + $0xc] sm:$0xf]
  %v67 = vld [vmem:[%s0 + $0x10] sm:$0xf]
  %v68 = vld [vmem:[%s0 + $0x14] sm:$0xf]
  %v69 = vld [vmem:[%s0 + $0x18] sm:$0xf]
  %v70 = vld [vmem:[%s0 + $0x1c] sm:$0xf]
  %v71 = vld [vmem:[%s2] sm:$0xff]
  %v72 = vld [vmem:[%s2 + $0x8] sm:$0xff]
  %v73 = vld [vmem:[%s3] sm:$0x3]
  %v75 = vlaneseq
  %v76 = vshrl.u32 %v75, 7
  %v77 = vsub.s32 0, %v76
  %v78 = vrot.slane %v73, %v77
  %v79 = vlaneseq
  %v80 = vshrl.u32 %v79, 7
  %v81 = vsub.s32 1, %v80
  %v82 = vrot.slane %v73, %v81
  %v93 = vunpack.c.l.b16 %v63
  %v94 = vunpack.c.l.b16 %v64
  %v95 = vunpack.c.l.b16 %v65
  %v96 = vunpack.c.l.b16 %v66
  %v97 = vunpack.c.l.b16 %v67
  %v98 = vunpack.c.l.b16 %v68
  %v99 = vunpack.c.l.b16 %v69
  %v100 = vunpack.c.l.b16 %v70
  %v101 = vpack.c.b16 %v94, %v93
  %v102 = vpack.c.b16 %v96, %v95
  %v103 = vpack.c.b16 %v98, %v97
  %v104 = vpack.c.b16 %v100, %v99
  %v107 = vunpack.c.l.b16 %v71
  %v108 = vunpack.c.h.b16 %v71
  %v109 = vunpack.c.l.b16 %v72
  %v110 = vunpack.c.h.b16 %v72
  %v111 = vpack.c.b16 %v109, %v107
  %v112 = vpack.c.b16 %v110, %v108
  %vm115 = vcmask 130048
  %v117 = vsel %vm115, %v101, 0
  %v120 = vsel %vm115, %v102, 0
  %v123 = vsel %vm115, %v103, 0
  %v126 = vsel %vm115, %v104, 0
  %128 = vmatprep.subr.bf16.mxu0 0
  %129 = vmatpush1.bf16.msra.mxu0 0
  %130 = vmatprep.subr.bf16.mxu0 0
  %131 = vmatpush1.bf16.msra.mxu0 0
  %132 = vmatprep.subr.bf16.mxu0 0
  %133 = vmatpush1.bf16.msra.mxu0 0
  %134 = vmatprep.subr.bf16.mxu0 0
  %135 = vmatpush1.bf16.msra.mxu0 0
  %136 = vmatprep.subr.bf16.mxu0 0
  %137 = vmatpush1.bf16.msra.mxu0 0
  %138 = vmatprep.subr.bf16.mxu0 0
  %139 = vmatpush1.bf16.msra.mxu0 0
  %140 = vmatprep.subr.bf16.mxu0 0
  %141 = vmatpush1.bf16.msra.mxu0 0
  %142 = vmatprep.subr.bf16.mxu0 %v112
  %143 = vmatpush1.bf16.msra.mxu0 %v111
  %144 = vmatprep.subr.bf16.mxu0 0
  %145 = vmatpush2.bf16.msra.mxu0 0
  %146 = vmatprep.subr.bf16.mxu0 0
  %147 = vmatpush2.bf16.msra.mxu0 0
  %148 = vmatprep.subr.bf16.mxu0 0
  %149 = vmatpush2.bf16.msra.mxu0 0
  %150 = vmatprep.subr.bf16.mxu0 0
  %151 = vmatpush2.bf16.msra.mxu0 0
  %152 = vmatprep.subr.bf16.mxu0 0
  %153 = vmatpush2.bf16.msra.mxu0 0
  %154 = vmatprep.subr.bf16.mxu0 0
  %155 = vmatpush2.bf16.msra.mxu0 0
  %156 = vmatprep.subr.bf16.mxu0 0
  %157 = vmatpush2.bf16.msra.mxu0 0
  %158 = vmatprep.subr.bf16.mxu0 0
  %159 = vmatpush2.bf16.msra.mxu0 0
  %160 = vmatprep.mubr.bf16.mxu0 0
  %161 = vmatmul.mubr.bf16.gmra.mxu0 %v117
  %v162 = vpop.f32.mrf.mxu0
  %v163 = vadd.f32 %v78, %v162
  %v164 = vpop.f32.mrf.mxu0
  %v165 = vadd.f32 %v82, %v164
  %v166 = vpop.f32.mrf.mxu0
  %v167 = vadd.f32 %v78, %v166
  %v168 = vpop.f32.mrf.mxu0
  %v169 = vadd.f32 %v82, %v168
  %170 = vmatprep.mubr.bf16.mxu0 0
  %171 = vmatmul.mubr.bf16.gmra.mxu0 %v120
  %v172 = vpop.f32.mrf.mxu0
  %v173 = vadd.f32 %v78, %v172
  %v174 = vpop.f32.mrf.mxu0
  %v175 = vadd.f32 %v82, %v174
  %v176 = vpop.f32.mrf.mxu0
  %v177 = vadd.f32 %v78, %v176
  %v178 = vpop.f32.mrf.mxu0
  %v179 = vadd.f32 %v82, %v178
  %180 = vmatprep.mubr.bf16.mxu0 0
  %181 = vmatmul.mubr.bf16.gmra.mxu0 %v123
  %v182 = vpop.f32.mrf.mxu0
  %v183 = vadd.f32 %v78, %v182
  %v184 = vpop.f32.mrf.mxu0
  %v185 = vadd.f32 %v82, %v184
  %v186 = vpop.f32.mrf.mxu0
  %v187 = vadd.f32 %v78, %v186
  %v188 = vpop.f32.mrf.mxu0
  %v189 = vadd.f32 %v82, %v188
  %190 = vmatprep.mubr.bf16.mxu0 0
  %191 = vmatmul.mubr.bf16.gmra.mxu0 %v126
  %v192 = vpop.f32.mrf.mxu0
  %v193 = vadd.f32 %v78, %v192
  %v194 = vpop.f32.mrf.mxu0
  %v195 = vadd.f32 %v82, %v194
  %v196 = vpop.f32.mrf.mxu0
  %v197 = vadd.f32 %v78, %v196
  %v198 = vpop.f32.mrf.mxu0
  %v199 = vadd.f32 %v82, %v198
  %200 = vdwg.mxu0
  %201 = vst [vmem:[#allocation2] sm:$0xff] %v163
  %202 = vst [vmem:[#allocation2 + $0x8] sm:$0xff] %v165
  %203 = vst [vmem:[#allocation2 + $0x10] sm:$0xff] %v167
  %204 = vst [vmem:[#allocation2 + $0x18] sm:$0xff] %v169
  %205 = vst [vmem:[#allocation2 + $0x20] sm:$0xff] %v173
  %206 = vst [vmem:[#allocation2 + $0x28] sm:$0xff] %v175
  %207 = vst [vmem:[#allocation2 + $0x30] sm:$0xff] %v177
  %208 = vst [vmem:[#allocation2 + $0x38] sm:$0xff] %v179
  %209 = vst [vmem:[#allocation2 + $0x40] sm:$0xff] %v183
  %210 = vst [vmem:[#allocation2 + $0x48] sm:$0xff] %v185
  %211 = vst [vmem:[#allocation2 + $0x50] sm:$0xff] %v187
  %212 = vst [vmem:[#allocation2 + $0x58] sm:$0xff] %v189
  %213 = vst [vmem:[#allocation2 + $0x60] sm:$0xff] %v193
  %214 = vst [vmem:[#allocation2 + $0x68] sm:$0xff] %v195
  %215 = vst [vmem:[#allocation2 + $0x70] sm:$0xff] %v197
  %216 = vst [vmem:[#allocation2 + $0x78] sm:$0xff] %v199
  %v217 = vld [vmem:[%s1] sm:$0xff]
  %v218 = vld [vmem:[%s1 + $0x8] sm:$0xff]
  %v219 = vld [vmem:[%s1 + $0x10] sm:$0xff]
  %v220 = vld [vmem:[%s1 + $0x18] sm:$0xff]
  %v221 = vld [vmem:[%s1 + $0x20] sm:$0xff]
  %v222 = vld [vmem:[%s1 + $0x28] sm:$0xff]
  %v223 = vld [vmem:[%s1 + $0x30] sm:$0xff]
  %v224 = vld [vmem:[%s1 + $0x38] sm:$0xff]
  %vm225 = vcmp.ne.f32.partialorder %v217, 0.0
  %vm226 = vcmp.ne.f32.partialorder %v218, 0.0
  %vm227 = vcmp.ne.f32.partialorder %v219, 0.0
  %vm228 = vcmp.ne.f32.partialorder %v220, 0.0
  %vm229 = vcmp.ne.f32.partialorder %v221, 0.0
  %vm230 = vcmp.ne.f32.partialorder %v222, 0.0
  %vm231 = vcmp.ne.f32.partialorder %v223, 0.0
  %vm232 = vcmp.ne.f32.partialorder %v224, 0.0
  %v233 = vld [vmem:[%s6] sm:$0xff]
  %v234 = vld [vmem:[%s7] sm:$0xff]
  %v235 = vld [vmem:[%s4] sm:$0xff]
  %v236 = vld [vmem:[%s4 + $0x8] sm:$0xff]
  %v237 = vld [vmem:[%s4 + $0x10] sm:$0xff]
  %v238 = vld [vmem:[%s4 + $0x18] sm:$0xff]
  %v239 = vld [vmem:[#allocation2] sm:$0xff]
  %vm240 = vcmask 261120
  %v242 = vsel %vm240, %v233, 0
  %244 = vmatprep.subr.mxu0 0.0
  %245 = vmatpush1.msra.mxu0 0.0
  %246 = vmatprep.subr.mxu0 0.0
  %247 = vmatpush1.msra.mxu0 0.0
  %248 = vmatprep.subr.mxu0 0.0
  %249 = vmatpush1.msra.mxu0 0.0
  %250 = vmatprep.subr.mxu0 0.0
  %251 = vmatpush1.msra.mxu0 0.0
  %252 = vmatprep.subr.mxu0 0.0
  %253 = vmatpush1.msra.mxu0 0.0
  %254 = vmatprep.subr.mxu0 0.0
  %255 = vmatpush1.msra.mxu0 0.0
  %256 = vmatprep.subr.mxu0 0.0
  %257 = vmatpush1.msra.mxu0 0.0
  %258 = vmatprep.subr.mxu0 0.0
  %259 = vmatpush1.msra.mxu0 0.0
  %260 = vmatprep.subr.mxu0 0.0
  %261 = vmatpush1.msra.mxu0 0.0
  %262 = vmatprep.subr.mxu0 0.0
  %263 = vmatpush1.msra.mxu0 0.0
  %264 = vmatprep.subr.mxu0 0.0
  %265 = vmatpush1.msra.mxu0 0.0
  %266 = vmatprep.subr.mxu0 0.0
  %267 = vmatpush1.msra.mxu0 0.0
  %268 = vmatprep.subr.mxu0 0.0
  %269 = vmatpush1.msra.mxu0 %v238
  %270 = vmatprep.subr.mxu0 0.0
  %271 = vmatpush1.msra.mxu0 %v237
  %272 = vmatprep.subr.mxu0 0.0
  %273 = vmatpush1.msra.mxu0 %v236
  %274 = vmatprep.subr.mxu0 0.0
  %275 = vmatpush1.msra.mxu0 %v235
  %276 = vmatprep.subr.mxu0 0.0
  %277 = vmatpush2.msra.mxu0 0.0
  %278 = vmatprep.subr.mxu0 0.0
  %279 = vmatpush2.msra.mxu0 0.0
  %280 = vmatprep.subr.mxu0 0.0
  %281 = vmatpush2.msra.mxu0 0.0
  %282 = vmatprep.subr.mxu0 0.0
  %283 = vmatpush2.msra.mxu0 0.0
  %284 = vmatprep.subr.mxu0 0.0
  %285 = vmatpush2.msra.mxu0 0.0
  %286 = vmatprep.subr.mxu0 0.0
  %287 = vmatpush2.msra.mxu0 0.0
  %288 = vmatprep.subr.mxu0 0.0
  %289 = vmatpush2.msra.mxu0 0.0
  %290 = vmatprep.subr.mxu0 0.0
  %291 = vmatpush2.msra.mxu0 0.0
  %292 = vmatprep.subr.mxu0 0.0
  %293 = vmatpush2.msra.mxu0 0.0
  %294 = vmatprep.subr.mxu0 0.0
  %295 = vmatpush2.msra.mxu0 0.0
  %296 = vmatprep.subr.mxu0 0.0
  %297 = vmatpush2.msra.mxu0 0.0
  %298 = vmatprep.subr.mxu0 0.0
  %299 = vmatpush2.msra.mxu0 0.0
  %300 = vmatprep.subr.mxu0 0.0
  %301 = vmatpush2.msra.mxu0 0.0
  %302 = vmatprep.subr.mxu0 0.0
  %303 = vmatpush2.msra.mxu0 0.0
  %304 = vmatprep.subr.mxu0 0.0
  %305 = vmatpush2.msra.mxu0 0.0
  %306 = vmatprep.subr.mxu0 0.0
  %307 = vmatpush2.msra.mxu0 0.0
  %308 = vmatprep.mubr.f32.mxu0 0.0
  %309 = vmatmul.mubr.f32.gmra.mxu0 %v242
  %v310 = vpop.f32.mrf.mxu0
  %v311 = vadd.f32 0.0, %v310
  %v312 = vpop.f32.mrf.mxu0
  %313 = vdwg.mxu0
  %v314 = vadd.f32 %v239, %v311
  %v315 = vxor.u32 %v314, 2147483648
  %v316 = vmul.f32 %v315, 1.442695
  %v317 = vpow.pop %v316
  %v318 = vadd.f32 %v317, 1.0
  %v319 = vrcp.pop %v318
  %v320 = vmul.f32 1.0, %v319
  %v321 = vtanh.pop %v314
  %323 = vrot.lane.b32.xlu0 %v234, 32
  %v324 = vpop.permute.xlu0 %323
  %v326 = vmul.f32 %v320, %v324
  %328 = vrot.lane.b32.xlu0 %v321, 32
  %v329 = vpop.permute.xlu0 %328
  %v331 = vmul.f32 %v320, %v329
  %333 = vrot.lane.b32.xlu0 %v331, 32
  %v334 = vpop.permute.xlu0 %333
  %v336 = vadd.f32 %v326, %v334
  %v337 = vtanh.pop %v336
  %339 = vrot.lane.b32.xlu0 %v337, 32
  %v340 = vpop.permute.xlu0 %339
  %v342 = vmul.f32 %v320, %v340
  %v343 = vsel %vm225, 1, 0
  %344 = vset.pattern.permute.xlu0 0
  %345 = vperm.xlu0 %344, %v343
  %v346 = vpop.permute.xlu0 %345
  %vm347 = vcmp.eq.s32.totalorder %v346, 1
  %348 = vrot.lane.b32.xlu0 %v233, 64
  %v349 = vpop.permute.xlu0 %348
  %v351 = vsel %vm347, %v342, %v349
  %v352 = vsel %vm347, %v336, %v324
  %v353 = vld [vmem:[#allocation2 + $0x10] sm:$0xff]
  %355 = vrot.lane.b32.xlu0 %v351, 64
  %v356 = vpop.permute.xlu0 %355
  %v357 = vsel %vm240, %v356, 0
  %359 = vmatprep.subr.mxu0 0.0
  %360 = vmatpush1.msra.mxu0 0.0
  %361 = vmatprep.subr.mxu0 0.0
  %362 = vmatpush1.msra.mxu0 0.0
  %363 = vmatprep.subr.mxu0 0.0
  %364 = vmatpush1.msra.mxu0 0.0
  %365 = vmatprep.subr.mxu0 0.0
  %366 = vmatpush1.msra.mxu0 0.0
  %367 = vmatprep.subr.mxu0 0.0
  %368 = vmatpush1.msra.mxu0 0.0
  %369 = vmatprep.subr.mxu0 0.0
  %370 = vmatpush1.msra.mxu0 0.0
  %371 = vmatprep.subr.mxu0 0.0
  %372 = vmatpush1.msra.mxu0 0.0
  %373 = vmatprep.subr.mxu0 0.0
  %374 = vmatpush1.msra.mxu0 0.0
  %375 = vmatprep.subr.mxu0 0.0
  %376 = vmatpush1.msra.mxu0 0.0
  %377 = vmatprep.subr.mxu0 0.0
  %378 = vmatpush1.msra.mxu0 0.0
  %379 = vmatprep.subr.mxu0 0.0
  %380 = vmatpush1.msra.mxu0 0.0
  %381 = vmatprep.subr.mxu0 0.0
  %382 = vmatpush1.msra.mxu0 0.0
  %383 = vmatprep.subr.mxu0 0.0
  %384 = vmatpush1.msra.mxu0 %v238
  %385 = vmatprep.subr.mxu0 0.0
  %386 = vmatpush1.msra.mxu0 %v237
  %387 = vmatprep.subr.mxu0 0.0
  %388 = vmatpush1.msra.mxu0 %v236
  %389 = vmatprep.subr.mxu0 0.0
  %390 = vmatpush1.msra.mxu0 %v235
  %391 = vmatprep.subr.mxu0 0.0
  %392 = vmatpush2.msra.mxu0 0.0
  %393 = vmatprep.subr.mxu0 0.0
  %394 = vmatpush2.msra.mxu0 0.0
  %395 = vmatprep.subr.mxu0 0.0
  %396 = vmatpush2.msra.mxu0 0.0
  %397 = vmatprep.subr.mxu0 0.0
  %398 = vmatpush2.msra.mxu0 0.0
  %399 = vmatprep.subr.mxu0 0.0
  %400 = vmatpush2.msra.mxu0 0.0
  %401 = vmatprep.subr.mxu0 0.0
  %402 = vmatpush2.msra.mxu0 0.0
  %403 = vmatprep.subr.mxu0 0.0
  %404 = vmatpush2.msra.mxu0 0.0
  %405 = vmatprep.subr.mxu0 0.0
  %406 = vmatpush2.msra.mxu0 0.0
  %407 = vmatprep.subr.mxu0 0.0
  %408 = vmatpush2.msra.mxu0 0.0
  %409 = vmatprep.subr.mxu0 0.0
  %410 = vmatpush2.msra.mxu0 0.0
  %411 = vmatprep.subr.mxu0 0.0
  %412 = vmatpush2.msra.mxu0 0.0
  %413 = vmatprep.subr.mxu0 0.0
  %414 = vmatpush2.msra.mxu0 0.0
  %415 = vmatprep.subr.mxu0 0.0
  %416 = vmatpush2.msra.mxu0 0.0
  %417 = vmatprep.subr.mxu0 0.0
  %418 = vmatpush2.msra.mxu0 0.0
  %419 = vmatprep.subr.mxu0 0.0
  %420 = vmatpush2.msra.mxu0 0.0
  %421 = vmatprep.subr.mxu0 0.0
  %422 = vmatpush2.msra.mxu0 0.0
  %423 = vmatprep.mubr.f32.mxu0 0.0
  %424 = vmatmul.mubr.f32.gmra.mxu0 %v357
  %v425 = vpop.f32.mrf.mxu0
  %v426 = vadd.f32 0.0, %v425
  %v427 = vpop.f32.mrf.mxu0
  %428 = vdwg.mxu0
  %v429 = vadd.f32 %v353, %v426
  %v430 = vxor.u32 %v429, 2147483648
  %v431 = vmul.f32 %v430, 1.442695
  %v432 = vpow.pop %v431
  %v433 = vadd.f32 %v432, 1.0
  %v434 = vrcp.pop %v433
  %v435 = vmul.f32 1.0, %v434
  %v436 = vtanh.pop %v429
  %v437 = vmul.f32 %v435, %v352
  %439 = vrot.lane.b32.xlu0 %v436, 32
  %v440 = vpop.permute.xlu0 %439
  %v442 = vmul.f32 %v435, %v440
  %444 = vrot.lane.b32.xlu0 %v442, 32
  %v445 = vpop.permute.xlu0 %444
  %v447 = vadd.f32 %v437, %v445
  %v448 = vtanh.pop %v447
  %450 = vrot.lane.b32.xlu0 %v448, 32
  %v451 = vpop.permute.xlu0 %450
  %v453 = vmul.f32 %v435, %v451
  %v454 = vsel %vm226, 1, 0
  %455 = vset.pattern.permute.xlu0 0
  %456 = vperm.xlu0 %455, %v454
  %v457 = vpop.permute.xlu0 %456
  %vm458 = vcmp.eq.s32.totalorder %v457, 1
  %v459 = vsel %vm458, %v453, %v351
  %v460 = vsel %vm458, %v447, %v352
  %v461 = vld [vmem:[#allocation2 + $0x20] sm:$0xff]
  %463 = vrot.lane.b32.xlu0 %v459, 64
  %v464 = vpop.permute.xlu0 %463
  %v465 = vsel %vm240, %v464, 0
  %467 = vmatprep.subr.mxu0 0.0
  %468 = vmatpush1.msra.mxu0 0.0
  %469 = vmatprep.subr.mxu0 0.0
  %470 = vmatpush1.msra.mxu0 0.0
  %471 = vmatprep.subr.mxu0 0.0
  %472 = vmatpush1.msra.mxu0 0.0
  %473 = vmatprep.subr.mxu0 0.0
  %474 = vmatpush1.msra.mxu0 0.0
  %475 = vmatprep.subr.mxu0 0.0
  %476 = vmatpush1.msra.mxu0 0.0
  %477 = vmatprep.subr.mxu0 0.0
  %478 = vmatpush1.msra.mxu0 0.0
  %479 = vmatprep.subr.mxu0 0.0
  %480 = vmatpush1.msra.mxu0 0.0
  %481 = vmatprep.subr.mxu0 0.0
  %482 = vmatpush1.msra.mxu0 0.0
  %483 = vmatprep.subr.mxu0 0.0
  %484 = vmatpush1.msra.mxu0 0.0
  %485 = vmatprep.subr.mxu0 0.0
  %486 = vmatpush1.msra.mxu0 0.0
  %487 = vmatprep.subr.mxu0 0.0
  %488 = vmatpush1.msra.mxu0 0.0
  %489 = vmatprep.subr.mxu0 0.0
  %490 = vmatpush1.msra.mxu0 0.0
  %491 = vmatprep.subr.mxu0 0.0
  %492 = vmatpush1.msra.mxu0 %v238
  %493 = vmatprep.subr.mxu0 0.0
  %494 = vmatpush1.msra.mxu0 %v237
  %495 = vmatprep.subr.mxu0 0.0
  %496 = vmatpush1.msra.mxu0 %v236
  %497 = vmatprep.subr.mxu0 0.0
  %498 = vmatpush1.msra.mxu0 %v235
  %499 = vmatprep.subr.mxu0 0.0
  %500 = vmatpush2.msra.mxu0 0.0
  %501 = vmatprep.subr.mxu0 0.0
  %502 = vmatpush2.msra.mxu0 0.0
  %503 = vmatprep.subr.mxu0 0.0
  %504 = vmatpush2.msra.mxu0 0.0
  %505 = vmatprep.subr.mxu0 0.0
  %506 = vmatpush2.msra.mxu0 0.0
  %507 = vmatprep.subr.mxu0 0.0
  %508 = vmatpush2.msra.mxu0 0.0
  %509 = vmatprep.subr.mxu0 0.0
  %510 = vmatpush2.msra.mxu0 0.0
  %511 = vmatprep.subr.mxu0 0.0
  %512 = vmatpush2.msra.mxu0 0.0
  %513 = vmatprep.subr.mxu0 0.0
  %514 = vmatpush2.msra.mxu0 0.0
  %515 = vmatprep.subr.mxu0 0.0
  %516 = vmatpush2.msra.mxu0 0.0
  %517 = vmatprep.subr.mxu0 0.0
  %518 = vmatpush2.msra.mxu0 0.0
  %519 = vmatprep.subr.mxu0 0.0
  %520 = vmatpush2.msra.mxu0 0.0
  %521 = vmatprep.subr.mxu0 0.0
  %522 = vmatpush2.msra.mxu0 0.0
  %523 = vmatprep.subr.mxu0 0.0
  %524 = vmatpush2.msra.mxu0 0.0
  %525 = vmatprep.subr.mxu0 0.0
  %526 = vmatpush2.msra.mxu0 0.0
  %527 = vmatprep.subr.mxu0 0.0
  %528 = vmatpush2.msra.mxu0 0.0
  %529 = vmatprep.subr.mxu0 0.0
  %530 = vmatpush2.msra.mxu0 0.0
  %531 = vmatprep.mubr.f32.mxu0 0.0
  %532 = vmatmul.mubr.f32.gmra.mxu0 %v465
  %v533 = vpop.f32.mrf.mxu0
  %v534 = vadd.f32 0.0, %v533
  %v535 = vpop.f32.mrf.mxu0
  %536 = vdwg.mxu0
  %v537 = vadd.f32 %v461, %v534
  %v538 = vxor.u32 %v537, 2147483648
  %v539 = vmul.f32 %v538, 1.442695
  %v540 = vpow.pop %v539
  %v541 = vadd.f32 %v540, 1.0
  %v542 = vrcp.pop %v541
  %v543 = vmul.f32 1.0, %v542
  %v544 = vtanh.pop %v537
  %v545 = vmul.f32 %v543, %v460
  %547 = vrot.lane.b32.xlu0 %v544, 32
  %v548 = vpop.permute.xlu0 %547
  %v550 = vmul.f32 %v543, %v548
  %552 = vrot.lane.b32.xlu0 %v550, 32
  %v553 = vpop.permute.xlu0 %552
  %v555 = vadd.f32 %v545, %v553
  %v556 = vtanh.pop %v555
  %558 = vrot.lane.b32.xlu0 %v556, 32
  %v559 = vpop.permute.xlu0 %558
  %v561 = vmul.f32 %v543, %v559
  %v562 = vsel %vm227, 1, 0
  %563 = vset.pattern.permute.xlu0 0
  %564 = vperm.xlu0 %563, %v562
  %v565 = vpop.permute.xlu0 %564
  %vm566 = vcmp.eq.s32.totalorder %v565, 1
  %v567 = vsel %vm566, %v561, %v459
  %v568 = vsel %vm566, %v555, %v460
  %v569 = vld [vmem:[#allocation2 + $0x30] sm:$0xff]
  %571 = vrot.lane.b32.xlu0 %v567, 64
  %v572 = vpop.permute.xlu0 %571
  %v573 = vsel %vm240, %v572, 0
  %575 = vmatprep.subr.mxu0 0.0
  %576 = vmatpush1.msra.mxu0 0.0
  %577 = vmatprep.subr.mxu0 0.0
  %578 = vmatpush1.msra.mxu0 0.0
  %579 = vmatprep.subr.mxu0 0.0
  %580 = vmatpush1.msra.mxu0 0.0
  %581 = vmatprep.subr.mxu0 0.0
  %582 = vmatpush1.msra.mxu0 0.0
  %583 = vmatprep.subr.mxu0 0.0
  %584 = vmatpush1.msra.mxu0 0.0
  %585 = vmatprep.subr.mxu0 0.0
  %586 = vmatpush1.msra.mxu0 0.0
  %587 = vmatprep.subr.mxu0 0.0
  %588 = vmatpush1.msra.mxu0 0.0
  %589 = vmatprep.subr.mxu0 0.0
  %590 = vmatpush1.msra.mxu0 0.0
  %591 = vmatprep.subr.mxu0 0.0
  %592 = vmatpush1.msra.mxu0 0.0
  %593 = vmatprep.subr.mxu0 0.0
  %594 = vmatpush1.msra.mxu0 0.0
  %595 = vmatprep.subr.mxu0 0.0
  %596 = vmatpush1.msra.mxu0 0.0
  %597 = vmatprep.subr.mxu0 0.0
  %598 = vmatpush1.msra.mxu0 0.0
  %599 = vmatprep.subr.mxu0 0.0
  %600 = vmatpush1.msra.mxu0 %v238
  %601 = vmatprep.subr.mxu0 0.0
  %602 = vmatpush1.msra.mxu0 %v237
  %603 = vmatprep.subr.mxu0 0.0
  %604 = vmatpush1.msra.mxu0 %v236
  %605 = vmatprep.subr.mxu0 0.0
  %606 = vmatpush1.msra.mxu0 %v235
  %607 = vmatprep.subr.mxu0 0.0
  %608 = vmatpush2.msra.mxu0 0.0
  %609 = vmatprep.subr.mxu0 0.0
  %610 = vmatpush2.msra.mxu0 0.0
  %611 = vmatprep.subr.mxu0 0.0
  %612 = vmatpush2.msra.mxu0 0.0
  %613 = vmatprep.subr.mxu0 0.0
  %614 = vmatpush2.msra.mxu0 0.0
  %615 = vmatprep.subr.mxu0 0.0
  %616 = vmatpush2.msra.mxu0 0.0
  %617 = vmatprep.subr.mxu0 0.0
  %618 = vmatpush2.msra.mxu0 0.0
  %619 = vmatprep.subr.mxu0 0.0
  %620 = vmatpush2.msra.mxu0 0.0
  %621 = vmatprep.subr.mxu0 0.0
  %622 = vmatpush2.msra.mxu0 0.0
  %623 = vmatprep.subr.mxu0 0.0
  %624 = vmatpush2.msra.mxu0 0.0
  %625 = vmatprep.subr.mxu0 0.0
  %626 = vmatpush2.msra.mxu0 0.0
  %627 = vmatprep.subr.mxu0 0.0
  %628 = vmatpush2.msra.mxu0 0.0
  %629 = vmatprep.subr.mxu0 0.0
  %630 = vmatpush2.msra.mxu0 0.0
  %631 = vmatprep.subr.mxu0 0.0
  %632 = vmatpush2.msra.mxu0 0.0
  %633 = vmatprep.subr.mxu0 0.0
  %634 = vmatpush2.msra.mxu0 0.0
  %635 = vmatprep.subr.mxu0 0.0
  %636 = vmatpush2.msra.mxu0 0.0
  %637 = vmatprep.subr.mxu0 0.0
  %638 = vmatpush2.msra.mxu0 0.0
  %639 = vmatprep.mubr.f32.mxu0 0.0
  %640 = vmatmul.mubr.f32.gmra.mxu0 %v573
  %v641 = vpop.f32.mrf.mxu0
  %v642 = vadd.f32 0.0, %v641
  %v643 = vpop.f32.mrf.mxu0
  %644 = vdwg.mxu0
  %v645 = vadd.f32 %v569, %v642
  %v646 = vxor.u32 %v645, 2147483648
  %v647 = vmul.f32 %v646, 1.442695
  %v648 = vpow.pop %v647
  %v649 = vadd.f32 %v648, 1.0
  %v650 = vrcp.pop %v649
  %v651 = vmul.f32 1.0, %v650
  %v652 = vtanh.pop %v645
  %v653 = vmul.f32 %v651, %v568
  %655 = vrot.lane.b32.xlu0 %v652, 32
  %v656 = vpop.permute.xlu0 %655
  %v658 = vmul.f32 %v651, %v656
  %660 = vrot.lane.b32.xlu0 %v658, 32
  %v661 = vpop.permute.xlu0 %660
  %v663 = vadd.f32 %v653, %v661
  %v664 = vtanh.pop %v663
  %666 = vrot.lane.b32.xlu0 %v664, 32
  %v667 = vpop.permute.xlu0 %666
  %v669 = vmul.f32 %v651, %v667
  %v670 = vsel %vm228, 1, 0
  %671 = vset.pattern.permute.xlu0 0
  %672 = vperm.xlu0 %671, %v670
  %v673 = vpop.permute.xlu0 %672
  %vm674 = vcmp.eq.s32.totalorder %v673, 1
  %v675 = vsel %vm674, %v669, %v567
  %v676 = vsel %vm674, %v663, %v568
  %v677 = vld [vmem:[#allocation2 + $0x40] sm:$0xff]
  %679 = vrot.lane.b32.xlu0 %v675, 64
  %v680 = vpop.permute.xlu0 %679
  %v681 = vsel %vm240, %v680, 0
  %683 = vmatprep.subr.mxu0 0.0
  %684 = vmatpush1.msra.mxu0 0.0
  %685 = vmatprep.subr.mxu0 0.0
  %686 = vmatpush1.msra.mxu0 0.0
  %687 = vmatprep.subr.mxu0 0.0
  %688 = vmatpush1.msra.mxu0 0.0
  %689 = vmatprep.subr.mxu0 0.0
  %690 = vmatpush1.msra.mxu0 0.0
  %691 = vmatprep.subr.mxu0 0.0
  %692 = vmatpush1.msra.mxu0 0.0
  %693 = vmatprep.subr.mxu0 0.0
  %694 = vmatpush1.msra.mxu0 0.0
  %695 = vmatprep.subr.mxu0 0.0
  %696 = vmatpush1.msra.mxu0 0.0
  %697 = vmatprep.subr.mxu0 0.0
  %698 = vmatpush1.msra.mxu0 0.0
  %699 = vmatprep.subr.mxu0 0.0
  %700 = vmatpush1.msra.mxu0 0.0
  %701 = vmatprep.subr.mxu0 0.0
  %702 = vmatpush1.msra.mxu0 0.0
  %703 = vmatprep.subr.mxu0 0.0
  %704 = vmatpush1.msra.mxu0 0.0
  %705 = vmatprep.subr.mxu0 0.0
  %706 = vmatpush1.msra.mxu0 0.0
  %707 = vmatprep.subr.mxu0 0.0
  %708 = vmatpush1.msra.mxu0 %v238
  %709 = vmatprep.subr.mxu0 0.0
  %710 = vmatpush1.msra.mxu0 %v237
  %711 = vmatprep.subr.mxu0 0.0
  %712 = vmatpush1.msra.mxu0 %v236
  %713 = vmatprep.subr.mxu0 0.0
  %714 = vmatpush1.msra.mxu0 %v235
  %715 = vmatprep.subr.mxu0 0.0
  %716 = vmatpush2.msra.mxu0 0.0
  %717 = vmatprep.subr.mxu0 0.0
  %718 = vmatpush2.msra.mxu0 0.0
  %719 = vmatprep.subr.mxu0 0.0
  %720 = vmatpush2.msra.mxu0 0.0
  %721 = vmatprep.subr.mxu0 0.0
  %722 = vmatpush2.msra.mxu0 0.0
  %723 = vmatprep.subr.mxu0 0.0
  %724 = vmatpush2.msra.mxu0 0.0
  %725 = vmatprep.subr.mxu0 0.0
  %726 = vmatpush2.msra.mxu0 0.0
  %727 = vmatprep.subr.mxu0 0.0
  %728 = vmatpush2.msra.mxu0 0.0
  %729 = vmatprep.subr.mxu0 0.0
  %730 = vmatpush2.msra.mxu0 0.0
  %731 = vmatprep.subr.mxu0 0.0
  %732 = vmatpush2.msra.mxu0 0.0
  %733 = vmatprep.subr.mxu0 0.0
  %734 = vmatpush2.msra.mxu0 0.0
  %735 = vmatprep.subr.mxu0 0.0
  %736 = vmatpush2.msra.mxu0 0.0
  %737 = vmatprep.subr.mxu0 0.0
  %738 = vmatpush2.msra.mxu0 0.0
  %739 = vmatprep.subr.mxu0 0.0
  %740 = vmatpush2.msra.mxu0 0.0
  %741 = vmatprep.subr.mxu0 0.0
  %742 = vmatpush2.msra.mxu0 0.0
  %743 = vmatprep.subr.mxu0 0.0
  %744 = vmatpush2.msra.mxu0 0.0
  %745 = vmatprep.subr.mxu0 0.0
  %746 = vmatpush2.msra.mxu0 0.0
  %747 = vmatprep.mubr.f32.mxu0 0.0
  %748 = vmatmul.mubr.f32.gmra.mxu0 %v681
  %v749 = vpop.f32.mrf.mxu0
  %v750 = vadd.f32 0.0, %v749
  %v751 = vpop.f32.mrf.mxu0
  %752 = vdwg.mxu0
  %v753 = vadd.f32 %v677, %v750
  %v754 = vxor.u32 %v753, 2147483648
  %v755 = vmul.f32 %v754, 1.442695
  %v756 = vpow.pop %v755
  %v757 = vadd.f32 %v756, 1.0
  %v758 = vrcp.pop %v757
  %v759 = vmul.f32 1.0, %v758
  %v760 = vtanh.pop %v753
  %v761 = vmul.f32 %v759, %v676
  %763 = vrot.lane.b32.xlu0 %v760, 32
  %v764 = vpop.permute.xlu0 %763
  %v766 = vmul.f32 %v759, %v764
  %768 = vrot.lane.b32.xlu0 %v766, 32
  %v769 = vpop.permute.xlu0 %768
  %v771 = vadd.f32 %v761, %v769
  %v772 = vtanh.pop %v771
  %774 = vrot.lane.b32.xlu0 %v772, 32
  %v775 = vpop.permute.xlu0 %774
  %v777 = vmul.f32 %v759, %v775
  %v778 = vsel %vm229, 1, 0
  %779 = vset.pattern.permute.xlu0 0
  %780 = vperm.xlu0 %779, %v778
  %v781 = vpop.permute.xlu0 %780
  %vm782 = vcmp.eq.s32.totalorder %v781, 1
  %v783 = vsel %vm782, %v777, %v675
  %v784 = vsel %vm782, %v771, %v676
  %v785 = vld [vmem:[#allocation2 + $0x50] sm:$0xff]
  %787 = vrot.lane.b32.xlu0 %v783, 64
  %v788 = vpop.permute.xlu0 %787
  %v789 = vsel %vm240, %v788, 0
  %791 = vmatprep.subr.mxu0 0.0
  %792 = vmatpush1.msra.mxu0 0.0
  %793 = vmatprep.subr.mxu0 0.0
  %794 = vmatpush1.msra.mxu0 0.0
  %795 = vmatprep.subr.mxu0 0.0
  %796 = vmatpush1.msra.mxu0 0.0
  %797 = vmatprep.subr.mxu0 0.0
  %798 = vmatpush1.msra.mxu0 0.0
  %799 = vmatprep.subr.mxu0 0.0
  %800 = vmatpush1.msra.mxu0 0.0
  %801 = vmatprep.subr.mxu0 0.0
  %802 = vmatpush1.msra.mxu0 0.0
  %803 = vmatprep.subr.mxu0 0.0
  %804 = vmatpush1.msra.mxu0 0.0
  %805 = vmatprep.subr.mxu0 0.0
  %806 = vmatpush1.msra.mxu0 0.0
  %807 = vmatprep.subr.mxu0 0.0
  %808 = vmatpush1.msra.mxu0 0.0
  %809 = vmatprep.subr.mxu0 0.0
  %810 = vmatpush1.msra.mxu0 0.0
  %811 = vmatprep.subr.mxu0 0.0
  %812 = vmatpush1.msra.mxu0 0.0
  %813 = vmatprep.subr.mxu0 0.0
  %814 = vmatpush1.msra.mxu0 0.0
  %815 = vmatprep.subr.mxu0 0.0
  %816 = vmatpush1.msra.mxu0 %v238
  %817 = vmatprep.subr.mxu0 0.0
  %818 = vmatpush1.msra.mxu0 %v237
  %819 = vmatprep.subr.mxu0 0.0
  %820 = vmatpush1.msra.mxu0 %v236
  %821 = vmatprep.subr.mxu0 0.0
  %822 = vmatpush1.msra.mxu0 %v235
  %823 = vmatprep.subr.mxu0 0.0
  %824 = vmatpush2.msra.mxu0 0.0
  %825 = vmatprep.subr.mxu0 0.0
  %826 = vmatpush2.msra.mxu0 0.0
  %827 = vmatprep.subr.mxu0 0.0
  %828 = vmatpush2.msra.mxu0 0.0
  %829 = vmatprep.subr.mxu0 0.0
  %830 = vmatpush2.msra.mxu0 0.0
  %831 = vmatprep.subr.mxu0 0.0
  %832 = vmatpush2.msra.mxu0 0.0
  %833 = vmatprep.subr.mxu0 0.0
  %834 = vmatpush2.msra.mxu0 0.0
  %835 = vmatprep.subr.mxu0 0.0
  %836 = vmatpush2.msra.mxu0 0.0
  %837 = vmatprep.subr.mxu0 0.0
  %838 = vmatpush2.msra.mxu0 0.0
  %839 = vmatprep.subr.mxu0 0.0
  %840 = vmatpush2.msra.mxu0 0.0
  %841 = vmatprep.subr.mxu0 0.0
  %842 = vmatpush2.msra.mxu0 0.0
  %843 = vmatprep.subr.mxu0 0.0
  %844 = vmatpush2.msra.mxu0 0.0
  %845 = vmatprep.subr.mxu0 0.0
  %846 = vmatpush2.msra.mxu0 0.0
  %847 = vmatprep.subr.mxu0 0.0
  %848 = vmatpush2.msra.mxu0 0.0
  %849 = vmatprep.subr.mxu0 0.0
  %850 = vmatpush2.msra.mxu0 0.0
  %851 = vmatprep.subr.mxu0 0.0
  %852 = vmatpush2.msra.mxu0 0.0
  %853 = vmatprep.subr.mxu0 0.0
  %854 = vmatpush2.msra.mxu0 0.0
  %855 = vmatprep.mubr.f32.mxu0 0.0
  %856 = vmatmul.mubr.f32.gmra.mxu0 %v789
  %v857 = vpop.f32.mrf.mxu0
  %v858 = vadd.f32 0.0, %v857
  %v859 = vpop.f32.mrf.mxu0
  %860 = vdwg.mxu0
  %v861 = vadd.f32 %v785, %v858
  %v862 = vxor.u32 %v861, 2147483648
  %v863 = vmul.f32 %v862, 1.442695
  %v864 = vpow.pop %v863
  %v865 = vadd.f32 %v864, 1.0
  %v866 = vrcp.pop %v865
  %v867 = vmul.f32 1.0, %v866
  %v868 = vtanh.pop %v861
  %v869 = vmul.f32 %v867, %v784
  %871 = vrot.lane.b32.xlu0 %v868, 32
  %v872 = vpop.permute.xlu0 %871
  %v874 = vmul.f32 %v867, %v872
  %876 = vrot.lane.b32.xlu0 %v874, 32
  %v877 = vpop.permute.xlu0 %876
  %v879 = vadd.f32 %v869, %v877
  %v880 = vtanh.pop %v879
  %882 = vrot.lane.b32.xlu0 %v880, 32
  %v883 = vpop.permute.xlu0 %882
  %v885 = vmul.f32 %v867, %v883
  %v886 = vsel %vm230, 1, 0
  %887 = vset.pattern.permute.xlu0 0
  %888 = vperm.xlu0 %887, %v886
  %v889 = vpop.permute.xlu0 %888
  %vm890 = vcmp.eq.s32.totalorder %v889, 1
  %v891 = vsel %vm890, %v885, %v783
  %v892 = vsel %vm890, %v879, %v784
  %v893 = vld [vmem:[#allocation2 + $0x60] sm:$0xff]
  %895 = vrot.lane.b32.xlu0 %v891, 64
  %v896 = vpop.permute.xlu0 %895
  %v897 = vsel %vm240, %v896, 0
  %899 = vmatprep.subr.mxu0 0.0
  %900 = vmatpush1.msra.mxu0 0.0
  %901 = vmatprep.subr.mxu0 0.0
  %902 = vmatpush1.msra.mxu0 0.0
  %903 = vmatprep.subr.mxu0 0.0
  %904 = vmatpush1.msra.mxu0 0.0
  %905 = vmatprep.subr.mxu0 0.0
  %906 = vmatpush1.msra.mxu0 0.0
  %907 = vmatprep.subr.mxu0 0.0
  %908 = vmatpush1.msra.mxu0 0.0
  %909 = vmatprep.subr.mxu0 0.0
  %910 = vmatpush1.msra.mxu0 0.0
  %911 = vmatprep.subr.mxu0 0.0
  %912 = vmatpush1.msra.mxu0 0.0
  %913 = vmatprep.subr.mxu0 0.0
  %914 = vmatpush1.msra.mxu0 0.0
  %915 = vmatprep.subr.mxu0 0.0
  %916 = vmatpush1.msra.mxu0 0.0
  %917 = vmatprep.subr.mxu0 0.0
  %918 = vmatpush1.msra.mxu0 0.0
  %919 = vmatprep.subr.mxu0 0.0
  %920 = vmatpush1.msra.mxu0 0.0
  %921 = vmatprep.subr.mxu0 0.0
  %922 = vmatpush1.msra.mxu0 0.0
  %923 = vmatprep.subr.mxu0 0.0
  %924 = vmatpush1.msra.mxu0 %v238
  %925 = vmatprep.subr.mxu0 0.0
  %926 = vmatpush1.msra.mxu0 %v237
  %927 = vmatprep.subr.mxu0 0.0
  %928 = vmatpush1.msra.mxu0 %v236
  %929 = vmatprep.subr.mxu0 0.0
  %930 = vmatpush1.msra.mxu0 %v235
  %931 = vmatprep.subr.mxu0 0.0
  %932 = vmatpush2.msra.mxu0 0.0
  %933 = vmatprep.subr.mxu0 0.0
  %934 = vmatpush2.msra.mxu0 0.0
  %935 = vmatprep.subr.mxu0 0.0
  %936 = vmatpush2.msra.mxu0 0.0
  %937 = vmatprep.subr.mxu0 0.0
  %938 = vmatpush2.msra.mxu0 0.0
  %939 = vmatprep.subr.mxu0 0.0
  %940 = vmatpush2.msra.mxu0 0.0
  %941 = vmatprep.subr.mxu0 0.0
  %942 = vmatpush2.msra.mxu0 0.0
  %943 = vmatprep.subr.mxu0 0.0
  %944 = vmatpush2.msra.mxu0 0.0
  %945 = vmatprep.subr.mxu0 0.0
  %946 = vmatpush2.msra.mxu0 0.0
  %947 = vmatprep.subr.mxu0 0.0
  %948 = vmatpush2.msra.mxu0 0.0
  %949 = vmatprep.subr.mxu0 0.0
  %950 = vmatpush2.msra.mxu0 0.0
  %951 = vmatprep.subr.mxu0 0.0
  %952 = vmatpush2.msra.mxu0 0.0
  %953 = vmatprep.subr.mxu0 0.0
  %954 = vmatpush2.msra.mxu0 0.0
  %955 = vmatprep.subr.mxu0 0.0
  %956 = vmatpush2.msra.mxu0 0.0
  %957 = vmatprep.subr.mxu0 0.0
  %958 = vmatpush2.msra.mxu0 0.0
  %959 = vmatprep.subr.mxu0 0.0
  %960 = vmatpush2.msra.mxu0 0.0
  %961 = vmatprep.subr.mxu0 0.0
  %962 = vmatpush2.msra.mxu0 0.0
  %963 = vmatprep.mubr.f32.mxu0 0.0
  %964 = vmatmul.mubr.f32.gmra.mxu0 %v897
  %v965 = vpop.f32.mrf.mxu0
  %v966 = vadd.f32 0.0, %v965
  %v967 = vpop.f32.mrf.mxu0
  %968 = vdwg.mxu0
  %v969 = vadd.f32 %v893, %v966
  %v970 = vxor.u32 %v969, 2147483648
  %v971 = vmul.f32 %v970, 1.442695
  %v972 = vpow.pop %v971
  %v973 = vadd.f32 %v972, 1.0
  %v974 = vrcp.pop %v973
  %v975 = vmul.f32 1.0, %v974
  %v976 = vtanh.pop %v969
  %v977 = vmul.f32 %v975, %v892
  %979 = vrot.lane.b32.xlu0 %v976, 32
  %v980 = vpop.permute.xlu0 %979
  %v982 = vmul.f32 %v975, %v980
  %984 = vrot.lane.b32.xlu0 %v982, 32
  %v985 = vpop.permute.xlu0 %984
  %v987 = vadd.f32 %v977, %v985
  %v988 = vtanh.pop %v987
  %990 = vrot.lane.b32.xlu0 %v988, 32
  %v991 = vpop.permute.xlu0 %990
  %v993 = vmul.f32 %v975, %v991
  %v994 = vsel %vm231, 1, 0
  %995 = vset.pattern.permute.xlu0 0
  %996 = vperm.xlu0 %995, %v994
  %v997 = vpop.permute.xlu0 %996
  %vm998 = vcmp.eq.s32.totalorder %v997, 1
  %v999 = vsel %vm998, %v993, %v891
  %v1000 = vsel %vm998, %v987, %v892
  %v1001 = vld [vmem:[#allocation2 + $0x70] sm:$0xff]
  %1003 = vrot.lane.b32.xlu0 %v999, 64
  %v1004 = vpop.permute.xlu0 %1003
  %v1005 = vsel %vm240, %v1004, 0
  %1007 = vmatprep.subr.mxu0 0.0
  %1008 = vmatpush1.msra.mxu0 0.0
  %1009 = vmatprep.subr.mxu0 0.0
  %1010 = vmatpush1.msra.mxu0 0.0
  %1011 = vmatprep.subr.mxu0 0.0
  %1012 = vmatpush1.msra.mxu0 0.0
  %1013 = vmatprep.subr.mxu0 0.0
  %1014 = vmatpush1.msra.mxu0 0.0
  %1015 = vmatprep.subr.mxu0 0.0
  %1016 = vmatpush1.msra.mxu0 0.0
  %1017 = vmatprep.subr.mxu0 0.0
  %1018 = vmatpush1.msra.mxu0 0.0
  %1019 = vmatprep.subr.mxu0 0.0
  %1020 = vmatpush1.msra.mxu0 0.0
  %1021 = vmatprep.subr.mxu0 0.0
  %1022 = vmatpush1.msra.mxu0 0.0
  %1023 = vmatprep.subr.mxu0 0.0
  %1024 = vmatpush1.msra.mxu0 0.0
  %1025 = vmatprep.subr.mxu0 0.0
  %1026 = vmatpush1.msra.mxu0 0.0
  %1027 = vmatprep.subr.mxu0 0.0
  %1028 = vmatpush1.msra.mxu0 0.0
  %1029 = vmatprep.subr.mxu0 0.0
  %1030 = vmatpush1.msra.mxu0 0.0
  %1031 = vmatprep.subr.mxu0 0.0
  %1032 = vmatpush1.msra.mxu0 %v238
  %1033 = vmatprep.subr.mxu0 0.0
  %1034 = vmatpush1.msra.mxu0 %v237
  %1035 = vmatprep.subr.mxu0 0.0
  %1036 = vmatpush1.msra.mxu0 %v236
  %1037 = vmatprep.subr.mxu0 0.0
  %1038 = vmatpush1.msra.mxu0 %v235
  %1039 = vmatprep.subr.mxu0 0.0
  %1040 = vmatpush2.msra.mxu0 0.0
  %1041 = vmatprep.subr.mxu0 0.0
  %1042 = vmatpush2.msra.mxu0 0.0
  %1043 = vmatprep.subr.mxu0 0.0
  %1044 = vmatpush2.msra.mxu0 0.0
  %1045 = vmatprep.subr.mxu0 0.0
  %1046 = vmatpush2.msra.mxu0 0.0
  %1047 = vmatprep.subr.mxu0 0.0
  %1048 = vmatpush2.msra.mxu0 0.0
  %1049 = vmatprep.subr.mxu0 0.0
  %1050 = vmatpush2.msra.mxu0 0.0
  %1051 = vmatprep.subr.mxu0 0.0
  %1052 = vmatpush2.msra.mxu0 0.0
  %1053 = vmatprep.subr.mxu0 0.0
  %1054 = vmatpush2.msra.mxu0 0.0
  %1055 = vmatprep.subr.mxu0 0.0
  %1056 = vmatpush2.msra.mxu0 0.0
  %1057 = vmatprep.subr.mxu0 0.0
  %1058 = vmatpush2.msra.mxu0 0.0
  %1059 = vmatprep.subr.mxu0 0.0
  %1060 = vmatpush2.msra.mxu0 0.0
  %1061 = vmatprep.subr.mxu0 0.0
  %1062 = vmatpush2.msra.mxu0 0.0
  %1063 = vmatprep.subr.mxu0 0.0
  %1064 = vmatpush2.msra.mxu0 0.0
  %1065 = vmatprep.subr.mxu0 0.0
  %1066 = vmatpush2.msra.mxu0 0.0
  %1067 = vmatprep.subr.mxu0 0.0
  %1068 = vmatpush2.msra.mxu0 0.0
  %1069 = vmatprep.subr.mxu0 0.0
  %1070 = vmatpush2.msra.mxu0 0.0
  %1071 = vmatprep.mubr.f32.mxu0 0.0
  %1072 = vmatmul.mubr.f32.gmra.mxu0 %v1005
  %v1073 = vpop.f32.mrf.mxu0
  %v1074 = vadd.f32 0.0, %v1073
  %v1075 = vpop.f32.mrf.mxu0
  %1076 = vdwg.mxu0
  %v1077 = vadd.f32 %v1001, %v1074
  %v1078 = vxor.u32 %v1077, 2147483648
  %v1079 = vmul.f32 %v1078, 1.442695
  %v1080 = vpow.pop %v1079
  %v1081 = vadd.f32 %v1080, 1.0
  %v1082 = vrcp.pop %v1081
  %v1083 = vmul.f32 1.0, %v1082
  %v1084 = vtanh.pop %v1077
  %v1085 = vmul.f32 %v1083, %v1000
  %1087 = vrot.lane.b32.xlu0 %v1084, 32
  %v1088 = vpop.permute.xlu0 %1087
  %v1090 = vmul.f32 %v1083, %v1088
  %1092 = vrot.lane.b32.xlu0 %v1090, 32
  %v1093 = vpop.permute.xlu0 %1092
  %v1095 = vadd.f32 %v1085, %v1093
  %v1096 = vtanh.pop %v1095
  %1098 = vrot.lane.b32.xlu0 %v1096, 32
  %v1099 = vpop.permute.xlu0 %1098
  %v1101 = vmul.f32 %v1083, %v1099
  %v1102 = vsel %vm232, 1, 0
  %1103 = vset.pattern.permute.xlu0 0
  %1104 = vperm.xlu0 %1103, %v1102
  %v1105 = vpop.permute.xlu0 %1104
  %vm1106 = vcmp.eq.s32.totalorder %v1105, 1
  %v1107 = vsel %vm1106, %v1101, %v999
  %v1108 = vsel %vm1106, %v1095, %v1000
  %1110 = vrot.lane.b32.xlu0 %v1107, 64
  %v1111 = vpop.permute.xlu0 %1110
  %1113 = vst.msk [vmem:[%s21] sm:$0xff] %vm240, %v1111
  %1115 = vrot.lane.b32.xlu0 %v1108, 96
  %v1116 = vpop.permute.xlu0 %1115
  %1118 = vst.msk [vmem:[%s22] sm:$0xff] %vm240, %v1116
  %v1119 = vld [vmem:[%s9] sm:$0xff]
  %v1120 = vld [vmem:[%s9 + $0x8] sm:$0xff]
  %v1121 = vld [vmem:[%s9 + $0x10] sm:$0xff]
  %v1122 = vld [vmem:[%s9 + $0x18] sm:$0xff]
  %v1123 = vld [vmem:[%s10] sm:$0x1]
  %v1125 = vlaneseq
  %v1126 = vshrl.u32 %v1125, 7
  %v1127 = vsub.s32 0, %v1126
  %v1128 = vrot.slane %v1123, %v1127
  %v1130 = vsel %vm240, %v1111, 0
  %1132 = vmatprep.subr.mxu0 0.0
  %1133 = vmatpush1.msra.mxu0 0.0
  %1134 = vmatprep.subr.mxu0 0.0
  %1135 = vmatpush1.msra.mxu0 0.0
  %1136 = vmatprep.subr.mxu0 0.0
  %1137 = vmatpush1.msra.mxu0 0.0
  %1138 = vmatprep.subr.mxu0 0.0
  %1139 = vmatpush1.msra.mxu0 0.0
  %1140 = vmatprep.subr.mxu0 0.0
  %1141 = vmatpush1.msra.mxu0 0.0
  %1142 = vmatprep.subr.mxu0 0.0
  %1143 = vmatpush1.msra.mxu0 0.0
  %1144 = vmatprep.subr.mxu0 0.0
  %1145 = vmatpush1.msra.mxu0 0.0
  %1146 = vmatprep.subr.mxu0 0.0
  %1147 = vmatpush1.msra.mxu0 0.0
  %1148 = vmatprep.subr.mxu0 0.0
  %1149 = vmatpush1.msra.mxu0 0.0
  %1150 = vmatprep.subr.mxu0 0.0
  %1151 = vmatpush1.msra.mxu0 0.0
  %1152 = vmatprep.subr.mxu0 0.0
  %1153 = vmatpush1.msra.mxu0 0.0
  %1154 = vmatprep.subr.mxu0 0.0
  %1155 = vmatpush1.msra.mxu0 0.0
  %1156 = vmatprep.subr.mxu0 0.0
  %1157 = vmatpush1.msra.mxu0 %v1122
  %1158 = vmatprep.subr.mxu0 0.0
  %1159 = vmatpush1.msra.mxu0 %v1121
  %1160 = vmatprep.subr.mxu0 0.0
  %1161 = vmatpush1.msra.mxu0 %v1120
  %1162 = vmatprep.subr.mxu0 0.0
  %1163 = vmatpush1.msra.mxu0 %v1119
  %1164 = vmatprep.subr.mxu0 0.0
  %1165 = vmatpush2.msra.mxu0 0.0
  %1166 = vmatprep.subr.mxu0 0.0
  %1167 = vmatpush2.msra.mxu0 0.0
  %1168 = vmatprep.subr.mxu0 0.0
  %1169 = vmatpush2.msra.mxu0 0.0
  %1170 = vmatprep.subr.mxu0 0.0
  %1171 = vmatpush2.msra.mxu0 0.0
  %1172 = vmatprep.subr.mxu0 0.0
  %1173 = vmatpush2.msra.mxu0 0.0
  %1174 = vmatprep.subr.mxu0 0.0
  %1175 = vmatpush2.msra.mxu0 0.0
  %1176 = vmatprep.subr.mxu0 0.0
  %1177 = vmatpush2.msra.mxu0 0.0
  %1178 = vmatprep.subr.mxu0 0.0
  %1179 = vmatpush2.msra.mxu0 0.0
  %1180 = vmatprep.subr.mxu0 0.0
  %1181 = vmatpush2.msra.mxu0 0.0
  %1182 = vmatprep.subr.mxu0 0.0
  %1183 = vmatpush2.msra.mxu0 0.0
  %1184 = vmatprep.subr.mxu0 0.0
  %1185 = vmatpush2.msra.mxu0 0.0
  %1186 = vmatprep.subr.mxu0 0.0
  %1187 = vmatpush2.msra.mxu0 0.0
  %1188 = vmatprep.subr.mxu0 0.0
  %1189 = vmatpush2.msra.mxu0 0.0
  %1190 = vmatprep.subr.mxu0 0.0
  %1191 = vmatpush2.msra.mxu0 0.0
  %1192 = vmatprep.subr.mxu0 0.0
  %1193 = vmatpush2.msra.mxu0 0.0
  %1194 = vmatprep.subr.mxu0 0.0
  %1195 = vmatpush2.msra.mxu0 0.0
  %1196 = vmatprep.mubr.f32.mxu0 0.0
  %1197 = vmatmul.mubr.f32.gmra.mxu0 %v1130
  %v1198 = vpop.f32.mrf.mxu0
  %v1199 = vadd.f32 %v1128, %v1198
  %v1200 = vpop.f32.mrf.mxu0
  %1201 = vdwg.mxu0
  %v1202 = vld [vmem:[%s11] sm:$0xff]
  %v1203 = vld [vmem:[%s11 + $0x8] sm:$0xff]
  %v1204 = vld [vmem:[%s11 + $0x10] sm:$0xff]
  %v1205 = vld [vmem:[%s11 + $0x18] sm:$0xff]
  %v1206 = vld [vmem:[%s12] sm:$0x1]
  %v1208 = vlaneseq
  %v1209 = vshrl.u32 %v1208, 7
  %v1210 = vsub.s32 0, %v1209
  %v1211 = vrot.slane %v1206, %v1210
  %1213 = vmatprep.subr.mxu0 0.0
  %1214 = vmatpush1.msra.mxu0 0.0
  %1215 = vmatprep.subr.mxu0 0.0
  %1216 = vmatpush1.msra.mxu0 0.0
  %1217 = vmatprep.subr.mxu0 0.0
  %1218 = vmatpush1.msra.mxu0 0.0
  %1219 = vmatprep.subr.mxu0 0.0
  %1220 = vmatpush1.msra.mxu0 0.0
  %1221 = vmatprep.subr.mxu0 0.0
  %1222 = vmatpush1.msra.mxu0 0.0
  %1223 = vmatprep.subr.mxu0 0.0
  %1224 = vmatpush1.msra.mxu0 0.0
  %1225 = vmatprep.subr.mxu0 0.0
  %1226 = vmatpush1.msra.mxu0 0.0
  %1227 = vmatprep.subr.mxu0 0.0
  %1228 = vmatpush1.msra.mxu0 0.0
  %1229 = vmatprep.subr.mxu0 0.0
  %1230 = vmatpush1.msra.mxu0 0.0
  %1231 = vmatprep.subr.mxu0 0.0
  %1232 = vmatpush1.msra.mxu0 0.0
  %1233 = vmatprep.subr.mxu0 0.0
  %1234 = vmatpush1.msra.mxu0 0.0
  %1235 = vmatprep.subr.mxu0 0.0
  %1236 = vmatpush1.msra.mxu0 0.0
  %1237 = vmatprep.subr.mxu0 0.0
  %1238 = vmatpush1.msra.mxu0 %v1205
  %1239 = vmatprep.subr.mxu0 0.0
  %1240 = vmatpush1.msra.mxu0 %v1204
  %1241 = vmatprep.subr.mxu0 0.0
  %1242 = vmatpush1.msra.mxu0 %v1203
  %1243 = vmatprep.subr.mxu0 0.0
  %1244 = vmatpush1.msra.mxu0 %v1202
  %1245 = vmatprep.subr.mxu0 0.0
  %1246 = vmatpush2.msra.mxu0 0.0
  %1247 = vmatprep.subr.mxu0 0.0
  %1248 = vmatpush2.msra.mxu0 0.0
  %1249 = vmatprep.subr.mxu0 0.0
  %1250 = vmatpush2.msra.mxu0 0.0
  %1251 = vmatprep.subr.mxu0 0.0
  %1252 = vmatpush2.msra.mxu0 0.0
  %1253 = vmatprep.subr.mxu0 0.0
  %1254 = vmatpush2.msra.mxu0 0.0
  %1255 = vmatprep.subr.mxu0 0.0
  %1256 = vmatpush2.msra.mxu0 0.0
  %1257 = vmatprep.subr.mxu0 0.0
  %1258 = vmatpush2.msra.mxu0 0.0
  %1259 = vmatprep.subr.mxu0 0.0
  %1260 = vmatpush2.msra.mxu0 0.0
  %1261 = vmatprep.subr.mxu0 0.0
  %1262 = vmatpush2.msra.mxu0 0.0
  %1263 = vmatprep.subr.mxu0 0.0
  %1264 = vmatpush2.msra.mxu0 0.0
  %1265 = vmatprep.subr.mxu0 0.0
  %1266 = vmatpush2.msra.mxu0 0.0
  %1267 = vmatprep.subr.mxu0 0.0
  %1268 = vmatpush2.msra.mxu0 0.0
  %1269 = vmatprep.subr.mxu0 0.0
  %1270 = vmatpush2.msra.mxu0 0.0
  %1271 = vmatprep.subr.mxu0 0.0
  %1272 = vmatpush2.msra.mxu0 0.0
  %1273 = vmatprep.subr.mxu0 0.0
  %1274 = vmatpush2.msra.mxu0 0.0
  %1275 = vmatprep.subr.mxu0 0.0
  %1276 = vmatpush2.msra.mxu0 0.0
  %1277 = vmatprep.mubr.f32.mxu0 0.0
  %1278 = vmatmul.mubr.f32.gmra.mxu0 %v1130
  %v1279 = vpop.f32.mrf.mxu0
  %v1280 = vadd.f32 %v1211, %v1279
  %v1281 = vpop.f32.mrf.mxu0
  %1282 = vdwg.mxu0
  %v1283 = vmul.f32 %v1280, 0.5
  %v1284 = vmul.f32 %v1283, 1.442695
  %v1285 = vpow.pop %v1284
  %v1286 = vld [vmem:[%s8] sm:$0xff]
  %v1287 = vmul.f32 %v1286, %v1285
  %v1288 = vadd.f32 %v1287, %v1199
  %v1289 = vld [vmem:[%s13] sm:$0xff]
  %v1290 = vld [vmem:[%s13 + $0x8] sm:$0xff]
  %v1291 = vld [vmem:[%s14] sm:$0x1]
  %v1293 = vlaneseq
  %v1294 = vshrl.u32 %v1293, 7
  %v1295 = vsub.s32 0, %v1294
  %v1296 = vrot.slane %v1291, %v1295
  %v1299 = vsel %vm115, %v1288, 0
  %1301 = vmatprep.subr.mxu0 0.0
  %1302 = vmatpush1.msra.mxu0 0.0
  %1303 = vmatprep.subr.mxu0 0.0
  %1304 = vmatpush1.msra.mxu0 0.0
  %1305 = vmatprep.subr.mxu0 0.0
  %1306 = vmatpush1.msra.mxu0 0.0
  %1307 = vmatprep.subr.mxu0 0.0
  %1308 = vmatpush1.msra.mxu0 0.0
  %1309 = vmatprep.subr.mxu0 0.0
  %1310 = vmatpush1.msra.mxu0 0.0
  %1311 = vmatprep.subr.mxu0 0.0
  %1312 = vmatpush1.msra.mxu0 0.0
  %1313 = vmatprep.subr.mxu0 0.0
  %1314 = vmatpush1.msra.mxu0 0.0
  %1315 = vmatprep.subr.mxu0 0.0
  %1316 = vmatpush1.msra.mxu0 0.0
  %1317 = vmatprep.subr.mxu0 0.0
  %1318 = vmatpush1.msra.mxu0 0.0
  %1319 = vmatprep.subr.mxu0 0.0
  %1320 = vmatpush1.msra.mxu0 0.0
  %1321 = vmatprep.subr.mxu0 0.0
  %1322 = vmatpush1.msra.mxu0 0.0
  %1323 = vmatprep.subr.mxu0 0.0
  %1324 = vmatpush1.msra.mxu0 0.0
  %1325 = vmatprep.subr.mxu0 0.0
  %1326 = vmatpush1.msra.mxu0 0.0
  %1327 = vmatprep.subr.mxu0 0.0
  %1328 = vmatpush1.msra.mxu0 0.0
  %1329 = vmatprep.subr.mxu0 0.0
  %1330 = vmatpush1.msra.mxu0 %v1290
  %1331 = vmatprep.subr.mxu0 0.0
  %1332 = vmatpush1.msra.mxu0 %v1289
  %1333 = vmatprep.subr.mxu0 0.0
  %1334 = vmatpush2.msra.mxu0 0.0
  %1335 = vmatprep.subr.mxu0 0.0
  %1336 = vmatpush2.msra.mxu0 0.0
  %1337 = vmatprep.subr.mxu0 0.0
  %1338 = vmatpush2.msra.mxu0 0.0
  %1339 = vmatprep.subr.mxu0 0.0
  %1340 = vmatpush2.msra.mxu0 0.0
  %1341 = vmatprep.subr.mxu0 0.0
  %1342 = vmatpush2.msra.mxu0 0.0
  %1343 = vmatprep.subr.mxu0 0.0
  %1344 = vmatpush2.msra.mxu0 0.0
  %1345 = vmatprep.subr.mxu0 0.0
  %1346 = vmatpush2.msra.mxu0 0.0
  %1347 = vmatprep.subr.mxu0 0.0
  %1348 = vmatpush2.msra.mxu0 0.0
  %1349 = vmatprep.subr.mxu0 0.0
  %1350 = vmatpush2.msra.mxu0 0.0
  %1351 = vmatprep.subr.mxu0 0.0
  %1352 = vmatpush2.msra.mxu0 0.0
  %1353 = vmatprep.subr.mxu0 0.0
  %1354 = vmatpush2.msra.mxu0 0.0
  %1355 = vmatprep.subr.mxu0 0.0
  %1356 = vmatpush2.msra.mxu0 0.0
  %1357 = vmatprep.subr.mxu0 0.0
  %1358 = vmatpush2.msra.mxu0 0.0
  %1359 = vmatprep.subr.mxu0 0.0
  %1360 = vmatpush2.msra.mxu0 0.0
  %1361 = vmatprep.subr.mxu0 0.0
  %1362 = vmatpush2.msra.mxu0 0.0
  %1363 = vmatprep.subr.mxu0 0.0
  %1364 = vmatpush2.msra.mxu0 0.0
  %1365 = vmatprep.mubr.f32.mxu0 0.0
  %1366 = vmatmul.mubr.f32.gmra.mxu0 %v1299
  %v1367 = vpop.f32.mrf.mxu0
  %v1368 = vadd.f32 %v1296, %v1367
  %v1369 = vpop.f32.mrf.mxu0
  %1370 = vdwg.mxu0
  %1371 = vst.msk [vmem:[%s18] sm:$0xff] %vm115, %v1199
  %1372 = vst.msk [vmem:[%s19] sm:$0xff] %vm115, %v1280
  %1373 = vst.msk [vmem:[%s20] sm:$0xff] %vm115, %v1288
  %v1374 = vld [vmem:[%s5] sm:$0xff]
  %v1375 = vld [vmem:[%s5 + $0x8] sm:$0xff]
  %v1376 = vld [vmem:[%s5 + $0x10] sm:$0xff]
  %v1377 = vld [vmem:[%s5 + $0x18] sm:$0xff]
  %v1378 = vld [vmem:[#allocation2 + $0x8] sm:$0xff]
  %v1380 = vsel %vm240, %v1368, 0
  %1382 = vmatprep.subr.mxu0 0.0
  %1383 = vmatpush1.msra.mxu0 0.0
  %1384 = vmatprep.subr.mxu0 0.0
  %1385 = vmatpush1.msra.mxu0 0.0
  %1386 = vmatprep.subr.mxu0 0.0
  %1387 = vmatpush1.msra.mxu0 0.0
  %1388 = vmatprep.subr.mxu0 0.0
  %1389 = vmatpush1.msra.mxu0 0.0
  %1390 = vmatprep.subr.mxu0 0.0
  %1391 = vmatpush1.msra.mxu0 0.0
  %1392 = vmatprep.subr.mxu0 0.0
  %1393 = vmatpush1.msra.mxu0 0.0
  %1394 = vmatprep.subr.mxu0 0.0
  %1395 = vmatpush1.msra.mxu0 0.0
  %1396 = vmatprep.subr.mxu0 0.0
  %1397 = vmatpush1.msra.mxu0 0.0
  %1398 = vmatprep.subr.mxu0 0.0
  %1399 = vmatpush1.msra.mxu0 0.0
  %1400 = vmatprep.subr.mxu0 0.0
  %1401 = vmatpush1.msra.mxu0 0.0
  %1402 = vmatprep.subr.mxu0 0.0
  %1403 = vmatpush1.msra.mxu0 0.0
  %1404 = vmatprep.subr.mxu0 0.0
  %1405 = vmatpush1.msra.mxu0 0.0
  %1406 = vmatprep.subr.mxu0 0.0
  %1407 = vmatpush1.msra.mxu0 %v1377
  %1408 = vmatprep.subr.mxu0 0.0
  %1409 = vmatpush1.msra.mxu0 %v1376
  %1410 = vmatprep.subr.mxu0 0.0
  %1411 = vmatpush1.msra.mxu0 %v1375
  %1412 = vmatprep.subr.mxu0 0.0
  %1413 = vmatpush1.msra.mxu0 %v1374
  %1414 = vmatprep.subr.mxu0 0.0
  %1415 = vmatpush2.msra.mxu0 0.0
  %1416 = vmatprep.subr.mxu0 0.0
  %1417 = vmatpush2.msra.mxu0 0.0
  %1418 = vmatprep.subr.mxu0 0.0
  %1419 = vmatpush2.msra.mxu0 0.0
  %1420 = vmatprep.subr.mxu0 0.0
  %1421 = vmatpush2.msra.mxu0 0.0
  %1422 = vmatprep.subr.mxu0 0.0
  %1423 = vmatpush2.msra.mxu0 0.0
  %1424 = vmatprep.subr.mxu0 0.0
  %1425 = vmatpush2.msra.mxu0 0.0
  %1426 = vmatprep.subr.mxu0 0.0
  %1427 = vmatpush2.msra.mxu0 0.0
  %1428 = vmatprep.subr.mxu0 0.0
  %1429 = vmatpush2.msra.mxu0 0.0
  %1430 = vmatprep.subr.mxu0 0.0
  %1431 = vmatpush2.msra.mxu0 0.0
  %1432 = vmatprep.subr.mxu0 0.0
  %1433 = vmatpush2.msra.mxu0 0.0
  %1434 = vmatprep.subr.mxu0 0.0
  %1435 = vmatpush2.msra.mxu0 0.0
  %1436 = vmatprep.subr.mxu0 0.0
  %1437 = vmatpush2.msra.mxu0 0.0
  %1438 = vmatprep.subr.mxu0 0.0
  %1439 = vmatpush2.msra.mxu0 0.0
  %1440 = vmatprep.subr.mxu0 0.0
  %1441 = vmatpush2.msra.mxu0 0.0
  %1442 = vmatprep.subr.mxu0 0.0
  %1443 = vmatpush2.msra.mxu0 0.0
  %1444 = vmatprep.subr.mxu0 0.0
  %1445 = vmatpush2.msra.mxu0 0.0
  %1446 = vmatprep.mubr.f32.mxu0 0.0
  %1447 = vmatmul.mubr.f32.gmra.mxu0 %v1380
  %v1448 = vpop.f32.mrf.mxu0
  %v1449 = vadd.f32 0.0, %v1448
  %v1450 = vpop.f32.mrf.mxu0
  %1451 = vdwg.mxu0
  %v1452 = vadd.f32 %v1378, %v1449
  %v1453 = vxor.u32 %v1452, 2147483648
  %v1454 = vmul.f32 %v1453, 1.442695
  %v1455 = vpow.pop %v1454
  %v1456 = vadd.f32 %v1455, 1.0
  %v1457 = vrcp.pop %v1456
  %v1458 = vmul.f32 1.0, %v1457
  %v1459 = vtanh.pop %v1452
  %1460 = vrot.lane.b32.xlu0 %v1368, 32
  %v1461 = vpop.permute.xlu0 %1460
  %v1463 = vmul.f32 %v1458, %v1461
  %1465 = vrot.lane.b32.xlu0 %v1459, 32
  %v1466 = vpop.permute.xlu0 %1465
  %v1468 = vmul.f32 %v1458, %v1466
  %1470 = vrot.lane.b32.xlu0 %v1468, 32
  %v1471 = vpop.permute.xlu0 %1470
  %v1473 = vadd.f32 %v1463, %v1471
  %v1474 = vtanh.pop %v1473
  %1476 = vrot.lane.b32.xlu0 %v1474, 32
  %v1477 = vpop.permute.xlu0 %1476
  %v1479 = vmul.f32 %v1458, %v1477
  %1480 = vrot.lane.b32.xlu0 %v1368, 64
  %v1481 = vpop.permute.xlu0 %1480
  %v1483 = vsel %vm347, %v1479, %v1481
  %v1484 = vsel %vm347, %v1473, %v1461
  %v1485 = vsel %vm347, %v1479, 0.0
  %1487 = vrot.lane.b32.xlu0 %v1485, 64
  %v1488 = vpop.permute.xlu0 %1487
  %1490 = vst.msk [vmem:[#allocation3] sm:$0xff] %vm240, %v1488
  %v1491 = vld [vmem:[#allocation2 + $0x18] sm:$0xff]
  %1493 = vrot.lane.b32.xlu0 %v1483, 64
  %v1494 = vpop.permute.xlu0 %1493
  %v1495 = vsel %vm240, %v1494, 0
  %1497 = vmatprep.subr.mxu0 0.0
  %1498 = vmatpush1.msra.mxu0 0.0
  %1499 = vmatprep.subr.mxu0 0.0
  %1500 = vmatpush1.msra.mxu0 0.0
  %1501 = vmatprep.subr.mxu0 0.0
  %1502 = vmatpush1.msra.mxu0 0.0
  %1503 = vmatprep.subr.mxu0 0.0
  %1504 = vmatpush1.msra.mxu0 0.0
  %1505 = vmatprep.subr.mxu0 0.0
  %1506 = vmatpush1.msra.mxu0 0.0
  %1507 = vmatprep.subr.mxu0 0.0
  %1508 = vmatpush1.msra.mxu0 0.0
  %1509 = vmatprep.subr.mxu0 0.0
  %1510 = vmatpush1.msra.mxu0 0.0
  %1511 = vmatprep.subr.mxu0 0.0
  %1512 = vmatpush1.msra.mxu0 0.0
  %1513 = vmatprep.subr.mxu0 0.0
  %1514 = vmatpush1.msra.mxu0 0.0
  %1515 = vmatprep.subr.mxu0 0.0
  %1516 = vmatpush1.msra.mxu0 0.0
  %1517 = vmatprep.subr.mxu0 0.0
  %1518 = vmatpush1.msra.mxu0 0.0
  %1519 = vmatprep.subr.mxu0 0.0
  %1520 = vmatpush1.msra.mxu0 0.0
  %1521 = vmatprep.subr.mxu0 0.0
  %1522 = vmatpush1.msra.mxu0 %v1377
  %1523 = vmatprep.subr.mxu0 0.0
  %1524 = vmatpush1.msra.mxu0 %v1376
  %1525 = vmatprep.subr.mxu0 0.0
  %1526 = vmatpush1.msra.mxu0 %v1375
  %1527 = vmatprep.subr.mxu0 0.0
  %1528 = vmatpush1.msra.mxu0 %v1374
  %1529 = vmatprep.subr.mxu0 0.0
  %1530 = vmatpush2.msra.mxu0 0.0
  %1531 = vmatprep.subr.mxu0 0.0
  %1532 = vmatpush2.msra.mxu0 0.0
  %1533 = vmatprep.subr.mxu0 0.0
  %1534 = vmatpush2.msra.mxu0 0.0
  %1535 = vmatprep.subr.mxu0 0.0
  %1536 = vmatpush2.msra.mxu0 0.0
  %1537 = vmatprep.subr.mxu0 0.0
  %1538 = vmatpush2.msra.mxu0 0.0
  %1539 = vmatprep.subr.mxu0 0.0
  %1540 = vmatpush2.msra.mxu0 0.0
  %1541 = vmatprep.subr.mxu0 0.0
  %1542 = vmatpush2.msra.mxu0 0.0
  %1543 = vmatprep.subr.mxu0 0.0
  %1544 = vmatpush2.msra.mxu0 0.0
  %1545 = vmatprep.subr.mxu0 0.0
  %1546 = vmatpush2.msra.mxu0 0.0
  %1547 = vmatprep.subr.mxu0 0.0
  %1548 = vmatpush2.msra.mxu0 0.0
  %1549 = vmatprep.subr.mxu0 0.0
  %1550 = vmatpush2.msra.mxu0 0.0
  %1551 = vmatprep.subr.mxu0 0.0
  %1552 = vmatpush2.msra.mxu0 0.0
  %1553 = vmatprep.subr.mxu0 0.0
  %1554 = vmatpush2.msra.mxu0 0.0
  %1555 = vmatprep.subr.mxu0 0.0
  %1556 = vmatpush2.msra.mxu0 0.0
  %1557 = vmatprep.subr.mxu0 0.0
  %1558 = vmatpush2.msra.mxu0 0.0
  %1559 = vmatprep.subr.mxu0 0.0
  %1560 = vmatpush2.msra.mxu0 0.0
  %1561 = vmatprep.mubr.f32.mxu0 0.0
  %1562 = vmatmul.mubr.f32.gmra.mxu0 %v1495
  %v1563 = vpop.f32.mrf.mxu0
  %v1564 = vadd.f32 0.0, %v1563
  %v1565 = vpop.f32.mrf.mxu0
  %1566 = vdwg.mxu0
  %v1567 = vadd.f32 %v1491, %v1564
  %v1568 = vxor.u32 %v1567, 2147483648
  %v1569 = vmul.f32 %v1568, 1.442695
  %v1570 = vpow.pop %v1569
  %v1571 = vadd.f32 %v1570, 1.0
  %v1572 = vrcp.pop %v1571
  %v1573 = vmul.f32 1.0, %v1572
  %v1574 = vtanh.pop %v1567
  %v1575 = vmul.f32 %v1573, %v1484
  %1577 = vrot.lane.b32.xlu0 %v1574, 32
  %v1578 = vpop.permute.xlu0 %1577
  %v1580 = vmul.f32 %v1573, %v1578
  %1582 = vrot.lane.b32.xlu0 %v1580, 32
  %v1583 = vpop.permute.xlu0 %1582
  %v1585 = vadd.f32 %v1575, %v1583
  %v1586 = vtanh.pop %v1585
  %1588 = vrot.lane.b32.xlu0 %v1586, 32
  %v1589 = vpop.permute.xlu0 %1588
  %v1591 = vmul.f32 %v1573, %v1589
  %v1592 = vsel %vm458, %v1591, %v1483
  %v1593 = vsel %vm458, %v1585, %v1484
  %v1594 = vsel %vm458, %v1591, 0.0
  %1596 = vrot.lane.b32.xlu0 %v1594, 64
  %v1597 = vpop.permute.xlu0 %1596
  %1599 = vst.msk [vmem:[#allocation3 + $0x8] sm:$0xff] %vm240, %v1597
  %v1600 = vld [vmem:[#allocation2 + $0x28] sm:$0xff]
  %1602 = vrot.lane.b32.xlu0 %v1592, 64
  %v1603 = vpop.permute.xlu0 %1602
  %v1604 = vsel %vm240, %v1603, 0
  %1606 = vmatprep.subr.mxu0 0.0
  %1607 = vmatpush1.msra.mxu0 0.0
  %1608 = vmatprep.subr.mxu0 0.0
  %1609 = vmatpush1.msra.mxu0 0.0
  %1610 = vmatprep.subr.mxu0 0.0
  %1611 = vmatpush1.msra.mxu0 0.0
  %1612 = vmatprep.subr.mxu0 0.0
  %1613 = vmatpush1.msra.mxu0 0.0
  %1614 = vmatprep.subr.mxu0 0.0
  %1615 = vmatpush1.msra.mxu0 0.0
  %1616 = vmatprep.subr.mxu0 0.0
  %1617 = vmatpush1.msra.mxu0 0.0
  %1618 = vmatprep.subr.mxu0 0.0
  %1619 = vmatpush1.msra.mxu0 0.0
  %1620 = vmatprep.subr.mxu0 0.0
  %1621 = vmatpush1.msra.mxu0 0.0
  %1622 = vmatprep.subr.mxu0 0.0
  %1623 = vmatpush1.msra.mxu0 0.0
  %1624 = vmatprep.subr.mxu0 0.0
  %1625 = vmatpush1.msra.mxu0 0.0
  %1626 = vmatprep.subr.mxu0 0.0
  %1627 = vmatpush1.msra.mxu0 0.0
  %1628 = vmatprep.subr.mxu0 0.0
  %1629 = vmatpush1.msra.mxu0 0.0
  %1630 = vmatprep.subr.mxu0 0.0
  %1631 = vmatpush1.msra.mxu0 %v1377
  %1632 = vmatprep.subr.mxu0 0.0
  %1633 = vmatpush1.msra.mxu0 %v1376
  %1634 = vmatprep.subr.mxu0 0.0
  %1635 = vmatpush1.msra.mxu0 %v1375
  %1636 = vmatprep.subr.mxu0 0.0
  %1637 = vmatpush1.msra.mxu0 %v1374
  %1638 = vmatprep.subr.mxu0 0.0
  %1639 = vmatpush2.msra.mxu0 0.0
  %1640 = vmatprep.subr.mxu0 0.0
  %1641 = vmatpush2.msra.mxu0 0.0
  %1642 = vmatprep.subr.mxu0 0.0
  %1643 = vmatpush2.msra.mxu0 0.0
  %1644 = vmatprep.subr.mxu0 0.0
  %1645 = vmatpush2.msra.mxu0 0.0
  %1646 = vmatprep.subr.mxu0 0.0
  %1647 = vmatpush2.msra.mxu0 0.0
  %1648 = vmatprep.subr.mxu0 0.0
  %1649 = vmatpush2.msra.mxu0 0.0
  %1650 = vmatprep.subr.mxu0 0.0
  %1651 = vmatpush2.msra.mxu0 0.0
  %1652 = vmatprep.subr.mxu0 0.0
  %1653 = vmatpush2.msra.mxu0 0.0
  %1654 = vmatprep.subr.mxu0 0.0
  %1655 = vmatpush2.msra.mxu0 0.0
  %1656 = vmatprep.subr.mxu0 0.0
  %1657 = vmatpush2.msra.mxu0 0.0
  %1658 = vmatprep.subr.mxu0 0.0
  %1659 = vmatpush2.msra.mxu0 0.0
  %1660 = vmatprep.subr.mxu0 0.0
  %1661 = vmatpush2.msra.mxu0 0.0
  %1662 = vmatprep.subr.mxu0 0.0
  %1663 = vmatpush2.msra.mxu0 0.0
  %1664 = vmatprep.subr.mxu0 0.0
  %1665 = vmatpush2.msra.mxu0 0.0
  %1666 = vmatprep.subr.mxu0 0.0
  %1667 = vmatpush2.msra.mxu0 0.0
  %1668 = vmatprep.subr.mxu0 0.0
  %1669 = vmatpush2.msra.mxu0 0.0
  %1670 = vmatprep.mubr.f32.mxu0 0.0
  %1671 = vmatmul.mubr.f32.gmra.mxu0 %v1604
  %v1672 = vpop.f32.mrf.mxu0
  %v1673 = vadd.f32 0.0, %v1672
  %v1674 = vpop.f32.mrf.mxu0
  %1675 = vdwg.mxu0
  %v1676 = vadd.f32 %v1600, %v1673
  %v1677 = vxor.u32 %v1676, 2147483648
  %v1678 = vmul.f32 %v1677, 1.442695
  %v1679 = vpow.pop %v1678
  %v1680 = vadd.f32 %v1679, 1.0
  %v1681 = vrcp.pop %v1680
  %v1682 = vmul.f32 1.0, %v1681
  %v1683 = vtanh.pop %v1676
  %v1684 = vmul.f32 %v1682, %v1593
  %1686 = vrot.lane.b32.xlu0 %v1683, 32
  %v1687 = vpop.permute.xlu0 %1686
  %v1689 = vmul.f32 %v1682, %v1687
  %1691 = vrot.lane.b32.xlu0 %v1689, 32
  %v1692 = vpop.permute.xlu0 %1691
  %v1694 = vadd.f32 %v1684, %v1692
  %v1695 = vtanh.pop %v1694
  %1697 = vrot.lane.b32.xlu0 %v1695, 32
  %v1698 = vpop.permute.xlu0 %1697
  %v1700 = vmul.f32 %v1682, %v1698
  %v1701 = vsel %vm566, %v1700, %v1592
  %v1702 = vsel %vm566, %v1694, %v1593
  %v1703 = vsel %vm566, %v1700, 0.0
  %1705 = vrot.lane.b32.xlu0 %v1703, 64
  %v1706 = vpop.permute.xlu0 %1705
  %1708 = vst.msk [vmem:[#allocation3 + $0x10] sm:$0xff] %vm240, %v1706
  %v1709 = vld [vmem:[#allocation2 + $0x38] sm:$0xff]
  %1711 = vrot.lane.b32.xlu0 %v1701, 64
  %v1712 = vpop.permute.xlu0 %1711
  %v1713 = vsel %vm240, %v1712, 0
  %1715 = vmatprep.subr.mxu0 0.0
  %1716 = vmatpush1.msra.mxu0 0.0
  %1717 = vmatprep.subr.mxu0 0.0
  %1718 = vmatpush1.msra.mxu0 0.0
  %1719 = vmatprep.subr.mxu0 0.0
  %1720 = vmatpush1.msra.mxu0 0.0
  %1721 = vmatprep.subr.mxu0 0.0
  %1722 = vmatpush1.msra.mxu0 0.0
  %1723 = vmatprep.subr.mxu0 0.0
  %1724 = vmatpush1.msra.mxu0 0.0
  %1725 = vmatprep.subr.mxu0 0.0
  %1726 = vmatpush1.msra.mxu0 0.0
  %1727 = vmatprep.subr.mxu0 0.0
  %1728 = vmatpush1.msra.mxu0 0.0
  %1729 = vmatprep.subr.mxu0 0.0
  %1730 = vmatpush1.msra.mxu0 0.0
  %1731 = vmatprep.subr.mxu0 0.0
  %1732 = vmatpush1.msra.mxu0 0.0
  %1733 = vmatprep.subr.mxu0 0.0
  %1734 = vmatpush1.msra.mxu0 0.0
  %1735 = vmatprep.subr.mxu0 0.0
  %1736 = vmatpush1.msra.mxu0 0.0
  %1737 = vmatprep.subr.mxu0 0.0
  %1738 = vmatpush1.msra.mxu0 0.0
  %1739 = vmatprep.subr.mxu0 0.0
  %1740 = vmatpush1.msra.mxu0 %v1377
  %1741 = vmatprep.subr.mxu0 0.0
  %1742 = vmatpush1.msra.mxu0 %v1376
  %1743 = vmatprep.subr.mxu0 0.0
  %1744 = vmatpush1.msra.mxu0 %v1375
  %1745 = vmatprep.subr.mxu0 0.0
  %1746 = vmatpush1.msra.mxu0 %v1374
  %1747 = vmatprep.subr.mxu0 0.0
  %1748 = vmatpush2.msra.mxu0 0.0
  %1749 = vmatprep.subr.mxu0 0.0
  %1750 = vmatpush2.msra.mxu0 0.0
  %1751 = vmatprep.subr.mxu0 0.0
  %1752 = vmatpush2.msra.mxu0 0.0
  %1753 = vmatprep.subr.mxu0 0.0
  %1754 = vmatpush2.msra.mxu0 0.0
  %1755 = vmatprep.subr.mxu0 0.0
  %1756 = vmatpush2.msra.mxu0 0.0
  %1757 = vmatprep.subr.mxu0 0.0
  %1758 = vmatpush2.msra.mxu0 0.0
  %1759 = vmatprep.subr.mxu0 0.0
  %1760 = vmatpush2.msra.mxu0 0.0
  %1761 = vmatprep.subr.mxu0 0.0
  %1762 = vmatpush2.msra.mxu0 0.0
  %1763 = vmatprep.subr.mxu0 0.0
  %1764 = vmatpush2.msra.mxu0 0.0
  %1765 = vmatprep.subr.mxu0 0.0
  %1766 = vmatpush2.msra.mxu0 0.0
  %1767 = vmatprep.subr.mxu0 0.0
  %1768 = vmatpush2.msra.mxu0 0.0
  %1769 = vmatprep.subr.mxu0 0.0
  %1770 = vmatpush2.msra.mxu0 0.0
  %1771 = vmatprep.subr.mxu0 0.0
  %1772 = vmatpush2.msra.mxu0 0.0
  %1773 = vmatprep.subr.mxu0 0.0
  %1774 = vmatpush2.msra.mxu0 0.0
  %1775 = vmatprep.subr.mxu0 0.0
  %1776 = vmatpush2.msra.mxu0 0.0
  %1777 = vmatprep.subr.mxu0 0.0
  %1778 = vmatpush2.msra.mxu0 0.0
  %1779 = vmatprep.mubr.f32.mxu0 0.0
  %1780 = vmatmul.mubr.f32.gmra.mxu0 %v1713
  %v1781 = vpop.f32.mrf.mxu0
  %v1782 = vadd.f32 0.0, %v1781
  %v1783 = vpop.f32.mrf.mxu0
  %1784 = vdwg.mxu0
  %v1785 = vadd.f32 %v1709, %v1782
  %v1786 = vxor.u32 %v1785, 2147483648
  %v1787 = vmul.f32 %v1786, 1.442695
  %v1788 = vpow.pop %v1787
  %v1789 = vadd.f32 %v1788, 1.0
  %v1790 = vrcp.pop %v1789
  %v1791 = vmul.f32 1.0, %v1790
  %v1792 = vtanh.pop %v1785
  %v1793 = vmul.f32 %v1791, %v1702
  %1795 = vrot.lane.b32.xlu0 %v1792, 32
  %v1796 = vpop.permute.xlu0 %1795
  %v1798 = vmul.f32 %v1791, %v1796
  %1800 = vrot.lane.b32.xlu0 %v1798, 32
  %v1801 = vpop.permute.xlu0 %1800
  %v1803 = vadd.f32 %v1793, %v1801
  %v1804 = vtanh.pop %v1803
  %1806 = vrot.lane.b32.xlu0 %v1804, 32
  %v1807 = vpop.permute.xlu0 %1806
  %v1809 = vmul.f32 %v1791, %v1807
  %v1810 = vsel %vm674, %v1809, %v1701
  %v1811 = vsel %vm674, %v1803, %v1702
  %v1812 = vsel %vm674, %v1809, 0.0
  %1814 = vrot.lane.b32.xlu0 %v1812, 64
  %v1815 = vpop.permute.xlu0 %1814
  %1817 = vst.msk [vmem:[#allocation3 + $0x18] sm:$0xff] %vm240, %v1815
  %v1818 = vld [vmem:[#allocation2 + $0x48] sm:$0xff]
  %1820 = vrot.lane.b32.xlu0 %v1810, 64
  %v1821 = vpop.permute.xlu0 %1820
  %v1822 = vsel %vm240, %v1821, 0
  %1824 = vmatprep.subr.mxu0 0.0
  %1825 = vmatpush1.msra.mxu0 0.0
  %1826 = vmatprep.subr.mxu0 0.0
  %1827 = vmatpush1.msra.mxu0 0.0
  %1828 = vmatprep.subr.mxu0 0.0
  %1829 = vmatpush1.msra.mxu0 0.0
  %1830 = vmatprep.subr.mxu0 0.0
  %1831 = vmatpush1.msra.mxu0 0.0
  %1832 = vmatprep.subr.mxu0 0.0
  %1833 = vmatpush1.msra.mxu0 0.0
  %1834 = vmatprep.subr.mxu0 0.0
  %1835 = vmatpush1.msra.mxu0 0.0
  %1836 = vmatprep.subr.mxu0 0.0
  %1837 = vmatpush1.msra.mxu0 0.0
  %1838 = vmatprep.subr.mxu0 0.0
  %1839 = vmatpush1.msra.mxu0 0.0
  %1840 = vmatprep.subr.mxu0 0.0
  %1841 = vmatpush1.msra.mxu0 0.0
  %1842 = vmatprep.subr.mxu0 0.0
  %1843 = vmatpush1.msra.mxu0 0.0
  %1844 = vmatprep.subr.mxu0 0.0
  %1845 = vmatpush1.msra.mxu0 0.0
  %1846 = vmatprep.subr.mxu0 0.0
  %1847 = vmatpush1.msra.mxu0 0.0
  %1848 = vmatprep.subr.mxu0 0.0
  %1849 = vmatpush1.msra.mxu0 %v1377
  %1850 = vmatprep.subr.mxu0 0.0
  %1851 = vmatpush1.msra.mxu0 %v1376
  %1852 = vmatprep.subr.mxu0 0.0
  %1853 = vmatpush1.msra.mxu0 %v1375
  %1854 = vmatprep.subr.mxu0 0.0
  %1855 = vmatpush1.msra.mxu0 %v1374
  %1856 = vmatprep.subr.mxu0 0.0
  %1857 = vmatpush2.msra.mxu0 0.0
  %1858 = vmatprep.subr.mxu0 0.0
  %1859 = vmatpush2.msra.mxu0 0.0
  %1860 = vmatprep.subr.mxu0 0.0
  %1861 = vmatpush2.msra.mxu0 0.0
  %1862 = vmatprep.subr.mxu0 0.0
  %1863 = vmatpush2.msra.mxu0 0.0
  %1864 = vmatprep.subr.mxu0 0.0
  %1865 = vmatpush2.msra.mxu0 0.0
  %1866 = vmatprep.subr.mxu0 0.0
  %1867 = vmatpush2.msra.mxu0 0.0
  %1868 = vmatprep.subr.mxu0 0.0
  %1869 = vmatpush2.msra.mxu0 0.0
  %1870 = vmatprep.subr.mxu0 0.0
  %1871 = vmatpush2.msra.mxu0 0.0
  %1872 = vmatprep.subr.mxu0 0.0
  %1873 = vmatpush2.msra.mxu0 0.0
  %1874 = vmatprep.subr.mxu0 0.0
  %1875 = vmatpush2.msra.mxu0 0.0
  %1876 = vmatprep.subr.mxu0 0.0
  %1877 = vmatpush2.msra.mxu0 0.0
  %1878 = vmatprep.subr.mxu0 0.0
  %1879 = vmatpush2.msra.mxu0 0.0
  %1880 = vmatprep.subr.mxu0 0.0
  %1881 = vmatpush2.msra.mxu0 0.0
  %1882 = vmatprep.subr.mxu0 0.0
  %1883 = vmatpush2.msra.mxu0 0.0
  %1884 = vmatprep.subr.mxu0 0.0
  %1885 = vmatpush2.msra.mxu0 0.0
  %1886 = vmatprep.subr.mxu0 0.0
  %1887 = vmatpush2.msra.mxu0 0.0
  %1888 = vmatprep.mubr.f32.mxu0 0.0
  %1889 = vmatmul.mubr.f32.gmra.mxu0 %v1822
  %v1890 = vpop.f32.mrf.mxu0
  %v1891 = vadd.f32 0.0, %v1890
  %v1892 = vpop.f32.mrf.mxu0
  %1893 = vdwg.mxu0
  %v1894 = vadd.f32 %v1818, %v1891
  %v1895 = vxor.u32 %v1894, 2147483648
  %v1896 = vmul.f32 %v1895, 1.442695
  %v1897 = vpow.pop %v1896
  %v1898 = vadd.f32 %v1897, 1.0
  %v1899 = vrcp.pop %v1898
  %v1900 = vmul.f32 1.0, %v1899
  %v1901 = vtanh.pop %v1894
  %v1902 = vmul.f32 %v1900, %v1811
  %1904 = vrot.lane.b32.xlu0 %v1901, 32
  %v1905 = vpop.permute.xlu0 %1904
  %v1907 = vmul.f32 %v1900, %v1905
  %1909 = vrot.lane.b32.xlu0 %v1907, 32
  %v1910 = vpop.permute.xlu0 %1909
  %v1912 = vadd.f32 %v1902, %v1910
  %v1913 = vtanh.pop %v1912
  %1915 = vrot.lane.b32.xlu0 %v1913, 32
  %v1916 = vpop.permute.xlu0 %1915
  %v1918 = vmul.f32 %v1900, %v1916
  %v1919 = vsel %vm782, %v1918, %v1810
  %v1920 = vsel %vm782, %v1912, %v1811
  %v1921 = vsel %vm782, %v1918, 0.0
  %1923 = vrot.lane.b32.xlu0 %v1921, 64
  %v1924 = vpop.permute.xlu0 %1923
  %1926 = vst.msk [vmem:[#allocation3 + $0x20] sm:$0xff] %vm240, %v1924
  %v1927 = vld [vmem:[#allocation2 + $0x58] sm:$0xff]
  %1929 = vrot.lane.b32.xlu0 %v1919, 64
  %v1930 = vpop.permute.xlu0 %1929
  %v1931 = vsel %vm240, %v1930, 0
  %1933 = vmatprep.subr.mxu0 0.0
  %1934 = vmatpush1.msra.mxu0 0.0
  %1935 = vmatprep.subr.mxu0 0.0
  %1936 = vmatpush1.msra.mxu0 0.0
  %1937 = vmatprep.subr.mxu0 0.0
  %1938 = vmatpush1.msra.mxu0 0.0
  %1939 = vmatprep.subr.mxu0 0.0
  %1940 = vmatpush1.msra.mxu0 0.0
  %1941 = vmatprep.subr.mxu0 0.0
  %1942 = vmatpush1.msra.mxu0 0.0
  %1943 = vmatprep.subr.mxu0 0.0
  %1944 = vmatpush1.msra.mxu0 0.0
  %1945 = vmatprep.subr.mxu0 0.0
  %1946 = vmatpush1.msra.mxu0 0.0
  %1947 = vmatprep.subr.mxu0 0.0
  %1948 = vmatpush1.msra.mxu0 0.0
  %1949 = vmatprep.subr.mxu0 0.0
  %1950 = vmatpush1.msra.mxu0 0.0
  %1951 = vmatprep.subr.mxu0 0.0
  %1952 = vmatpush1.msra.mxu0 0.0
  %1953 = vmatprep.subr.mxu0 0.0
  %1954 = vmatpush1.msra.mxu0 0.0
  %1955 = vmatprep.subr.mxu0 0.0
  %1956 = vmatpush1.msra.mxu0 0.0
  %1957 = vmatprep.subr.mxu0 0.0
  %1958 = vmatpush1.msra.mxu0 %v1377
  %1959 = vmatprep.subr.mxu0 0.0
  %1960 = vmatpush1.msra.mxu0 %v1376
  %1961 = vmatprep.subr.mxu0 0.0
  %1962 = vmatpush1.msra.mxu0 %v1375
  %1963 = vmatprep.subr.mxu0 0.0
  %1964 = vmatpush1.msra.mxu0 %v1374
  %1965 = vmatprep.subr.mxu0 0.0
  %1966 = vmatpush2.msra.mxu0 0.0
  %1967 = vmatprep.subr.mxu0 0.0
  %1968 = vmatpush2.msra.mxu0 0.0
  %1969 = vmatprep.subr.mxu0 0.0
  %1970 = vmatpush2.msra.mxu0 0.0
  %1971 = vmatprep.subr.mxu0 0.0
  %1972 = vmatpush2.msra.mxu0 0.0
  %1973 = vmatprep.subr.mxu0 0.0
  %1974 = vmatpush2.msra.mxu0 0.0
  %1975 = vmatprep.subr.mxu0 0.0
  %1976 = vmatpush2.msra.mxu0 0.0
  %1977 = vmatprep.subr.mxu0 0.0
  %1978 = vmatpush2.msra.mxu0 0.0
  %1979 = vmatprep.subr.mxu0 0.0
  %1980 = vmatpush2.msra.mxu0 0.0
  %1981 = vmatprep.subr.mxu0 0.0
  %1982 = vmatpush2.msra.mxu0 0.0
  %1983 = vmatprep.subr.mxu0 0.0
  %1984 = vmatpush2.msra.mxu0 0.0
  %1985 = vmatprep.subr.mxu0 0.0
  %1986 = vmatpush2.msra.mxu0 0.0
  %1987 = vmatprep.subr.mxu0 0.0
  %1988 = vmatpush2.msra.mxu0 0.0
  %1989 = vmatprep.subr.mxu0 0.0
  %1990 = vmatpush2.msra.mxu0 0.0
  %1991 = vmatprep.subr.mxu0 0.0
  %1992 = vmatpush2.msra.mxu0 0.0
  %1993 = vmatprep.subr.mxu0 0.0
  %1994 = vmatpush2.msra.mxu0 0.0
  %1995 = vmatprep.subr.mxu0 0.0
  %1996 = vmatpush2.msra.mxu0 0.0
  %1997 = vmatprep.mubr.f32.mxu0 0.0
  %1998 = vmatmul.mubr.f32.gmra.mxu0 %v1931
  %v1999 = vpop.f32.mrf.mxu0
  %v2000 = vadd.f32 0.0, %v1999
  %v2001 = vpop.f32.mrf.mxu0
  %2002 = vdwg.mxu0
  %v2003 = vadd.f32 %v1927, %v2000
  %v2004 = vxor.u32 %v2003, 2147483648
  %v2005 = vmul.f32 %v2004, 1.442695
  %v2006 = vpow.pop %v2005
  %v2007 = vadd.f32 %v2006, 1.0
  %v2008 = vrcp.pop %v2007
  %v2009 = vmul.f32 1.0, %v2008
  %v2010 = vtanh.pop %v2003
  %v2011 = vmul.f32 %v2009, %v1920
  %2013 = vrot.lane.b32.xlu0 %v2010, 32
  %v2014 = vpop.permute.xlu0 %2013
  %v2016 = vmul.f32 %v2009, %v2014
  %2018 = vrot.lane.b32.xlu0 %v2016, 32
  %v2019 = vpop.permute.xlu0 %2018
  %v2021 = vadd.f32 %v2011, %v2019
  %v2022 = vtanh.pop %v2021
  %2024 = vrot.lane.b32.xlu0 %v2022, 32
  %v2025 = vpop.permute.xlu0 %2024
  %v2027 = vmul.f32 %v2009, %v2025
  %v2028 = vsel %vm890, %v2027, %v1919
  %v2029 = vsel %vm890, %v2021, %v1920
  %v2030 = vsel %vm890, %v2027, 0.0
  %2032 = vrot.lane.b32.xlu0 %v2030, 64
  %v2033 = vpop.permute.xlu0 %2032
  %2035 = vst.msk [vmem:[#allocation3 + $0x28] sm:$0xff] %vm240, %v2033
  %v2036 = vld [vmem:[#allocation2 + $0x68] sm:$0xff]
  %2038 = vrot.lane.b32.xlu0 %v2028, 64
  %v2039 = vpop.permute.xlu0 %2038
  %v2040 = vsel %vm240, %v2039, 0
  %2042 = vmatprep.subr.mxu0 0.0
  %2043 = vmatpush1.msra.mxu0 0.0
  %2044 = vmatprep.subr.mxu0 0.0
  %2045 = vmatpush1.msra.mxu0 0.0
  %2046 = vmatprep.subr.mxu0 0.0
  %2047 = vmatpush1.msra.mxu0 0.0
  %2048 = vmatprep.subr.mxu0 0.0
  %2049 = vmatpush1.msra.mxu0 0.0
  %2050 = vmatprep.subr.mxu0 0.0
  %2051 = vmatpush1.msra.mxu0 0.0
  %2052 = vmatprep.subr.mxu0 0.0
  %2053 = vmatpush1.msra.mxu0 0.0
  %2054 = vmatprep.subr.mxu0 0.0
  %2055 = vmatpush1.msra.mxu0 0.0
  %2056 = vmatprep.subr.mxu0 0.0
  %2057 = vmatpush1.msra.mxu0 0.0
  %2058 = vmatprep.subr.mxu0 0.0
  %2059 = vmatpush1.msra.mxu0 0.0
  %2060 = vmatprep.subr.mxu0 0.0
  %2061 = vmatpush1.msra.mxu0 0.0
  %2062 = vmatprep.subr.mxu0 0.0
  %2063 = vmatpush1.msra.mxu0 0.0
  %2064 = vmatprep.subr.mxu0 0.0
  %2065 = vmatpush1.msra.mxu0 0.0
  %2066 = vmatprep.subr.mxu0 0.0
  %2067 = vmatpush1.msra.mxu0 %v1377
  %2068 = vmatprep.subr.mxu0 0.0
  %2069 = vmatpush1.msra.mxu0 %v1376
  %2070 = vmatprep.subr.mxu0 0.0
  %2071 = vmatpush1.msra.mxu0 %v1375
  %2072 = vmatprep.subr.mxu0 0.0
  %2073 = vmatpush1.msra.mxu0 %v1374
  %2074 = vmatprep.subr.mxu0 0.0
  %2075 = vmatpush2.msra.mxu0 0.0
  %2076 = vmatprep.subr.mxu0 0.0
  %2077 = vmatpush2.msra.mxu0 0.0
  %2078 = vmatprep.subr.mxu0 0.0
  %2079 = vmatpush2.msra.mxu0 0.0
  %2080 = vmatprep.subr.mxu0 0.0
  %2081 = vmatpush2.msra.mxu0 0.0
  %2082 = vmatprep.subr.mxu0 0.0
  %2083 = vmatpush2.msra.mxu0 0.0
  %2084 = vmatprep.subr.mxu0 0.0
  %2085 = vmatpush2.msra.mxu0 0.0
  %2086 = vmatprep.subr.mxu0 0.0
  %2087 = vmatpush2.msra.mxu0 0.0
  %2088 = vmatprep.subr.mxu0 0.0
  %2089 = vmatpush2.msra.mxu0 0.0
  %2090 = vmatprep.subr.mxu0 0.0
  %2091 = vmatpush2.msra.mxu0 0.0
  %2092 = vmatprep.subr.mxu0 0.0
  %2093 = vmatpush2.msra.mxu0 0.0
  %2094 = vmatprep.subr.mxu0 0.0
  %2095 = vmatpush2.msra.mxu0 0.0
  %2096 = vmatprep.subr.mxu0 0.0
  %2097 = vmatpush2.msra.mxu0 0.0
  %2098 = vmatprep.subr.mxu0 0.0
  %2099 = vmatpush2.msra.mxu0 0.0
  %2100 = vmatprep.subr.mxu0 0.0
  %2101 = vmatpush2.msra.mxu0 0.0
  %2102 = vmatprep.subr.mxu0 0.0
  %2103 = vmatpush2.msra.mxu0 0.0
  %2104 = vmatprep.subr.mxu0 0.0
  %2105 = vmatpush2.msra.mxu0 0.0
  %2106 = vmatprep.mubr.f32.mxu0 0.0
  %2107 = vmatmul.mubr.f32.gmra.mxu0 %v2040
  %v2108 = vpop.f32.mrf.mxu0
  %v2109 = vadd.f32 0.0, %v2108
  %v2110 = vpop.f32.mrf.mxu0
  %2111 = vdwg.mxu0
  %v2112 = vadd.f32 %v2036, %v2109
  %v2113 = vxor.u32 %v2112, 2147483648
  %v2114 = vmul.f32 %v2113, 1.442695
  %v2115 = vpow.pop %v2114
  %v2116 = vadd.f32 %v2115, 1.0
  %v2117 = vrcp.pop %v2116
  %v2118 = vmul.f32 1.0, %v2117
  %v2119 = vtanh.pop %v2112
  %v2120 = vmul.f32 %v2118, %v2029
  %2122 = vrot.lane.b32.xlu0 %v2119, 32
  %v2123 = vpop.permute.xlu0 %2122
  %v2125 = vmul.f32 %v2118, %v2123
  %2127 = vrot.lane.b32.xlu0 %v2125, 32
  %v2128 = vpop.permute.xlu0 %2127
  %v2130 = vadd.f32 %v2120, %v2128
  %v2131 = vtanh.pop %v2130
  %2133 = vrot.lane.b32.xlu0 %v2131, 32
  %v2134 = vpop.permute.xlu0 %2133
  %v2136 = vmul.f32 %v2118, %v2134
  %v2137 = vsel %vm998, %v2136, %v2028
  %v2138 = vsel %vm998, %v2130, %v2029
  %v2139 = vsel %vm998, %v2136, 0.0
  %2141 = vrot.lane.b32.xlu0 %v2139, 64
  %v2142 = vpop.permute.xlu0 %2141
  %2144 = vst.msk [vmem:[#allocation3 + $0x30] sm:$0xff] %vm240, %v2142
  %v2145 = vld [vmem:[#allocation2 + $0x78] sm:$0xff]
  %2147 = vrot.lane.b32.xlu0 %v2137, 64
  %v2148 = vpop.permute.xlu0 %2147
  %v2149 = vsel %vm240, %v2148, 0
  %2151 = vmatprep.subr.mxu0 0.0
  %2152 = vmatpush1.msra.mxu0 0.0
  %2153 = vmatprep.subr.mxu0 0.0
  %2154 = vmatpush1.msra.mxu0 0.0
  %2155 = vmatprep.subr.mxu0 0.0
  %2156 = vmatpush1.msra.mxu0 0.0
  %2157 = vmatprep.subr.mxu0 0.0
  %2158 = vmatpush1.msra.mxu0 0.0
  %2159 = vmatprep.subr.mxu0 0.0
  %2160 = vmatpush1.msra.mxu0 0.0
  %2161 = vmatprep.subr.mxu0 0.0
  %2162 = vmatpush1.msra.mxu0 0.0
  %2163 = vmatprep.subr.mxu0 0.0
  %2164 = vmatpush1.msra.mxu0 0.0
  %2165 = vmatprep.subr.mxu0 0.0
  %2166 = vmatpush1.msra.mxu0 0.0
  %2167 = vmatprep.subr.mxu0 0.0
  %2168 = vmatpush1.msra.mxu0 0.0
  %2169 = vmatprep.subr.mxu0 0.0
  %2170 = vmatpush1.msra.mxu0 0.0
  %2171 = vmatprep.subr.mxu0 0.0
  %2172 = vmatpush1.msra.mxu0 0.0
  %2173 = vmatprep.subr.mxu0 0.0
  %2174 = vmatpush1.msra.mxu0 0.0
  %2175 = vmatprep.subr.mxu0 0.0
  %2176 = vmatpush1.msra.mxu0 %v1377
  %2177 = vmatprep.subr.mxu0 0.0
  %2178 = vmatpush1.msra.mxu0 %v1376
  %2179 = vmatprep.subr.mxu0 0.0
  %2180 = vmatpush1.msra.mxu0 %v1375
  %2181 = vmatprep.subr.mxu0 0.0
  %2182 = vmatpush1.msra.mxu0 %v1374
  %2183 = vmatprep.subr.mxu0 0.0
  %2184 = vmatpush2.msra.mxu0 0.0
  %2185 = vmatprep.subr.mxu0 0.0
  %2186 = vmatpush2.msra.mxu0 0.0
  %2187 = vmatprep.subr.mxu0 0.0
  %2188 = vmatpush2.msra.mxu0 0.0
  %2189 = vmatprep.subr.mxu0 0.0
  %2190 = vmatpush2.msra.mxu0 0.0
  %2191 = vmatprep.subr.mxu0 0.0
  %2192 = vmatpush2.msra.mxu0 0.0
  %2193 = vmatprep.subr.mxu0 0.0
  %2194 = vmatpush2.msra.mxu0 0.0
  %2195 = vmatprep.subr.mxu0 0.0
  %2196 = vmatpush2.msra.mxu0 0.0
  %2197 = vmatprep.subr.mxu0 0.0
  %2198 = vmatpush2.msra.mxu0 0.0
  %2199 = vmatprep.subr.mxu0 0.0
  %2200 = vmatpush2.msra.mxu0 0.0
  %2201 = vmatprep.subr.mxu0 0.0
  %2202 = vmatpush2.msra.mxu0 0.0
  %2203 = vmatprep.subr.mxu0 0.0
  %2204 = vmatpush2.msra.mxu0 0.0
  %2205 = vmatprep.subr.mxu0 0.0
  %2206 = vmatpush2.msra.mxu0 0.0
  %2207 = vmatprep.subr.mxu0 0.0
  %2208 = vmatpush2.msra.mxu0 0.0
  %2209 = vmatprep.subr.mxu0 0.0
  %2210 = vmatpush2.msra.mxu0 0.0
  %2211 = vmatprep.subr.mxu0 0.0
  %2212 = vmatpush2.msra.mxu0 0.0
  %2213 = vmatprep.subr.mxu0 0.0
  %2214 = vmatpush2.msra.mxu0 0.0
  %2215 = vmatprep.mubr.f32.mxu0 0.0
  %2216 = vmatmul.mubr.f32.gmra.mxu0 %v2149
  %v2217 = vpop.f32.mrf.mxu0
  %v2218 = vadd.f32 0.0, %v2217
  %v2219 = vpop.f32.mrf.mxu0
  %2220 = vdwg.mxu0
  %v2221 = vadd.f32 %v2145, %v2218
  %v2222 = vxor.u32 %v2221, 2147483648
  %v2223 = vmul.f32 %v2222, 1.442695
  %v2224 = vpow.pop %v2223
  %v2225 = vadd.f32 %v2224, 1.0
  %v2226 = vrcp.pop %v2225
  %v2227 = vmul.f32 1.0, %v2226
  %v2228 = vtanh.pop %v2221
  %v2229 = vmul.f32 %v2227, %v2138
  %2231 = vrot.lane.b32.xlu0 %v2228, 32
  %v2232 = vpop.permute.xlu0 %2231
  %v2234 = vmul.f32 %v2227, %v2232
  %2236 = vrot.lane.b32.xlu0 %v2234, 32
  %v2237 = vpop.permute.xlu0 %2236
  %v2239 = vadd.f32 %v2229, %v2237
  %v2240 = vtanh.pop %v2239
  %2242 = vrot.lane.b32.xlu0 %v2240, 32
  %v2243 = vpop.permute.xlu0 %2242
  %v2245 = vmul.f32 %v2227, %v2243
  %v2246 = vsel %vm1106, %v2245, 0.0
  %2248 = vrot.lane.b32.xlu0 %v2246, 64
  %v2249 = vpop.permute.xlu0 %2248
  %2251 = vst.msk [vmem:[#allocation3 + $0x38] sm:$0xff] %vm240, %v2249
  %v2252 = vld [vmem:[#allocation3] sm:$0xff]
  %v2253 = vld [vmem:[#allocation3 + $0x8] sm:$0xff]
  %v2254 = vld [vmem:[#allocation3 + $0x10] sm:$0xff]
  %v2255 = vld [vmem:[#allocation3 + $0x18] sm:$0xff]
  %v2256 = vld [vmem:[#allocation3 + $0x20] sm:$0xff]
  %v2257 = vld [vmem:[#allocation3 + $0x28] sm:$0xff]
  %v2258 = vld [vmem:[#allocation3 + $0x30] sm:$0xff]
  %v2259 = vld [vmem:[#allocation3 + $0x38] sm:$0xff]
  %v2260 = vpack.c.bf16 %v2253, %v2252
  %v2261 = vpack.c.bf16 %v2255, %v2254
  %v2262 = vpack.c.bf16 %v2257, %v2256
  %v2263 = vpack.c.bf16 %v2259, %v2258
  %v2264 = vld [vmem:[%s15] sm:$0xf]
  %v2265 = vld [vmem:[%s15 + $0x4] sm:$0xf]
  %v2266 = vld [vmem:[%s15 + $0x8] sm:$0xf]
  %v2267 = vld [vmem:[%s15 + $0xc] sm:$0xf]
  %v2268 = vld [vmem:[%s16] sm:$0x1]
  %v2270 = vlaneseq
  %v2271 = vshrl.u32 %v2270, 7
  %v2272 = vsub.s32 0, %v2271
  %v2273 = vrot.slane %v2268, %v2272
  %v2279 = vunpack.c.l.b16 %v2264
  %v2280 = vunpack.c.l.b16 %v2265
  %v2281 = vunpack.c.l.b16 %v2266
  %v2282 = vunpack.c.l.b16 %v2267
  %v2283 = vpack.c.b16 %v2280, %v2279
  %v2284 = vpack.c.b16 %v2282, %v2281
  %v2288 = vsel %vm240, %v2260, 0
  %v2291 = vsel %vm240, %v2261, 0
  %v2294 = vsel %vm240, %v2262, 0
  %v2297 = vsel %vm240, %v2263, 0
  %2299 = vmatprep.subr.bf16.mxu0 0
  %2300 = vmatpush1.bf16.msra.mxu0 0
  %2301 = vmatprep.subr.bf16.mxu0 0
  %2302 = vmatpush1.bf16.msra.mxu0 0
  %2303 = vmatprep.subr.bf16.mxu0 0
  %2304 = vmatpush1.bf16.msra.mxu0 0
  %2305 = vmatprep.subr.bf16.mxu0 0
  %2306 = vmatpush1.bf16.msra.mxu0 0
  %2307 = vmatprep.subr.bf16.mxu0 0
  %2308 = vmatpush1.bf16.msra.mxu0 0
  %2309 = vmatprep.subr.bf16.mxu0 0
  %2310 = vmatpush1.bf16.msra.mxu0 0
  %2311 = vmatprep.subr.bf16.mxu0 0
  %2312 = vmatpush1.bf16.msra.mxu0 %v2284
  %2313 = vmatprep.subr.bf16.mxu0 0
  %2314 = vmatpush1.bf16.msra.mxu0 %v2283
  %2315 = vmatprep.subr.bf16.mxu0 0
  %2316 = vmatpush2.bf16.msra.mxu0 0
  %2317 = vmatprep.subr.bf16.mxu0 0
  %2318 = vmatpush2.bf16.msra.mxu0 0
  %2319 = vmatprep.subr.bf16.mxu0 0
  %2320 = vmatpush2.bf16.msra.mxu0 0
  %2321 = vmatprep.subr.bf16.mxu0 0
  %2322 = vmatpush2.bf16.msra.mxu0 0
  %2323 = vmatprep.subr.bf16.mxu0 0
  %2324 = vmatpush2.bf16.msra.mxu0 0
  %2325 = vmatprep.subr.bf16.mxu0 0
  %2326 = vmatpush2.bf16.msra.mxu0 0
  %2327 = vmatprep.subr.bf16.mxu0 0
  %2328 = vmatpush2.bf16.msra.mxu0 0
  %2329 = vmatprep.subr.bf16.mxu0 0
  %2330 = vmatpush2.bf16.msra.mxu0 0
  %2331 = vmatprep.mubr.bf16.mxu0 0
  %2332 = vmatmul.mubr.bf16.gmra.mxu0 %v2288
  %v2333 = vpop.f32.mrf.mxu0
  %v2334 = vadd.f32 %v2273, %v2333
  %v2335 = vpop.f32.mrf.mxu0
  %v2336 = vpop.f32.mrf.mxu0
  %v2337 = vadd.f32 %v2273, %v2336
  %v2338 = vpop.f32.mrf.mxu0
  %2339 = vmatprep.mubr.bf16.mxu0 0
  %2340 = vmatmul.mubr.bf16.gmra.mxu0 %v2291
  %v2341 = vpop.f32.mrf.mxu0
  %v2342 = vadd.f32 %v2273, %v2341
  %v2343 = vpop.f32.mrf.mxu0
  %v2344 = vpop.f32.mrf.mxu0
  %v2345 = vadd.f32 %v2273, %v2344
  %v2346 = vpop.f32.mrf.mxu0
  %2347 = vmatprep.mubr.bf16.mxu0 0
  %2348 = vmatmul.mubr.bf16.gmra.mxu0 %v2294
  %v2349 = vpop.f32.mrf.mxu0
  %v2350 = vadd.f32 %v2273, %v2349
  %v2351 = vpop.f32.mrf.mxu0
  %v2352 = vpop.f32.mrf.mxu0
  %v2353 = vadd.f32 %v2273, %v2352
  %v2354 = vpop.f32.mrf.mxu0
  %2355 = vmatprep.mubr.bf16.mxu0 0
  %2356 = vmatmul.mubr.bf16.gmra.mxu0 %v2297
  %v2357 = vpop.f32.mrf.mxu0
  %v2358 = vadd.f32 %v2273, %v2357
  %v2359 = vpop.f32.mrf.mxu0
  %v2360 = vpop.f32.mrf.mxu0
  %v2361 = vadd.f32 %v2273, %v2360
  %v2362 = vpop.f32.mrf.mxu0
  %2363 = vdwg.mxu0
  %v2364 = vlaneseq
  %v2365 = vand.u32 %v2364, 127
  %vm2366 = vcmp.lt.s32.totalorder %v2365, 16
  %vm2367 = vcmp.ge.s32.totalorder %v2365, 16
  %vm2368 = vcmp.lt.s32.totalorder %v2365, 28
  %vm2369 = vmand %vm2367, %vm2368
  %v2370 = vsel %vm2366, %v2334, -1e+30
  %v2371 = vsel %vm2366, %v2337, -1e+30
  %v2372 = vsel %vm2366, %v2342, -1e+30
  %v2373 = vsel %vm2366, %v2345, -1e+30
  %v2374 = vsel %vm2366, %v2350, -1e+30
  %v2375 = vsel %vm2366, %v2353, -1e+30
  %v2376 = vsel %vm2366, %v2358, -1e+30
  %v2377 = vsel %vm2366, %v2361, -1e+30
  %2378 = vmax.xlane.f32.xlu0 %v2370
  %v2379 = vpop.xlane.xlu0 %2378
  %2380 = vmax.xlane.f32.xlu0 %v2371
  %v2381 = vpop.xlane.xlu0 %2380
  %2382 = vmax.xlane.f32.xlu0 %v2372
  %v2383 = vpop.xlane.xlu0 %2382
  %2384 = vmax.xlane.f32.xlu0 %v2373
  %v2385 = vpop.xlane.xlu0 %2384
  %2386 = vmax.xlane.f32.xlu0 %v2374
  %v2387 = vpop.xlane.xlu0 %2386
  %2388 = vmax.xlane.f32.xlu0 %v2375
  %v2389 = vpop.xlane.xlu0 %2388
  %2390 = vmax.xlane.f32.xlu0 %v2376
  %v2391 = vpop.xlane.xlu0 %2390
  %2392 = vmax.xlane.f32.xlu0 %v2377
  %v2393 = vpop.xlane.xlu0 %2392
  %v2394 = vsel %vm2369, %v2334, -1e+30
  %v2395 = vsel %vm2369, %v2337, -1e+30
  %v2396 = vsel %vm2369, %v2342, -1e+30
  %v2397 = vsel %vm2369, %v2345, -1e+30
  %v2398 = vsel %vm2369, %v2350, -1e+30
  %v2399 = vsel %vm2369, %v2353, -1e+30
  %v2400 = vsel %vm2369, %v2358, -1e+30
  %v2401 = vsel %vm2369, %v2361, -1e+30
  %2402 = vmax.xlane.f32.xlu0 %v2394
  %v2403 = vpop.xlane.xlu0 %2402
  %2404 = vmax.xlane.f32.xlu0 %v2395
  %v2405 = vpop.xlane.xlu0 %2404
  %2406 = vmax.xlane.f32.xlu0 %v2396
  %v2407 = vpop.xlane.xlu0 %2406
  %2408 = vmax.xlane.f32.xlu0 %v2397
  %v2409 = vpop.xlane.xlu0 %2408
  %2410 = vmax.xlane.f32.xlu0 %v2398
  %v2411 = vpop.xlane.xlu0 %2410
  %2412 = vmax.xlane.f32.xlu0 %v2399
  %v2413 = vpop.xlane.xlu0 %2412
  %2414 = vmax.xlane.f32.xlu0 %v2400
  %v2415 = vpop.xlane.xlu0 %2414
  %2416 = vmax.xlane.f32.xlu0 %v2401
  %v2417 = vpop.xlane.xlu0 %2416
  %v2418 = vsel %vm2366, %v2379, %v2403
  %v2419 = vsel %vm2366, %v2381, %v2405
  %v2420 = vsel %vm2366, %v2383, %v2407
  %v2421 = vsel %vm2366, %v2385, %v2409
  %v2422 = vsel %vm2366, %v2387, %v2411
  %v2423 = vsel %vm2366, %v2389, %v2413
  %v2424 = vsel %vm2366, %v2391, %v2415
  %v2425 = vsel %vm2366, %v2393, %v2417
  %v2426 = vsub.f32 %v2334, %v2418
  %v2427 = vsub.f32 %v2337, %v2419
  %v2428 = vsub.f32 %v2342, %v2420
  %v2429 = vsub.f32 %v2345, %v2421
  %v2430 = vsub.f32 %v2350, %v2422
  %v2431 = vsub.f32 %v2353, %v2423
  %v2432 = vsub.f32 %v2358, %v2424
  %v2433 = vsub.f32 %v2361, %v2425
  %v2434 = vmul.f32 %v2426, 1.442695
  %v2435 = vpow.pop %v2434
  %v2436 = vmul.f32 %v2427, 1.442695
  %v2437 = vpow.pop %v2436
  %v2438 = vmul.f32 %v2428, 1.442695
  %v2439 = vpow.pop %v2438
  %v2440 = vmul.f32 %v2429, 1.442695
  %v2441 = vpow.pop %v2440
  %v2442 = vmul.f32 %v2430, 1.442695
  %v2443 = vpow.pop %v2442
  %v2444 = vmul.f32 %v2431, 1.442695
  %v2445 = vpow.pop %v2444
  %v2446 = vmul.f32 %v2432, 1.442695
  %v2447 = vpow.pop %v2446
  %v2448 = vmul.f32 %v2433, 1.442695
  %v2449 = vpow.pop %v2448
  %v2450 = vsel %vm2366, %v2435, 0.0
  %v2451 = vsel %vm2366, %v2437, 0.0
  %v2452 = vsel %vm2366, %v2439, 0.0
  %v2453 = vsel %vm2366, %v2441, 0.0
  %v2454 = vsel %vm2366, %v2443, 0.0
  %v2455 = vsel %vm2366, %v2445, 0.0
  %v2456 = vsel %vm2366, %v2447, 0.0
  %v2457 = vsel %vm2366, %v2449, 0.0
  %2458 = vadd.xlane.f32.xlu0 %v2450
  %v2459 = vpop.xlane.xlu0 %2458
  %2460 = vadd.xlane.f32.xlu0 %v2451
  %v2461 = vpop.xlane.xlu0 %2460
  %2462 = vadd.xlane.f32.xlu0 %v2452
  %v2463 = vpop.xlane.xlu0 %2462
  %2464 = vadd.xlane.f32.xlu0 %v2453
  %v2465 = vpop.xlane.xlu0 %2464
  %2466 = vadd.xlane.f32.xlu0 %v2454
  %v2467 = vpop.xlane.xlu0 %2466
  %2468 = vadd.xlane.f32.xlu0 %v2455
  %v2469 = vpop.xlane.xlu0 %2468
  %2470 = vadd.xlane.f32.xlu0 %v2456
  %v2471 = vpop.xlane.xlu0 %2470
  %2472 = vadd.xlane.f32.xlu0 %v2457
  %v2473 = vpop.xlane.xlu0 %2472
  %v2474 = vlog2.pop %v2459
  %v2475 = vmul.f32 %v2474, 0.6931472
  %v2476 = vlog2.pop %v2461
  %v2477 = vmul.f32 %v2476, 0.6931472
  %v2478 = vlog2.pop %v2463
  %v2479 = vmul.f32 %v2478, 0.6931472
  %v2480 = vlog2.pop %v2465
  %v2481 = vmul.f32 %v2480, 0.6931472
  %v2482 = vlog2.pop %v2467
  %v2483 = vmul.f32 %v2482, 0.6931472
  %v2484 = vlog2.pop %v2469
  %v2485 = vmul.f32 %v2484, 0.6931472
  %v2486 = vlog2.pop %v2471
  %v2487 = vmul.f32 %v2486, 0.6931472
  %v2488 = vlog2.pop %v2473
  %v2489 = vmul.f32 %v2488, 0.6931472
  %v2490 = vsel %vm2369, %v2435, 0.0
  %v2491 = vsel %vm2369, %v2437, 0.0
  %v2492 = vsel %vm2369, %v2439, 0.0
  %v2493 = vsel %vm2369, %v2441, 0.0
  %v2494 = vsel %vm2369, %v2443, 0.0
  %v2495 = vsel %vm2369, %v2445, 0.0
  %v2496 = vsel %vm2369, %v2447, 0.0
  %v2497 = vsel %vm2369, %v2449, 0.0
  %2498 = vadd.xlane.f32.xlu0 %v2490
  %v2499 = vpop.xlane.xlu0 %2498
  %2500 = vadd.xlane.f32.xlu0 %v2491
  %v2501 = vpop.xlane.xlu0 %2500
  %2502 = vadd.xlane.f32.xlu0 %v2492
  %v2503 = vpop.xlane.xlu0 %2502
  %2504 = vadd.xlane.f32.xlu0 %v2493
  %v2505 = vpop.xlane.xlu0 %2504
  %2506 = vadd.xlane.f32.xlu0 %v2494
  %v2507 = vpop.xlane.xlu0 %2506
  %2508 = vadd.xlane.f32.xlu0 %v2495
  %v2509 = vpop.xlane.xlu0 %2508
  %2510 = vadd.xlane.f32.xlu0 %v2496
  %v2511 = vpop.xlane.xlu0 %2510
  %2512 = vadd.xlane.f32.xlu0 %v2497
  %v2513 = vpop.xlane.xlu0 %2512
  %v2514 = vlog2.pop %v2499
  %v2515 = vmul.f32 %v2514, 0.6931472
  %v2516 = vlog2.pop %v2501
  %v2517 = vmul.f32 %v2516, 0.6931472
  %v2518 = vlog2.pop %v2503
  %v2519 = vmul.f32 %v2518, 0.6931472
  %v2520 = vlog2.pop %v2505
  %v2521 = vmul.f32 %v2520, 0.6931472
  %v2522 = vlog2.pop %v2507
  %v2523 = vmul.f32 %v2522, 0.6931472
  %v2524 = vlog2.pop %v2509
  %v2525 = vmul.f32 %v2524, 0.6931472
  %v2526 = vlog2.pop %v2511
  %v2527 = vmul.f32 %v2526, 0.6931472
  %v2528 = vlog2.pop %v2513
  %v2529 = vmul.f32 %v2528, 0.6931472
  %v2530 = vsel %vm2366, %v2475, %v2515
  %v2531 = vsel %vm2366, %v2477, %v2517
  %v2532 = vsel %vm2366, %v2479, %v2519
  %v2533 = vsel %vm2366, %v2481, %v2521
  %v2534 = vsel %vm2366, %v2483, %v2523
  %v2535 = vsel %vm2366, %v2485, %v2525
  %v2536 = vsel %vm2366, %v2487, %v2527
  %v2537 = vsel %vm2366, %v2489, %v2529
  %v2538 = vsub.f32 %v2426, %v2530
  %v2539 = vsub.f32 %v2427, %v2531
  %v2540 = vsub.f32 %v2428, %v2532
  %v2541 = vsub.f32 %v2429, %v2533
  %v2542 = vsub.f32 %v2430, %v2534
  %v2543 = vsub.f32 %v2431, %v2535
  %v2544 = vsub.f32 %v2432, %v2536
  %v2545 = vsub.f32 %v2433, %v2537
  %2546 = vst [vmem:[%s17] sm:$0xff] %v2538
  %2547 = vst [vmem:[%s17 + $0x8] sm:$0xff] %v2539
  %2548 = vst [vmem:[%s17 + $0x10] sm:$0xff] %v2540
  %2549 = vst [vmem:[%s17 + $0x18] sm:$0xff] %v2541
  %2550 = vst [vmem:[%s17 + $0x20] sm:$0xff] %v2542
  %2551 = vst [vmem:[%s17 + $0x28] sm:$0xff] %v2543
  %2552 = vst [vmem:[%s17 + $0x30] sm:$0xff] %v2544
  %2553 = vst [vmem:[%s17 + $0x38] sm:$0xff] %v2545
  // Predicated region
  $region70: #{lstm_vae_forward.1} parent=0 // pred_check
    _
  $region71: #{lstm_vae_forward.1} parent=0 // pred_check_branch
    %2555 = sbr.rel (0) target = $region73
  $region72: #{lstm_vae_forward.1} parent=0 // pred_region
    _
  $region73: #{lstm_vae_forward.1} parent=0 // pred_fallthru
    _
  // Predicated region
  $region74: #{lstm_vae_forward.1} parent=0 // pred_check
    _
  $region75: #{lstm_vae_forward.1} parent=0 // pred_check_branch
    %2557 = sbr.rel (0) target = $region77
  $region76: #{lstm_vae_forward.1} parent=0 // pred_region
    _
  $region77: #{lstm_vae_forward.1} parent=0 // pred_fallthru
    _
  // Predicated region
  $region78: #{lstm_vae_forward.1} parent=0 // pred_check
    _
  $region79: #{lstm_vae_forward.1} parent=0 // pred_check_branch
    %2559 = sbr.rel (0) target = $region81
  $region80: #{lstm_vae_forward.1} parent=0 // pred_region
    _
  $region81: #{lstm_vae_forward.1} parent=0 // pred_fallthru
    _
  // Predicated region
  $region82: #{lstm_vae_forward.1} parent=0 // pred_check
    _
  $region83: #{lstm_vae_forward.1} parent=0 // pred_check_branch
    %2561 = sbr.rel (0) target = $region85
  $region84: #{lstm_vae_forward.1} parent=0 // pred_region
    _
  $region85: #{lstm_vae_forward.1} parent=0 // pred_fallthru
    _
  // Predicated region
  $region86: #{lstm_vae_forward.1} parent=0 // pred_check
    _
  $region87: #{lstm_vae_forward.1} parent=0 // pred_check_branch
    %2563 = sbr.rel (0) target = $region89
  $region88: #{lstm_vae_forward.1} parent=0 // pred_region
    _
  $region89: #{lstm_vae_forward.1} parent=0 // pred_fallthru
    _
  // Predicated region
  $region90: #{lstm_vae_forward.1} parent=0 // pred_check
    _
  $region91: #{lstm_vae_forward.1} parent=0 // pred_check_branch
    %2565 = sbr.rel (0) target = $region93
  $region92: #{lstm_vae_forward.1} parent=0 // pred_region
    _
  $region93: #{lstm_vae_forward.1} parent=0 // pred_fallthru
    _
  // Predicated region
  $region94: #{lstm_vae_forward.1} parent=0 // pred_check
    _
  $region95: #{lstm_vae_forward.1} parent=0 // pred_check_branch
    %2567 = sbr.rel (0) target = $region97
  $region96: #{lstm_vae_forward.1} parent=0 // pred_region
    _
  $region97: #{lstm_vae_forward.1} parent=0 // pred_fallthru
    _
  // Predicated region
  $region98: #{lstm_vae_forward.1} parent=0 // pred_check
    _
  $region99: #{lstm_vae_forward.1} parent=0 // pred_check_branch
    %2569 = sbr.rel (0) target = $region101
  $region100: #{lstm_vae_forward.1} parent=0 // pred_region
    _
  $region101: #{lstm_vae_forward.1} parent=0 // pred_fallthru
    _
  // Predicated region
  $region102: #{lstm_vae_forward.1} parent=0 // pred_check
    _
  $region103: #{lstm_vae_forward.1} parent=0 // pred_check_branch
    %2571 = sbr.rel (0) target = $region105
  $region104: #{lstm_vae_forward.1} parent=0 // pred_region
    _
  $region105: #{lstm_vae_forward.1} parent=0 // pred_fallthru
    _
  // Predicated region
  $region106: #{lstm_vae_forward.1} parent=0 // pred_check
    _
  $region107: #{lstm_vae_forward.1} parent=0 // pred_check_branch
    %2573 = sbr.rel (0) target = $region109
  $region108: #{lstm_vae_forward.1} parent=0 // pred_region
    _
  $region109: #{lstm_vae_forward.1} parent=0 // pred_fallthru
    _
  // Predicated region
  $region110: #{lstm_vae_forward.1} parent=0 // pred_check
    _
  $region111: #{lstm_vae_forward.1} parent=0 // pred_check_branch
    %2575 = sbr.rel (0) target = $region113
  $region112: #{lstm_vae_forward.1} parent=0 // pred_region
    _
  $region113: #{lstm_vae_forward.1} parent=0 // pred_fallthru
    _
  // Predicated region
  $region114: #{lstm_vae_forward.1} parent=0 // pred_check
    _
  $region115: #{lstm_vae_forward.1} parent=0 // pred_check_branch
    %2577 = sbr.rel (0) target = $region117
  $region116: #{lstm_vae_forward.1} parent=0 // pred_region
    _
  $region117: #{lstm_vae_forward.1} parent=0 // pred_fallthru
    _

</llo_original>
